<compile_context>
chip_gen: v7x
topology: tpu7x:2x2x1
jax: 0.10.0
libtpu: 0.0.40
codegen_flags: <defaults>
</compile_context>

<pallas_src>
import jax
import jax.numpy as jnp
import numpy as np
from jax.experimental import pallas as pl
from jax.experimental.pallas import tpu as pltpu

_BRANCHES = ("decision", "dir", "type")
_COUTS = (2, 4, 7)          # head widths
_OFFS = (0, 2, 6)           # row offset of each head inside the packed slab
_CPAD = 16                  # packed head channels: 13 real, padded to 16 rows

_TM1_CAP = 8192             # conv1 lane-tile cap (block ~ 336*TM bytes)
_TM2_CAP = 2048             # conv2 lane-tile cap (2x1728*TM ~ 7 MiB, v5e-safe)
_VMEM_LIMIT = 32 * 1024 * 1024


# ------------------------------------------------------------------ tiling --
def _round_up(x, mult):
    return ((x + mult - 1) // mult) * mult


def _tile_m(m_pad, cap):
    """Lane tile over M (m_pad is a multiple of 128); result divides m_pad."""
    if m_pad <= cap:
        if m_pad >= 512 and m_pad % 256 == 0:
            return m_pad // 2      # >= 2 tiles so both v7x TensorCores get work
        return m_pad
    tm = (cap // 128) * 128
    while m_pad % tm:
        tm -= 128
    n = m_pad // tm
    if n > 1 and n % 2 == 1 and tm % 256 == 0:
        tm //= 2                   # even tile count for megacore balance
    return tm


def _pad_m(a, m_pad):
    m = a.shape[-1]
    if m == m_pad:
        return a
    return jnp.pad(a, [(0, 0)] * (a.ndim - 1) + [(0, m_pad - m)])


# ---------------------------------------------------------------- kernels ---
def _conv1_kernel(taps_ref, w_ref, b_ref, o_ref):
    # taps_ref: (9*Cin, TM) f32   w_ref: (96, 9*Cin) f32
    # b_ref:    (96, 1)     f32   o_ref: (96, TM)    bf16
    acc = jnp.dot(w_ref[...].astype(jnp.float32),
                  taps_ref[...].astype(jnp.float32),
                  preferred_element_type=jnp.float32)
    o_ref[...] = jnp.maximum(acc + b_ref[...], 0.0).astype(o_ref.dtype)


def _conv2_heads_kernel(taps_ref, w2_ref, b2_ref, wht_ref, bht_ref, o_ref):
    # taps_ref: (3, 288, TM) bf16   w2_ref:  (3, 64, 288) bf16
    # b2_ref:   (3, 64, 1)   f32    wht_ref: (3, 16, 64)  f32 (zero-padded rows)
    # bht_ref:  (16, 1)      f32    o_ref:   (16, TM)     f32
    acc = jnp.broadcast_to(bht_ref[...], o_ref.shape)
    for br in range(3):                                      # static unroll
        h2 = jnp.dot(w2_ref[br].astype(jnp.float32),
                     taps_ref[br].astype(jnp.float32),
                     preferred_element_type=jnp.float32)
        h2 = jnp.maximum(h2 + b2_ref[br], 0.0)
        # head computed transposed: (16, 64) @ (64, TM) -> lane-dense rows
        acc = acc + jnp.dot(wht_ref[br].astype(jnp.float32), h2,
                            preferred_element_type=jnp.float32)
    o_ref[...] = acc


# ------------------------------------------------------------- pallas_call --
def conv1_fused(taps, w1t, b1, *, tm):
    # taps: (9*Cin, Mp) f32   w1t: (96, 9*Cin) f32   b1: (96, 1) f32
    k, m = taps.shape
    cout = w1t.shape[0]
    return pl.pallas_call(
        _conv1_kernel,
        out_shape=jax.ShapeDtypeStruct((cout, m), jnp.bfloat16),
        grid=(m // tm,),
        in_specs=[
            pl.BlockSpec((k, tm), lambda i: (0, i)),
            pl.BlockSpec((cout, k), lambda i: (0, 0)),
            pl.BlockSpec((cout, 1), lambda i: (0, 0)),
        ],
        out_specs=pl.BlockSpec((cout, tm), lambda i: (0, i)),
        compiler_params=pltpu.CompilerParams(
            dimension_semantics=("parallel",),
            vmem_limit_bytes=_VMEM_LIMIT),
    )(taps, w1t, b1)


def conv2_heads_fused(taps2, w2t, b2, wht, bht, *, tm):
    # taps2: (3, 288, Mp) bf16   w2t: (3, 64, 288) bf16   b2: (3, 64, 1) f32
    # wht:   (3, 16, 64)  f32    bht: (16, 1) f32
    nbr, k, m = taps2.shape
    return pl.pallas_call(
        _conv2_heads_kernel,
        out_shape=jax.ShapeDtypeStruct((_CPAD, m), jnp.float32),
        grid=(m // tm,),
        in_specs=[
            pl.BlockSpec((nbr, k, tm), lambda i: (0, 0, i)),
            pl.BlockSpec((nbr, 64, k), lambda i: (0, 0, 0)),
            pl.BlockSpec((nbr, 64, 1), lambda i: (0, 0, 0)),
            pl.BlockSpec((nbr, _CPAD, 64), lambda i: (0, 0, 0)),
            pl.BlockSpec((_CPAD, 1), lambda i: (0, 0)),
        ],
        out_specs=pl.BlockSpec((_CPAD, tm), lambda i: (0, i)),
        compiler_params=pltpu.CompilerParams(
            dimension_semantics=("parallel",),
            vmem_limit_bytes=_VMEM_LIMIT),
    )(taps2, w2t, b2, wht, bht)


# -------------------------------------------------------------------- glue --
def _extract_taps(x_cbhw, H, W):
    # (C, B, H, W) -> (9*C, B*H*W); rows ordered (dy, dx, c) to match a
    # row-major reshape of HWIO conv weights.
    C = x_cbhw.shape[0]
    xp = jnp.pad(x_cbhw, ((0, 0), (0, 0), (1, 1), (1, 1)))
    taps = [xp[:, :, dy:dy + H, dx:dx + W].reshape(C, -1)
            for dy in range(3) for dx in range(3)]
    return jnp.concatenate(taps, axis=0)


def _extract_taps_branch_major(h1_sp, H, W):
    # (96, B, H, W) -> (864, B*H*W); rows 288*br:288*(br+1) belong to branch br
    # with (dy, dx, c) order inside.  Built directly -> no stack relayout.
    xp = jnp.pad(h1_sp, ((0, 0), (0, 0), (1, 1), (1, 1)))
    rows = []
    for br in range(3):
        xb = xp[32 * br:32 * (br + 1)]
        rows += [xb[:, :, dy:dy + H, dx:dx + W].reshape(32, -1)
                 for dy in range(3) for dx in range(3)]
    return jnp.concatenate(rows, axis=0)


def init_params(key, in_channels):
    # deterministic, PyTorch-like uniform(-1/sqrt(fan_in), 1/sqrt(fan_in)) init
    def conv_init(k, kh, kw, cin, cout):
        k1, k2 = jax.random.split(k)
        bound = 1.0 / np.sqrt(cin * kh * kw)
        w = jax.random.uniform(k1, (kh, kw, cin, cout), jnp.float32, -bound, bound)
        b = jax.random.uniform(k2, (cout,), jnp.float32, -bound, bound)
        return w, b

    keys = jax.random.split(key, 9)
    params = {}
    for idx, (name, cout) in enumerate(zip(_BRANCHES, _COUTS)):
        ks = keys[3 * idx:3 * idx + 3]
        w1, b1 = conv_init(ks[0], 3, 3, in_channels, 32)
        w2, b2 = conv_init(ks[1], 3, 3, 32, 64)
        wh, bh = conv_init(ks[2], 1, 1, 64, cout)
        params[name] = dict(w1=w1, b1=b1, w2=w2, b2=b2,
                            wh=wh.reshape(64, cout), bh=bh)
    return params


def pack_params(params):
    """One-time packing of torch-layout params into the fused kernel layout
    (hoisted out of the jitted forward per the perf review)."""
    f32, bf16 = jnp.float32, jnp.bfloat16
    w1t = jnp.concatenate(
        [params[n]["w1"].reshape(-1, 32) for n in _BRANCHES],
        axis=1).T.astype(f32)                                   # (96, 9*Cin)
    b1 = jnp.concatenate(
        [params[n]["b1"] for n in _BRANCHES]).reshape(96, 1).astype(f32)
    w2t = jnp.stack(
        [params[n]["w2"].reshape(288, 64).T for n in _BRANCHES]
    ).astype(bf16)                                              # (3, 64, 288)
    b2 = jnp.stack(
        [params[n]["b2"].reshape(64, 1) for n in _BRANCHES]).astype(f32)
    wht = jnp.zeros((3, _CPAD, 64), f32)
    bht = jnp.zeros((_CPAD, 1), f32)
    for i, n in enumerate(_BRANCHES):
        wht = wht.at[i, _OFFS[i]:_OFFS[i] + _COUTS[i], :].set(params[n]["wh"].T)
        bht = bht.at[_OFFS[i]:_OFFS[i] + _COUTS[i], 0].set(params[n]["bh"])
    return dict(w1t=w1t, b1=b1, w2t=w2t, b2=b2, wht=wht, bht=bht)


@jax.jit
def produce_head_forward(x_nchw, packed):
    B, Cin, H, W = x_nchw.shape
    M = B * H * W
    m_pad = _round_up(M, 128)
    tm1 = _tile_m(m_pad, _TM1_CAP)
    tm2 = _tile_m(m_pad, _TM2_CAP)

    # ---- layer 1 (shared across all three branches): conv3x3 + ReLU --------
    x_cm = jnp.transpose(x_nchw, (1, 0, 2, 3)).astype(jnp.float32)  # (Cin,B,H,W)
    taps1 = _pad_m(_extract_taps(x_cm, H, W), m_pad)                # (9*Cin, Mp)
    h1 = conv1_fused(taps1, packed["w1t"], packed["b1"], tm=tm1)    # (96, Mp) bf16

    # ---- layer 2 + 1x1 heads, all branches fused in one kernel -------------
    h1_sp = h1[:, :M].reshape(96, B, H, W)
    taps2 = _pad_m(_extract_taps_branch_major(h1_sp, H, W), m_pad)  # (864, Mp)
    taps2 = taps2.reshape(3, 288, m_pad)                            # free reshape
    logits = conv2_heads_fused(taps2, packed["w2t"], packed["b2"],
                               packed["wht"], packed["bht"], tm=tm2)  # (16, Mp)

    # ---- unpack: the (16, M) slab is already channel-major (NCHW-flat) -----
    logits = logits[:, :M].reshape(_CPAD, B, H, W)
    return tuple(
        jnp.transpose(logits[_OFFS[i]:_OFFS[i] + _COUTS[i]], (1, 0, 2, 3))
        for i in range(3))


# ------------------------------------------------------- pure-JAX reference -
def ref_branch(x_nchw, p):
    def conv(x, w_hwio, b, pad):
        w = jnp.transpose(w_hwio, (3, 2, 0, 1))  # HWIO -> OIHW
        y = jax.lax.conv_general_dilated(
            x, w, (1, 1), [(pad, pad), (pad, pad)],
            dimension_numbers=("NCHW", "OIHW", "NCHW"))
        return y + b[None, :, None, None]

    h = jax.nn.relu(conv(x_nchw, p["w1"], p["b1"], 1))
    h = jax.nn.relu(conv(h, p["w2"], p["b2"], 1))
    return conv(h, p["wh"].reshape(1, 1, 64, -1), p["bh"], 0)


if __name__ == "__main__":
    key = jax.random.PRNGKey(0)
    kx, kp = jax.random.split(key)
    B, Cin, H, W = 2, 4, 16, 16
    x = jax.random.normal(kx, (B, Cin, H, W), jnp.float32)
    params = init_params(kp, Cin)
    packed = pack_params(params)           # one-time, outside the jitted path

    dec, dire, typ = produce_head_forward(x, packed)
    jax.block_until_ready((dec, dire, typ))

    assert dec.shape == (B, 2, H, W)
    assert dire.shape == (B, 4, H, W)
    assert typ.shape == (B, 7, H, W)

    for name, got in (("decision", dec), ("dir", dire), ("type", typ)):
        ref = ref_branch(x, params[name])
        np.testing.assert_allclose(np.asarray(got, dtype=np.float32),
                                   np.asarray(ref),
                                   rtol=2e-2, atol=2e-2)

    print("KERNEL_OK")
</pallas_src>

<mosaic_0001>
module attributes {stable_mosaic.version = 11 : i64} {
  func.func @_conv1_kernel(%arg0: i32, %arg1: memref<36x256xf32, #tpu.memory_space<vmem>>, %arg2: memref<96x36xf32, #tpu.memory_space<vmem>>, %arg3: memref<96x1xf32, #tpu.memory_space<vmem>>, %arg4: memref<96x256xbf16, #tpu.memory_space<vmem>>) attributes {dimension_semantics = [#tpu.dimension_semantics<parallel>], iteration_bounds = array<i64: 2>, scalar_prefetch = 0 : i64, scratch_operands = 0 : i64, tpu.core_type = #tpu.core_type<tc>, window_params = [{transform_indices = @transform_0, window_bounds = array<i64: 36, 256>}, {pipeline_mode = #tpu.pipeline_mode<synchronous>, transform_indices = @transform_1, window_bounds = array<i64: 96, 36>}, {pipeline_mode = #tpu.pipeline_mode<synchronous>, transform_indices = @transform_2, window_bounds = array<i64: 96, 1>}, {transform_indices = @transform_3, window_bounds = array<i64: 96, 256>}]} {
    %c0 = arith.constant 0 : index
    %c0_0 = arith.constant 0 : index
    %0 = vector.load %arg2[%c0, %c0_0] : memref<96x36xf32, #tpu.memory_space<vmem>>, vector<96x36xf32>
    %c0_1 = arith.constant 0 : index
    %c0_2 = arith.constant 0 : index
    %1 = vector.load %arg1[%c0_1, %c0_2] : memref<36x256xf32, #tpu.memory_space<vmem>>, vector<36x256xf32>
    %cst = arith.constant dense<0.000000e+00> : vector<96x256xf32>
    %2 = tpu.matmul %0, %1, %cst {dimension_numbers = #tpu.dot_dimension_numbers<[1], [0], [0], [1], [0, 0, 1, 1], [], []>} : vector<96x36xf32>, vector<36x256xf32>, vector<96x256xf32> -> vector<96x256xf32>
    %c0_3 = arith.constant 0 : index
    %c0_4 = arith.constant 0 : index
    %3 = vector.load %arg3[%c0_3, %c0_4] : memref<96x1xf32, #tpu.memory_space<vmem>>, vector<96x1xf32>
    %4 = vector.broadcast %3 : vector<96x1xf32> to vector<96x256xf32>
    %5 = arith.addf %2, %4 : vector<96x256xf32>
    %cst_5 = arith.constant 0.000000e+00 : f32
    %6 = vector.broadcast %cst_5 : f32 to vector<96x256xf32>
    %7 = arith.maximumf %5, %6 : vector<96x256xf32>
    %8 = arith.truncf %7 : vector<96x256xf32> to vector<96x256xbf16>
    %c0_6 = arith.constant 0 : index
    %c0_7 = arith.constant 0 : index
    %9 = vector.load %arg4[%c0_6, %c0_7] : memref<96x256xbf16, #tpu.memory_space<vmem>>, vector<96x256xbf16>
    tpu.vector_store %arg4[%c0_6, %c0_7], %8 {strides = array<i32>} : memref<96x256xbf16, #tpu.memory_space<vmem>>, vector<96x256xbf16>,
    return
  }
  func.func @transform_0(%arg0: i32) -> (i32, i32) {
    %c0_i32 = arith.constant 0 : i32
    %c0_i32_0 = arith.constant 0 : i32
    return %c0_i32, %arg0 : i32, i32
  }
  func.func @transform_1(%arg0: i32) -> (i32, i32) {
    %c0_i32 = arith.constant 0 : i32
    %c0_i32_0 = arith.constant 0 : i32
    %c0_i32_1 = arith.constant 0 : i32
    return %c0_i32, %c0_i32_0 : i32, i32
  }
  func.func @transform_2(%arg0: i32) -> (i32, i32) {
    %c0_i32 = arith.constant 0 : i32
    %c0_i32_0 = arith.constant 0 : i32
    %c0_i32_1 = arith.constant 0 : i32
    return %c0_i32, %c0_i32_0 : i32, i32
  }
  func.func @transform_3(%arg0: i32) -> (i32, i32) {
    %c0_i32 = arith.constant 0 : i32
    %c0_i32_0 = arith.constant 0 : i32
    return %c0_i32, %arg0 : i32, i32
  }
}

module attributes {stable_mosaic.version = 11 : i64} {
  func.func @_conv2_heads_kernel(%arg0: i32, %arg1: memref<3x288x256xbf16, #tpu.memory_space<vmem>>, %arg2: memref<3x64x288xbf16, #tpu.memory_space<vmem>>, %arg3: memref<3x64x1xf32, #tpu.memory_space<vmem>>, %arg4: memref<3x16x64xf32, #tpu.memory_space<vmem>>, %arg5: memref<16x1xf32, #tpu.memory_space<vmem>>, %arg6: memref<16x256xf32, #tpu.memory_space<vmem>>) attributes {dimension_semantics = [#tpu.dimension_semantics<parallel>], iteration_bounds = array<i64: 2>, scalar_prefetch = 0 : i64, scratch_operands = 0 : i64, tpu.core_type = #tpu.core_type<tc>, window_params = [{transform_indices = @transform_0, window_bounds = array<i64: 3, 288, 256>}, {pipeline_mode = #tpu.pipeline_mode<synchronous>, transform_indices = @transform_1, window_bounds = array<i64: 3, 64, 288>}, {pipeline_mode = #tpu.pipeline_mode<synchronous>, transform_indices = @transform_2, window_bounds = array<i64: 3, 64, 1>}, {pipeline_mode = #tpu.pipeline_mode<synchronous>, transform_indices = @transform_3, window_bounds = array<i64: 3, 16, 64>}, {pipeline_mode = #tpu.pipeline_mode<synchronous>, transform_indices = @transform_4, window_bounds = array<i64: 16, 1>}, {transform_indices = @transform_5, window_bounds = array<i64: 16, 256>}]} {
    %c0 = arith.constant 0 : index
    %c0_0 = arith.constant 0 : index
    %0 = vector.load %arg5[%c0, %c0_0] : memref<16x1xf32, #tpu.memory_space<vmem>>, vector<16x1xf32>
    %1 = vector.shape_cast %0 : vector<16x1xf32> to vector<16x1xf32>
    %2 = vector.broadcast %1 : vector<16x1xf32> to vector<16x256xf32>
    %c0_1 = arith.constant 0 : index
    %c0_2 = arith.constant 0 : index
    %c0_3 = arith.constant 0 : index
    %3 = vector.load %arg2[%c0_1, %c0_2, %c0_3] : memref<3x64x288xbf16, #tpu.memory_space<vmem>>, vector<1x64x288xbf16>
    %4 = vector.shape_cast %3 : vector<1x64x288xbf16> to vector<64x288xbf16>
    %5 = arith.extf %4 : vector<64x288xbf16> to vector<64x288xf32>
    %c0_4 = arith.constant 0 : index
    %c0_5 = arith.constant 0 : index
    %c0_6 = arith.constant 0 : index
    %6 = vector.load %arg1[%c0_4, %c0_5, %c0_6] : memref<3x288x256xbf16, #tpu.memory_space<vmem>>, vector<1x288x256xbf16>
    %7 = vector.shape_cast %6 : vector<1x288x256xbf16> to vector<288x256xbf16>
    %8 = arith.extf %7 : vector<288x256xbf16> to vector<288x256xf32>
    %cst = arith.constant dense<0.000000e+00> : vector<64x256xf32>
    %9 = tpu.matmul %5, %8, %cst {dimension_numbers = #tpu.dot_dimension_numbers<[1], [0], [0], [1], [0, 0, 1, 1], [], []>} : vector<64x288xf32>, vector<288x256xf32>, vector<64x256xf32> -> vector<64x256xf32>
    %c0_7 = arith.constant 0 : index
    %c0_8 = arith.constant 0 : index
    %c0_9 = arith.constant 0 : index
    %10 = vector.load %arg3[%c0_7, %c0_8, %c0_9] : memref<3x64x1xf32, #tpu.memory_space<vmem>>, vector<1x64x1xf32>
    %11 = vector.shape_cast %10 : vector<1x64x1xf32> to vector<64x1xf32>
    %12 = vector.broadcast %11 : vector<64x1xf32> to vector<64x256xf32>
    %13 = arith.addf %9, %12 : vector<64x256xf32>
    %cst_10 = arith.constant 0.000000e+00 : f32
    %14 = vector.broadcast %cst_10 : f32 to vector<64x256xf32>
    %15 = arith.maximumf %13, %14 : vector<64x256xf32>
    %c0_11 = arith.constant 0 : index
    %c0_12 = arith.constant 0 : index
    %c0_13 = arith.constant 0 : index
    %16 = vector.load %arg4[%c0_11, %c0_12, %c0_13] : memref<3x16x64xf32, #tpu.memory_space<vmem>>, vector<1x16x64xf32>
    %17 = vector.shape_cast %16 : vector<1x16x64xf32> to vector<16x64xf32>
    %cst_14 = arith.constant dense<0.000000e+00> : vector<16x256xf32>
    %18 = tpu.matmul %17, %15, %cst_14 {dimension_numbers = #tpu.dot_dimension_numbers<[1], [0], [0], [1], [0, 0, 1, 1], [], []>} : vector<16x64xf32>, vector<64x256xf32>, vector<16x256xf32> -> vector<16x256xf32>
    %19 = arith.addf %2, %18 : vector<16x256xf32>
    %c1 = arith.constant 1 : index
    %c0_15 = arith.constant 0 : index
    %c0_16 = arith.constant 0 : index
    %20 = vector.load %arg2[%c1, %c0_15, %c0_16] : memref<3x64x288xbf16, #tpu.memory_space<vmem>>, vector<1x64x288xbf16>
    %21 = vector.shape_cast %20 : vector<1x64x288xbf16> to vector<64x288xbf16>
    %22 = arith.extf %21 : vector<64x288xbf16> to vector<64x288xf32>
    %c1_17 = arith.constant 1 : index
    %c0_18 = arith.constant 0 : index
    %c0_19 = arith.constant 0 : index
    %23 = vector.load %arg1[%c1_17, %c0_18, %c0_19] : memref<3x288x256xbf16, #tpu.memory_space<vmem>>, vector<1x288x256xbf16>
    %24 = vector.shape_cast %23 : vector<1x288x256xbf16> to vector<288x256xbf16>
    %25 = arith.extf %24 : vector<288x256xbf16> to vector<288x256xf32>
    %cst_20 = arith.constant dense<0.000000e+00> : vector<64x256xf32>
    %26 = tpu.matmul %22, %25, %cst_20 {dimension_numbers = #tpu.dot_dimension_numbers<[1], [0], [0], [1], [0, 0, 1, 1], [], []>} : vector<64x288xf32>, vector<288x256xf32>, vector<64x256xf32> -> vector<64x256xf32>
    %c1_21 = arith.constant 1 : index
    %c0_22 = arith.constant 0 : index
    %c0_23 = arith.constant 0 : index
    %27 = vector.load %arg3[%c1_21, %c0_22, %c0_23] : memref<3x64x1xf32, #tpu.memory_space<vmem>>, vector<1x64x1xf32>
    %28 = vector.shape_cast %27 : vector<1x64x1xf32> to vector<64x1xf32>
    %29 = vector.broadcast %28 : vector<64x1xf32> to vector<64x256xf32>
    %30 = arith.addf %26, %29 : vector<64x256xf32>
    %cst_24 = arith.constant 0.000000e+00 : f32
    %31 = vector.broadcast %cst_24 : f32 to vector<64x256xf32>
    %32 = arith.maximumf %30, %31 : vector<64x256xf32>
    %c1_25 = arith.constant 1 : index
    %c0_26 = arith.constant 0 : index
    %c0_27 = arith.constant 0 : index
    %33 = vector.load %arg4[%c1_25, %c0_26, %c0_27] : memref<3x16x64xf32, #tpu.memory_space<vmem>>, vector<1x16x64xf32>
    %34 = vector.shape_cast %33 : vector<1x16x64xf32> to vector<16x64xf32>
    %cst_28 = arith.constant dense<0.000000e+00> : vector<16x256xf32>
    %35 = tpu.matmul %34, %32, %cst_28 {dimension_numbers = #tpu.dot_dimension_numbers<[1], [0], [0], [1], [0, 0, 1, 1], [], []>} : vector<16x64xf32>, vector<64x256xf32>, vector<16x256xf32> -> vector<16x256xf32>
    %36 = arith.addf %19, %35 : vector<16x256xf32>
    %c2 = arith.constant 2 : index
    %c0_29 = arith.constant 0 : index
    %c0_30 = arith.constant 0 : index
    %37 = vector.load %arg2[%c2, %c0_29, %c0_30] : memref<3x64x288xbf16, #tpu.memory_space<vmem>>, vector<1x64x288xbf16>
    %38 = vector.shape_cast %37 : vector<1x64x288xbf16> to vector<64x288xbf16>
    %39 = arith.extf %38 : vector<64x288xbf16> to vector<64x288xf32>
    %c2_31 = arith.constant 2 : index
    %c0_32 = arith.constant 0 : index
    %c0_33 = arith.constant 0 : index
    %40 = vector.load %arg1[%c2_31, %c0_32, %c0_33] : memref<3x288x256xbf16, #tpu.memory_space<vmem>>, vector<1x288x256xbf16>
    %41 = vector.shape_cast %40 : vector<1x288x256xbf16> to vector<288x256xbf16>
    %42 = arith.extf %41 : vector<288x256xbf16> to vector<288x256xf32>
    %cst_34 = arith.constant dense<0.000000e+00> : vector<64x256xf32>
    %43 = tpu.matmul %39, %42, %cst_34 {dimension_numbers = #tpu.dot_dimension_numbers<[1], [0], [0], [1], [0, 0, 1, 1], [], []>} : vector<64x288xf32>, vector<288x256xf32>, vector<64x256xf32> -> vector<64x256xf32>
    %c2_35 = arith.constant 2 : index
    %c0_36 = arith.constant 0 : index
    %c0_37 = arith.constant 0 : index
    %44 = vector.load %arg3[%c2_35, %c0_36, %c0_37] : memref<3x64x1xf32, #tpu.memory_space<vmem>>, vector<1x64x1xf32>
    %45 = vector.shape_cast %44 : vector<1x64x1xf32> to vector<64x1xf32>
    %46 = vector.broadcast %45 : vector<64x1xf32> to vector<64x256xf32>
    %47 = arith.addf %43, %46 : vector<64x256xf32>
    %cst_38 = arith.constant 0.000000e+00 : f32
    %48 = vector.broadcast %cst_38 : f32 to vector<64x256xf32>
    %49 = arith.maximumf %47, %48 : vector<64x256xf32>
    %c2_39 = arith.constant 2 : index
    %c0_40 = arith.constant 0 : index
    %c0_41 = arith.constant 0 : index
    %50 = vector.load %arg4[%c2_39, %c0_40, %c0_41] : memref<3x16x64xf32, #tpu.memory_space<vmem>>, vector<1x16x64xf32>
    %51 = vector.shape_cast %50 : vector<1x16x64xf32> to vector<16x64xf32>
    %cst_42 = arith.constant dense<0.000000e+00> : vector<16x256xf32>
    %52 = tpu.matmul %51, %49, %cst_42 {dimension_numbers = #tpu.dot_dimension_numbers<[1], [0], [0], [1], [0, 0, 1, 1], [], []>} : vector<16x64xf32>, vector<64x256xf32>, vector<16x256xf32> -> vector<16x256xf32>
    %53 = arith.addf %36, %52 : vector<16x256xf32>
    %c0_43 = arith.constant 0 : index
    %c0_44 = arith.constant 0 : index
    %54 = vector.load %arg6[%c0_43, %c0_44] : memref<16x256xf32, #tpu.memory_space<vmem>>, vector<16x256xf32>
    tpu.vector_store %arg6[%c0_43, %c0_44], %53 {strides = array<i32>} : memref<16x256xf32, #tpu.memory_space<vmem>>, vector<16x256xf32>,
    return
  }
  func.func @transform_0(%arg0: i32) -> (i32, i32, i32) {
    %c0_i32 = arith.constant 0 : i32
    %c0_i32_0 = arith.constant 0 : i32
    %c0_i32_1 = arith.constant 0 : i32
    return %c0_i32, %c0_i32_0, %arg0 : i32, i32, i32
  }
  func.func @transform_1(%arg0: i32) -> (i32, i32, i32) {
    %c0_i32 = arith.constant 0 : i32
    %c0_i32_0 = arith.constant 0 : i32
    %c0_i32_1 = arith.constant 0 : i32
    %c0_i32_2 = arith.constant 0 : i32
    return %c0_i32, %c0_i32_0, %c0_i32_1 : i32, i32, i32
  }
  func.func @transform_2(%arg0: i32) -> (i32, i32, i32) {
    %c0_i32 = arith.constant 0 : i32
    %c0_i32_0 = arith.constant 0 : i32
    %c0_i32_1 = arith.constant 0 : i32
    %c0_i32_2 = arith.constant 0 : i32
    return %c0_i32, %c0_i32_0, %c0_i32_1 : i32, i32, i32
  }
  func.func @transform_3(%arg0: i32) -> (i32, i32, i32) {
    %c0_i32 = arith.constant 0 : i32
    %c0_i32_0 = arith.constant 0 : i32
    %c0_i32_1 = arith.constant 0 : i32
    %c0_i32_2 = arith.constant 0 : i32
    return %c0_i32, %c0_i32_0, %c0_i32_1 : i32, i32, i32
  }
  func.func @transform_4(%arg0: i32) -> (i32, i32) {
    %c0_i32 = arith.constant 0 : i32
    %c0_i32_0 = arith.constant 0 : i32
    %c0_i32_1 = arith.constant 0 : i32
    return %c0_i32, %c0_i32_0 : i32, i32
  }
  func.func @transform_5(%arg0: i32) -> (i32, i32) {
    %c0_i32 = arith.constant 0 : i32
    %c0_i32_0 = arith.constant 0 : i32
    return %c0_i32, %arg0 : i32, i32
  }
}

</mosaic_0001>

<llo_original>
// kernel: produce_head_forward.2
$region0: #{produce_head_forward.2}
  #allocation0 [shape = 'u32[]', space=smem, size = 0x4, offset = 0x4, fixed_abs, tag = 'smem constant byte address 0x4 - core index']
  #allocation1 [shape = 'u32[144,128]{1,0:T(1,128)}', space=vmem, size = 0x12000, scoped, tag = 'internal scratch']
  %s0 = inlined_call_operand.vmem [shape: f32[36,512], index: 0, kind: input, shape index: {}]
  %s1 = inlined_call_operand.vmem [shape: f32[96,36], index: 1, kind: input, shape index: {}]
  %s2 = inlined_call_operand.vmem [shape: f32[96,1], index: 2, kind: input, shape index: {}]
  %s3 = inlined_call_operand.vmem [shape: bf16[96,512], index: 3, kind: output, shape index: {}]
  %s4 = sld [smem:[#allocation0]]
  $region102: #{produce_head_forward.2} parent=0
    _
  %s6 = ssub.s32 1, %s4
  %s7 = scalar_select 0, %s6, %s4
  $region1: #{produce_head_forward.2} parent=0
    #allocation2 [shape = 'u8[81920]{0}', space=vmem, size = 0x14000, scoped, tag = 'input window, operand 0']
    #allocation3 [shape = 'u8[98304]{0}', space=vmem, size = 0x18000, scoped, tag = 'output window, operand 0']
    loop: start=0, step=1, limit=4
    $region2: #{produce_head_forward.2} parent=1 // loop_pre_header
      _
    $region3: #{produce_head_forward.2} parent=1 // loop_header
      %s9 = sphi 0, %s13
      %p10 = scmp.ge.s32.totalorder %s9, 4
      %s19 = sphi 0, %s21
      %s22 = sphi 0, %s19
      %s23 = sphi 0, %s22
      %s39 = sphi 0, %s23
      %s43 = sphi 0, %s43
      %s45 = sphi 0, %s43
      %s46 = sphi 0, %s45
      %s60 = sphi 0, %s46
      %s64 = sphi 0, %s64
      %s66 = sphi 0, %s64
      %s67 = sphi 0, %s66
      %s81 = sphi 0, %s67
      %s87 = sphi 0, %s89
      %s90 = sphi 0, %s87
      %s91 = sphi 0, %s90
      %s107 = sphi 0, %s91
    $region4: #{produce_head_forward.2} parent=1 // loop_header_branch
      %12 = sbr.rel (%p10) target = $region8
    $region5: #{produce_head_forward.2} parent=1 // loop_body
      %s14 = ssub.s32 %s9, 1
      %s15 = ssub.s32 %s9, 2
      %s16 = sadd.s32 %s9, 1
      %s17 = ssub.s32 %s9, %s16
      %p18 = scmp.eq.s32.totalorder %s17, 0
      %s20 = sadd.s32 %s19, 1
      %s21 = scalar_select %p18, %s19, %s20
      %p24 = pneg %p18
      %p25 = scmp.eq.s32.totalorder %s9, 1
      %p26 = por %p24, %p25
      %p27 = scmp.ne.s32.totalorder %s19, %s22
      %p28 = scmp.eq.s32.totalorder %s9, 0
      %p29 = por %p27, %p28
      %p30 = scmp.ne.s32.totalorder %s19, %s22
      %p31 = scmp.eq.s32.totalorder %s14, 1
      %p32 = por %p30, %p31
      %p33 = scmp.ne.s32.totalorder %s22, %s23
      %p34 = scmp.eq.s32.totalorder %s14, 0
      %p35 = por %p33, %p34
      %p36 = scmp.ne.s32.totalorder %s22, %s23
      %p37 = scmp.eq.s32.totalorder %s15, 1
      %p38 = por %p36, %p37
      %p40 = scmp.ne.s32.totalorder %s23, %s39
      %p41 = scmp.eq.s32.totalorder %s15, 0
      %p42 = por %p40, %p41
      %s44 = sadd.s32 %s43, 1
      %p47 = scmp.eq.s32.totalorder %s9, 1
      %p48 = scmp.ne.s32.totalorder %s43, %s45
      %p49 = scmp.eq.s32.totalorder %s9, 0
      %p50 = por %p48, %p49
      %p51 = scmp.ne.s32.totalorder %s43, %s45
      %p52 = scmp.eq.s32.totalorder %s14, 1
      %p53 = por %p51, %p52
      %p54 = scmp.ne.s32.totalorder %s45, %s46
      %p55 = scmp.eq.s32.totalorder %s14, 0
      %p56 = por %p54, %p55
      %p57 = scmp.ne.s32.totalorder %s45, %s46
      %p58 = scmp.eq.s32.totalorder %s15, 1
      %p59 = por %p57, %p58
      %p61 = scmp.ne.s32.totalorder %s46, %s60
      %p62 = scmp.eq.s32.totalorder %s15, 0
      %p63 = por %p61, %p62
      %s65 = sadd.s32 %s64, 1
      %p68 = scmp.eq.s32.totalorder %s9, 1
      %p69 = scmp.ne.s32.totalorder %s64, %s66
      %p70 = scmp.eq.s32.totalorder %s9, 0
      %p71 = por %p69, %p70
      %p72 = scmp.ne.s32.totalorder %s64, %s66
      %p73 = scmp.eq.s32.totalorder %s14, 1
      %p74 = por %p72, %p73
      %p75 = scmp.ne.s32.totalorder %s66, %s67
      %p76 = scmp.eq.s32.totalorder %s14, 0
      %p77 = por %p75, %p76
      %p78 = scmp.ne.s32.totalorder %s66, %s67
      %p79 = scmp.eq.s32.totalorder %s15, 1
      %p80 = por %p78, %p79
      %p82 = scmp.ne.s32.totalorder %s67, %s81
      %p83 = scmp.eq.s32.totalorder %s15, 0
      %p84 = por %p82, %p83
      %s85 = ssub.s32 %s9, %s16
      %p86 = scmp.eq.s32.totalorder %s85, 0
      %s88 = sadd.s32 %s87, 1
      %s89 = scalar_select %p86, %s87, %s88
      %p92 = pneg %p86
      %p93 = scmp.eq.s32.totalorder %s9, 1
      %p94 = por %p92, %p93
      %p95 = scmp.ne.s32.totalorder %s87, %s90
      %p96 = scmp.eq.s32.totalorder %s9, 0
      %p97 = por %p95, %p96
      %p98 = scmp.ne.s32.totalorder %s87, %s90
      %p99 = scmp.eq.s32.totalorder %s14, 1
      %p100 = por %p98, %p99
      %p101 = scmp.ne.s32.totalorder %s90, %s91
      %p102 = scmp.eq.s32.totalorder %s14, 0
      %p103 = por %p101, %p102
      %p104 = scmp.ne.s32.totalorder %s90, %s91
      %p105 = scmp.eq.s32.totalorder %s15, 1
      %p106 = por %p104, %p105
      %p108 = scmp.ne.s32.totalorder %s91, %s107
      %p109 = scmp.eq.s32.totalorder %s15, 0
      %p110 = por %p108, %p109
      %p111 = scmp.le.s32.totalorder 1, %s9
      %p112 = scmp.lt.s32.totalorder %s9, 3
      %p113 = pnand %p111, %p112
      %p114 = pneg %p113
      // Predicated region
      $region9: #{produce_head_forward.2} parent=5 // pred_check
        _
      $region10: #{produce_head_forward.2} parent=5 // pred_check_branch
        %116 = sbr.rel (%p113) target = $region12
      $region11: #{produce_head_forward.2} parent=5 // pred_region
        %s117 = ssub.s32 %s9, 1
        // Predicated region
        $region13: #{produce_head_forward.2} parent=11 // pred_check
          %p118 = pneg %p56
        $region14: #{produce_head_forward.2} parent=11 // pred_check_branch
          %120 = sbr.rel (%p118) target = $region16
        $region15: #{produce_head_forward.2} parent=11 // pred_region
          _
        $region16: #{produce_head_forward.2} parent=11 // pred_fallthru
          _
        // Predicated region
        $region17: #{produce_head_forward.2} parent=11 // pred_check
          %p121 = pneg %p77
        $region18: #{produce_head_forward.2} parent=11 // pred_check_branch
          %123 = sbr.rel (%p121) target = $region20
        $region19: #{produce_head_forward.2} parent=11 // pred_region
          _
        $region20: #{produce_head_forward.2} parent=11 // pred_fallthru
          _
      $region12: #{produce_head_forward.2} parent=5 // pred_fallthru
        _
      %p124 = scmp.lt.s32.totalorder %s9, 2
      // Predicated region
      $region21: #{produce_head_forward.2} parent=5 // pred_check
        %p125 = pneg %p124
      $region22: #{produce_head_forward.2} parent=5 // pred_check_branch
        %127 = sbr.rel (%p125) target = $region24
      $region23: #{produce_head_forward.2} parent=5 // pred_region
        // Predicated region
        $region25: #{produce_head_forward.2} parent=23 // pred_check
          %p128 = pneg %p29
        $region26: #{produce_head_forward.2} parent=23 // pred_check_branch
          %130 = sbr.rel (%p128) target = $region28
        $region27: #{produce_head_forward.2} parent=23 // pred_region
          %s131 = sand.u32 %s19, 1
          %s132 = sand.u32 %s19, 1
          %s133 = smul.addr %s132, 80
          %s134 = scalar_lea.vmem [#allocation2], %s133
          %s135 = smul.u32 2, %s9
          %s136 = smul.addr %s135, 8
          %s137 = scalar_lea.vmem %s0, %s136
          // Predicated region
          $region29: #{produce_head_forward.2} parent=27 // pred_check
            _
          $region30: #{produce_head_forward.2} parent=27 // pred_check_branch
            %139 = sbr.rel (0) target = $region32
          $region31: #{produce_head_forward.2} parent=27 // pred_region
            // Predicated region
            $region33: #{produce_head_forward.2} parent=31 // pred_check
              _
            $region34: #{produce_head_forward.2} parent=31 // pred_check_branch
              %141 = sbr.rel (0) target = $region36
            $region35: #{produce_head_forward.2} parent=31 // pred_region
              loop: start=0, step=1, limit=1
              $region37: #{produce_head_forward.2} parent=35 // loop_pre_header
                _
              $region38: #{produce_head_forward.2} parent=35 // loop_header
                %s143 = sphi 0, %s147
                %p144 = scmp.ge.s32.totalorder %s143, 1
                %s148 = sphi %s137, %s137
                %s149 = sphi %s134, %s134
              $region39: #{produce_head_forward.2} parent=35 // loop_header_branch
                %146 = sbr.rel (%p144) target = $region43
              $region40: #{produce_head_forward.2} parent=35 // loop_body
                %v150 = vld [vmem:[%s148] sm:$0xff]
                %151 = vst [vmem:[%s149] sm:$0xff] %v150
                %v152 = vld [vmem:[%s148 + $0x8] sm:$0xff]
                %153 = vst [vmem:[%s149 + $0x8] sm:$0xff] %v152
                %v154 = vld [vmem:[%s148 + $0x20] sm:$0xff]
                %155 = vst [vmem:[%s149 + $0x10] sm:$0xff] %v154
                %v156 = vld [vmem:[%s148 + $0x28] sm:$0xff]
                %157 = vst [vmem:[%s149 + $0x18] sm:$0xff] %v156
                %v158 = vld [vmem:[%s148 + $0x40] sm:$0xff]
                %159 = vst [vmem:[%s149 + $0x20] sm:$0xff] %v158
                %v160 = vld [vmem:[%s148 + $0x48] sm:$0xff]
                %161 = vst [vmem:[%s149 + $0x28] sm:$0xff] %v160
                %v162 = vld [vmem:[%s148 + $0x60] sm:$0xff]
                %163 = vst [vmem:[%s149 + $0x30] sm:$0xff] %v162
                %v164 = vld [vmem:[%s148 + $0x68] sm:$0xff]
                %165 = vst [vmem:[%s149 + $0x38] sm:$0xff] %v164
                %v166 = vld [vmem:[%s148 + $0x80] sm:$0xff]
                %167 = vst [vmem:[%s149 + $0x40] sm:$0xff] %v166
                %v168 = vld [vmem:[%s148 + $0x88] sm:$0xff]
                %169 = vst [vmem:[%s149 + $0x48] sm:$0xff] %v168
              $region41: #{produce_head_forward.2} parent=35 // loop_footer
                %s147 = sadd.s32 1, %s143
              $region42: #{produce_head_forward.2} parent=35 // loop_footer_branch
                %142 = sbr.rel target = $region38
              $region43: #{produce_head_forward.2} parent=35 // loop_exit
                _
            $region36: #{produce_head_forward.2} parent=31 // pred_fallthru
              _
            // Predicated region
            $region44: #{produce_head_forward.2} parent=31 // pred_check
              _
            $region45: #{produce_head_forward.2} parent=31 // pred_check_branch
              %171 = sbr.rel target = $region47
            $region46: #{produce_head_forward.2} parent=31 // pred_region
              _
            $region47: #{produce_head_forward.2} parent=31 // pred_fallthru
              _
          $region32: #{produce_head_forward.2} parent=27 // pred_fallthru
            _
          %172 = vnop
        $region28: #{produce_head_forward.2} parent=23 // pred_fallthru
          _
      $region24: #{produce_head_forward.2} parent=5 // pred_fallthru
        _
      %p173 = scmp.le.s32.totalorder 1, %s9
      %p174 = scmp.lt.s32.totalorder %s9, 3
      %p175 = pnand %p173, %p174
      %p176 = pneg %p175
      // Predicated region
      $region48: #{produce_head_forward.2} parent=5 // pred_check
        _
      $region49: #{produce_head_forward.2} parent=5 // pred_check_branch
        %178 = sbr.rel (%p175) target = $region51
      $region50: #{produce_head_forward.2} parent=5 // pred_region
        %s179 = ssub.s32 %s9, 1
        %s180 = sand.u32 %s22, 1
        %s181 = sand.u32 %s22, 1
        %s182 = smul.addr %s181, 80
        %s183 = scalar_lea.vmem [#allocation2], %s182
        // Predicated region
        $region52: #{produce_head_forward.2} parent=50 // pred_check
          %p184 = pneg %p35
        $region53: #{produce_head_forward.2} parent=50 // pred_check_branch
          %186 = sbr.rel (%p184) target = $region55
        $region54: #{produce_head_forward.2} parent=50 // pred_region
          _
        $region55: #{produce_head_forward.2} parent=50 // pred_fallthru
          _
        %s187 = sand.u32 %s22, 1
        %s188 = sand.u32 %s22, 1
        %s189 = smul.addr %s188, 80
        %s190 = scalar_lea.vmem [#allocation2], %s189
        %p191 = pneg %p35
        %p192 = pneg %p32
        %p193 = pneg %p56
        %p194 = pneg %p53
        %p195 = pneg %p77
        %p196 = pneg %p74
        %p197 = pneg %p103
        %p198 = pneg %p100
        %s199 = sand.u32 %s90, 1
        %s200 = sand.u32 %s90, 1
        %s201 = smul.addr %s200, 96
        %s202 = scalar_lea.vmem [#allocation3], %s201
        %s203 = smul.u32 2, %s14
        %s204 = smul.u32 2, %s14
        %v205 = vld [vmem:[%s1] sm:$0xff]
        %v206 = vld [vmem:[%s1 + $0x8] sm:$0xff]
        %v207 = vld [vmem:[%s1 + $0x10] sm:$0xff]
        %v208 = vld [vmem:[%s1 + $0x18] sm:$0xff]
        %v209 = vld [vmem:[%s1 + $0x20] sm:$0xff]
        %v210 = vld [vmem:[%s1 + $0x28] sm:$0xff]
        %v211 = vld [vmem:[%s1 + $0x30] sm:$0xff]
        %v212 = vld [vmem:[%s1 + $0x38] sm:$0xff]
        %v213 = vld [vmem:[%s1 + $0x40] sm:$0xff]
        %v214 = vld [vmem:[%s1 + $0x48] sm:$0xff]
        %v215 = vld [vmem:[%s1 + $0x50] sm:$0xff]
        %v216 = vld [vmem:[%s1 + $0x58] sm:$0xff]
        %v217 = vld [vmem:[%s183] sm:$0xff]
        %v218 = vld [vmem:[%s183 + $0x8] sm:$0xff]
        %v219 = vld [vmem:[%s183 + $0x10] sm:$0xff]
        %v220 = vld [vmem:[%s183 + $0x18] sm:$0xff]
        %v221 = vld [vmem:[%s183 + $0x20] sm:$0xff]
        %v222 = vld [vmem:[%s183 + $0x28] sm:$0xff]
        %v223 = vld [vmem:[%s183 + $0x30] sm:$0xff]
        %v224 = vld [vmem:[%s183 + $0x38] sm:$0xff]
        %v225 = vld [vmem:[%s183 + $0x40] sm:$0xf]
        %v226 = vld [vmem:[%s183 + $0x48] sm:$0xf]
        %v227 = vld [vmem:[%s2] sm:$0xff]
        %v228 = vld [vmem:[%s2 + $0x8] sm:$0xff]
        %v229 = vld [vmem:[%s2 + $0x10] sm:$0xff]
        %v230 = vld [vmem:[%s2 + $0x18] sm:$0xff]
        %v231 = vld [vmem:[%s2 + $0x20] sm:$0xff]
        %v232 = vld [vmem:[%s2 + $0x28] sm:$0xff]
        %v233 = vld [vmem:[%s2 + $0x30] sm:$0xff]
        %v234 = vld [vmem:[%s2 + $0x38] sm:$0xff]
        %v235 = vld [vmem:[%s2 + $0x40] sm:$0xff]
        %v236 = vld [vmem:[%s2 + $0x48] sm:$0xff]
        %v237 = vld [vmem:[%s2 + $0x50] sm:$0xff]
        %v238 = vld [vmem:[%s2 + $0x58] sm:$0xff]
        %240 = vset.pattern.permute.xlu0 0
        %241 = vperm.xlu0 %240, %v227
        %v242 = vpop.permute.xlu0 %241
        %245 = vset.pattern.permute.xlu0 0
        %246 = vperm.xlu0 %245, %v228
        %v247 = vpop.permute.xlu0 %246
        %250 = vset.pattern.permute.xlu0 0
        %251 = vperm.xlu0 %250, %v229
        %v252 = vpop.permute.xlu0 %251
        %255 = vset.pattern.permute.xlu0 0
        %256 = vperm.xlu0 %255, %v230
        %v257 = vpop.permute.xlu0 %256
        %260 = vset.pattern.permute.xlu0 0
        %261 = vperm.xlu0 %260, %v231
        %v262 = vpop.permute.xlu0 %261
        %265 = vset.pattern.permute.xlu0 0
        %266 = vperm.xlu0 %265, %v232
        %v267 = vpop.permute.xlu0 %266
        %270 = vset.pattern.permute.xlu0 0
        %271 = vperm.xlu0 %270, %v233
        %v272 = vpop.permute.xlu0 %271
        %275 = vset.pattern.permute.xlu0 0
        %276 = vperm.xlu0 %275, %v234
        %v277 = vpop.permute.xlu0 %276
        %280 = vset.pattern.permute.xlu0 0
        %281 = vperm.xlu0 %280, %v235
        %v282 = vpop.permute.xlu0 %281
        %285 = vset.pattern.permute.xlu0 0
        %286 = vperm.xlu0 %285, %v236
        %v287 = vpop.permute.xlu0 %286
        %290 = vset.pattern.permute.xlu0 0
        %291 = vperm.xlu0 %290, %v237
        %v292 = vpop.permute.xlu0 %291
        %295 = vset.pattern.permute.xlu0 0
        %296 = vperm.xlu0 %295, %v238
        %v297 = vpop.permute.xlu0 %296
        %vm299 = vcmask 293888
        %v301 = vsel %vm299, %v205, 0
        %v304 = vsel %vm299, %v206, 0
        %v307 = vsel %vm299, %v207, 0
        %v310 = vsel %vm299, %v208, 0
        %v313 = vsel %vm299, %v209, 0
        %v316 = vsel %vm299, %v210, 0
        %v319 = vsel %vm299, %v211, 0
        %v322 = vsel %vm299, %v212, 0
        %v325 = vsel %vm299, %v213, 0
        %v328 = vsel %vm299, %v214, 0
        %v331 = vsel %vm299, %v215, 0
        %v334 = vsel %vm299, %v216, 0
        %vm336 = vcmask 1043456
        %v338 = vsel %vm336, %v225, 0
        %v341 = vsel %vm336, %v226, 0
        %343 = vmatprep.subr.mxu0 %v218
        %344 = vmatpush1.msra.mxu0 %v217
        %345 = vmatprep.subr.mxu0 %v220
        %346 = vmatpush1.msra.mxu0 %v219
        %347 = vmatprep.subr.mxu0 %v222
        %348 = vmatpush1.msra.mxu0 %v221
        %349 = vmatprep.subr.mxu0 %v224
        %350 = vmatpush1.msra.mxu0 %v223
        %351 = vmatprep.subr.mxu0 %v341
        %352 = vmatpush1.msra.mxu0 %v338
        %353 = vmatprep.subr.mxu0 0.0
        %354 = vmatpush1.msra.mxu0 0.0
        %355 = vmatprep.subr.mxu0 0.0
        %356 = vmatpush1.msra.mxu0 0.0
        %357 = vmatprep.subr.mxu0 0.0
        %358 = vmatpush1.msra.mxu0 0.0
        %359 = vmatprep.subr.mxu0 0.0
        %360 = vmatpush1.msra.mxu0 0.0
        %361 = vmatprep.subr.mxu0 0.0
        %362 = vmatpush1.msra.mxu0 0.0
        %363 = vmatprep.subr.mxu0 0.0
        %364 = vmatpush1.msra.mxu0 0.0
        %365 = vmatprep.subr.mxu0 0.0
        %366 = vmatpush1.msra.mxu0 0.0
        %367 = vmatprep.subr.mxu0 0.0
        %368 = vmatpush1.msra.mxu0 0.0
        %369 = vmatprep.subr.mxu0 0.0
        %370 = vmatpush1.msra.mxu0 0.0
        %371 = vmatprep.subr.mxu0 0.0
        %372 = vmatpush1.msra.mxu0 0.0
        %373 = vmatprep.subr.mxu0 0.0
        %374 = vmatpush1.msra.mxu0 0.0
        %375 = vmatprep.subr.mxu0 0.0
        %376 = vmatpush1.msra.mxu0 0.0
        %377 = vmatprep.subr.mxu0 0.0
        %378 = vmatpush1.msra.mxu0 0.0
        %379 = vmatprep.subr.mxu0 0.0
        %380 = vmatpush1.msra.mxu0 0.0
        %381 = vmatprep.subr.mxu0 0.0
        %382 = vmatpush1.msra.mxu0 0.0
        %383 = vmatprep.subr.mxu0 0.0
        %384 = vmatpush1.msra.mxu0 0.0
        %385 = vmatprep.subr.mxu0 0.0
        %386 = vmatpush1.msra.mxu0 0.0
        %387 = vmatprep.subr.mxu0 0.0
        %388 = vmatpush1.msra.mxu0 0.0
        %389 = vmatprep.subr.mxu0 0.0
        %390 = vmatpush1.msra.mxu0 0.0
        %391 = vmatprep.subr.mxu0 0.0
        %392 = vmatpush1.msra.mxu0 0.0
        %393 = vmatprep.subr.mxu0 0.0
        %394 = vmatpush1.msra.mxu0 0.0
        %395 = vmatprep.subr.mxu0 0.0
        %396 = vmatpush1.msra.mxu0 0.0
        %397 = vmatprep.subr.mxu0 0.0
        %398 = vmatpush1.msra.mxu0 0.0
        %399 = vmatprep.subr.mxu0 0.0
        %400 = vmatpush1.msra.mxu0 0.0
        %401 = vmatprep.subr.mxu0 0.0
        %402 = vmatpush1.msra.mxu0 0.0
        %403 = vmatprep.subr.mxu0 0.0
        %404 = vmatpush1.msra.mxu0 0.0
        %405 = vmatprep.subr.mxu0 0.0
        %406 = vmatpush1.msra.mxu0 0.0
        %407 = vmatprep.mubr.f32.mxu0 0.0
        %408 = vmatmul.mubr.f32.gmra.mrb[0].mxu0 %v301
        %v409 = vpop.f32.mrb[0].mxu0
        %v410 = vadd.f32 %v242, %v409
        %v411 = vpop.f32.mrb[0].mxu0
        %v412 = vadd.f32 %v242, %v411
        %413 = vmatprep.mubr.f32.mxu0 0.0
        %414 = vmatmul.mubr.f32.gmra.mrb[0].mxu0 %v304
        %v415 = vpop.f32.mrb[0].mxu0
        %v416 = vadd.f32 %v247, %v415
        %v417 = vpop.f32.mrb[0].mxu0
        %v418 = vadd.f32 %v247, %v417
        %419 = vmatprep.mubr.f32.mxu0 0.0
        %420 = vmatmul.mubr.f32.gmra.mrb[0].mxu0 %v307
        %v421 = vpop.f32.mrb[0].mxu0
        %v422 = vadd.f32 %v252, %v421
        %v423 = vpop.f32.mrb[0].mxu0
        %v424 = vadd.f32 %v252, %v423
        %425 = vmatprep.mubr.f32.mxu0 0.0
        %426 = vmatmul.mubr.f32.gmra.mrb[0].mxu0 %v310
        %v427 = vpop.f32.mrb[0].mxu0
        %v428 = vadd.f32 %v257, %v427
        %v429 = vpop.f32.mrb[0].mxu0
        %v430 = vadd.f32 %v257, %v429
        %431 = vmatprep.mubr.f32.mxu0 0.0
        %432 = vmatmul.mubr.f32.gmra.mrb[0].mxu0 %v313
        %v433 = vpop.f32.mrb[0].mxu0
        %v434 = vadd.f32 %v262, %v433
        %v435 = vpop.f32.mrb[0].mxu0
        %v436 = vadd.f32 %v262, %v435
        %437 = vmatprep.mubr.f32.mxu0 0.0
        %438 = vmatmul.mubr.f32.gmra.mrb[0].mxu0 %v316
        %v439 = vpop.f32.mrb[0].mxu0
        %v440 = vadd.f32 %v267, %v439
        %v441 = vpop.f32.mrb[0].mxu0
        %v442 = vadd.f32 %v267, %v441
        %443 = vmatprep.mubr.f32.mxu0 0.0
        %444 = vmatmul.mubr.f32.gmra.mrb[0].mxu0 %v319
        %v445 = vpop.f32.mrb[0].mxu0
        %v446 = vadd.f32 %v272, %v445
        %v447 = vpop.f32.mrb[0].mxu0
        %v448 = vadd.f32 %v272, %v447
        %449 = vmatprep.mubr.f32.mxu0 0.0
        %450 = vmatmul.mubr.f32.gmra.mrb[0].mxu0 %v322
        %v451 = vpop.f32.mrb[0].mxu0
        %v452 = vadd.f32 %v277, %v451
        %v453 = vpop.f32.mrb[0].mxu0
        %v454 = vadd.f32 %v277, %v453
        %455 = vmatprep.mubr.f32.mxu0 0.0
        %456 = vmatmul.mubr.f32.gmra.mrb[0].mxu0 %v325
        %v457 = vpop.f32.mrb[0].mxu0
        %v458 = vadd.f32 %v282, %v457
        %v459 = vpop.f32.mrb[0].mxu0
        %v460 = vadd.f32 %v282, %v459
        %461 = vmatprep.mubr.f32.mxu0 0.0
        %462 = vmatmul.mubr.f32.gmra.mrb[0].mxu0 %v328
        %v463 = vpop.f32.mrb[0].mxu0
        %v464 = vadd.f32 %v287, %v463
        %v465 = vpop.f32.mrb[0].mxu0
        %v466 = vadd.f32 %v287, %v465
        %467 = vmatprep.mubr.f32.mxu0 0.0
        %468 = vmatmul.mubr.f32.gmra.mrb[0].mxu0 %v331
        %v469 = vpop.f32.mrb[0].mxu0
        %v470 = vadd.f32 %v292, %v469
        %v471 = vpop.f32.mrb[0].mxu0
        %v472 = vadd.f32 %v292, %v471
        %473 = vmatprep.mubr.f32.mxu0 0.0
        %474 = vmatmul.mubr.f32.gmra.mrb[0].mxu0 %v334
        %v475 = vpop.f32.mrb[0].mxu0
        %v476 = vadd.f32 %v297, %v475
        %v477 = vpop.f32.mrb[0].mxu0
        %v478 = vadd.f32 %v297, %v477
        %479 = vdwg.mxu0
        %v480 = vmax.f32 %v410, 0.0
        %v481 = vmax.f32 %v412, 0.0
        %v482 = vmax.f32 %v416, 0.0
        %v483 = vmax.f32 %v418, 0.0
        %v484 = vmax.f32 %v422, 0.0
        %v485 = vmax.f32 %v424, 0.0
        %v486 = vmax.f32 %v428, 0.0
        %v487 = vmax.f32 %v430, 0.0
        %v488 = vmax.f32 %v434, 0.0
        %v489 = vmax.f32 %v436, 0.0
        %v490 = vmax.f32 %v440, 0.0
        %v491 = vmax.f32 %v442, 0.0
        %v492 = vmax.f32 %v446, 0.0
        %v493 = vmax.f32 %v448, 0.0
        %v494 = vmax.f32 %v452, 0.0
        %v495 = vmax.f32 %v454, 0.0
        %v496 = vmax.f32 %v458, 0.0
        %v497 = vmax.f32 %v460, 0.0
        %v498 = vmax.f32 %v464, 0.0
        %v499 = vmax.f32 %v466, 0.0
        %v500 = vmax.f32 %v470, 0.0
        %v501 = vmax.f32 %v472, 0.0
        %v502 = vmax.f32 %v476, 0.0
        %v503 = vmax.f32 %v478, 0.0
        %v504 = vpack.c.bf16 %v482, %v480
        %v505 = vpack.c.bf16 %v483, %v481
        %v506 = vpack.c.bf16 %v486, %v484
        %v507 = vpack.c.bf16 %v487, %v485
        %v508 = vpack.c.bf16 %v490, %v488
        %v509 = vpack.c.bf16 %v491, %v489
        %v510 = vpack.c.bf16 %v494, %v492
        %v511 = vpack.c.bf16 %v495, %v493
        %v512 = vpack.c.bf16 %v498, %v496
        %v513 = vpack.c.bf16 %v499, %v497
        %v514 = vpack.c.bf16 %v502, %v500
        %v515 = vpack.c.bf16 %v503, %v501
        %v528 = vunpack.c.l.b16 %v504
        %v529 = vunpack.c.l.b16 %v505
        %v530 = vunpack.c.h.b16 %v504
        %v531 = vunpack.c.h.b16 %v505
        %v532 = vunpack.c.l.b16 %v506
        %v533 = vunpack.c.l.b16 %v507
        %v534 = vunpack.c.h.b16 %v506
        %v535 = vunpack.c.h.b16 %v507
        %v536 = vunpack.c.l.b16 %v508
        %v537 = vunpack.c.l.b16 %v509
        %v538 = vunpack.c.h.b16 %v508
        %v539 = vunpack.c.h.b16 %v509
        %v540 = vunpack.c.l.b16 %v510
        %v541 = vunpack.c.l.b16 %v511
        %v542 = vunpack.c.h.b16 %v510
        %v543 = vunpack.c.h.b16 %v511
        %v544 = vunpack.c.l.b16 %v512
        %v545 = vunpack.c.l.b16 %v513
        %v546 = vunpack.c.h.b16 %v512
        %v547 = vunpack.c.h.b16 %v513
        %v548 = vunpack.c.l.b16 %v514
        %v549 = vunpack.c.l.b16 %v515
        %v550 = vunpack.c.h.b16 %v514
        %v551 = vunpack.c.h.b16 %v515
        %v552 = vpack.c.b16 %v529, %v528
        %v553 = vpack.c.b16 %v531, %v530
        %v554 = vpack.c.b16 %v533, %v532
        %v555 = vpack.c.b16 %v535, %v534
        %v556 = vpack.c.b16 %v537, %v536
        %v557 = vpack.c.b16 %v539, %v538
        %v558 = vpack.c.b16 %v541, %v540
        %v559 = vpack.c.b16 %v543, %v542
        %v560 = vpack.c.b16 %v545, %v544
        %v561 = vpack.c.b16 %v547, %v546
        %v562 = vpack.c.b16 %v549, %v548
        %v563 = vpack.c.b16 %v551, %v550
        %576 = vst [vmem:[%s202] sm:$0xff] %v552
        %577 = vst [vmem:[%s202 + $0x8] sm:$0xff] %v553
        %578 = vst [vmem:[%s202 + $0x10] sm:$0xff] %v554
        %579 = vst [vmem:[%s202 + $0x18] sm:$0xff] %v555
        %580 = vst [vmem:[%s202 + $0x20] sm:$0xff] %v556
        %581 = vst [vmem:[%s202 + $0x28] sm:$0xff] %v557
        %582 = vst [vmem:[%s202 + $0x30] sm:$0xff] %v558
        %583 = vst [vmem:[%s202 + $0x38] sm:$0xff] %v559
        %584 = vst [vmem:[%s202 + $0x40] sm:$0xff] %v560
        %585 = vst [vmem:[%s202 + $0x48] sm:$0xff] %v561
        %586 = vst [vmem:[%s202 + $0x50] sm:$0xff] %v562
        %587 = vst [vmem:[%s202 + $0x58] sm:$0xff] %v563
        %s588 = sand.u32 %s90, 1
        %s589 = sand.u32 %s90, 1
        %s590 = smul.addr %s589, 96
        %s591 = scalar_lea.vmem [#allocation3], %s590
        // Predicated region
        $region56: #{produce_head_forward.2} parent=50 // pred_check
          %p592 = pneg %p100
        $region57: #{produce_head_forward.2} parent=50 // pred_check_branch
          %594 = sbr.rel (%p592) target = $region59
        $region58: #{produce_head_forward.2} parent=50 // pred_region
          %s595 = smul.u32 2, %s14
          %s596 = smul.addr %s595, 4
          %s597 = scalar_lea.vmem %s3, %s596
          // Predicated region
          $region60: #{produce_head_forward.2} parent=58 // pred_check
            _
          $region61: #{produce_head_forward.2} parent=58 // pred_check_branch
            %599 = sbr.rel (0) target = $region63
          $region62: #{produce_head_forward.2} parent=58 // pred_region
            // Predicated region
            $region64: #{produce_head_forward.2} parent=62 // pred_check
              _
            $region65: #{produce_head_forward.2} parent=62 // pred_check_branch
              %601 = sbr.rel (0) target = $region67
            $region66: #{produce_head_forward.2} parent=62 // pred_region
              // Predicated region
              $region79: #{produce_head_forward.2} parent=66 // pred_check
                _
              $region80: #{produce_head_forward.2} parent=66 // pred_check_branch
                %638 = sbr.rel (0) target = $region82
              $region81: #{produce_head_forward.2} parent=66 // pred_region
                loop: start=0, step=1, limit=1
                $region83: #{produce_head_forward.2} parent=81 // loop_pre_header
                  _
                $region84: #{produce_head_forward.2} parent=81 // loop_header
                  %s640 = sphi 0, %s644
                  %p641 = scmp.ge.s32.totalorder %s640, 1
                  %s645 = sphi %s591, %s591
                  %s646 = sphi %s597, %s597
                $region85: #{produce_head_forward.2} parent=81 // loop_header_branch
                  %643 = sbr.rel (%p641) target = $region89
                $region86: #{produce_head_forward.2} parent=81 // loop_body
                  %v647 = vld [vmem:[%s645] sm:$0xff]
                  %648 = vst [vmem:[%s646] sm:$0xff] %v647
                  %v649 = vld [vmem:[%s645 + $0x8] sm:$0xff]
                  %650 = vst [vmem:[%s646 + $0x10] sm:$0xff] %v649
                  %v651 = vld [vmem:[%s645 + $0x10] sm:$0xff]
                  %652 = vst [vmem:[%s646 + $0x20] sm:$0xff] %v651
                  %v653 = vld [vmem:[%s645 + $0x18] sm:$0xff]
                  %654 = vst [vmem:[%s646 + $0x30] sm:$0xff] %v653
                  %v655 = vld [vmem:[%s645 + $0x20] sm:$0xff]
                  %656 = vst [vmem:[%s646 + $0x40] sm:$0xff] %v655
                  %v657 = vld [vmem:[%s645 + $0x28] sm:$0xff]
                  %658 = vst [vmem:[%s646 + $0x50] sm:$0xff] %v657
                  %v659 = vld [vmem:[%s645 + $0x30] sm:$0xff]
                  %660 = vst [vmem:[%s646 + $0x60] sm:$0xff] %v659
                  %v661 = vld [vmem:[%s645 + $0x38] sm:$0xff]
                  %662 = vst [vmem:[%s646 + $0x70] sm:$0xff] %v661
                  %v663 = vld [vmem:[%s645 + $0x40] sm:$0xff]
                  %664 = vst [vmem:[%s646 + $0x80] sm:$0xff] %v663
                  %v665 = vld [vmem:[%s645 + $0x48] sm:$0xff]
                  %666 = vst [vmem:[%s646 + $0x90] sm:$0xff] %v665
                  %v667 = vld [vmem:[%s645 + $0x50] sm:$0xff]
                  %668 = vst [vmem:[%s646 + $0xa0] sm:$0xff] %v667
                  %v669 = vld [vmem:[%s645 + $0x58] sm:$0xff]
                  %670 = vst [vmem:[%s646 + $0xb0] sm:$0xff] %v669
                $region87: #{produce_head_forward.2} parent=81 // loop_footer
                  %s644 = sadd.s32 1, %s640
                $region88: #{produce_head_forward.2} parent=81 // loop_footer_branch
                  %639 = sbr.rel target = $region84
                $region89: #{produce_head_forward.2} parent=81 // loop_exit
                  _
              $region82: #{produce_head_forward.2} parent=66 // pred_fallthru
                _
              // Predicated region
              $region90: #{produce_head_forward.2} parent=66 // pred_check
                _
              $region91: #{produce_head_forward.2} parent=66 // pred_check_branch
                %672 = sbr.rel target = $region93
              $region92: #{produce_head_forward.2} parent=66 // pred_region
                _
              $region93: #{produce_head_forward.2} parent=66 // pred_fallthru
                _
            $region67: #{produce_head_forward.2} parent=62 // pred_fallthru
              _
            // Predicated region
            $region68: #{produce_head_forward.2} parent=62 // pred_check
              _
            $region69: #{produce_head_forward.2} parent=62 // pred_check_branch
              %603 = sbr.rel target = $region71
            $region70: #{produce_head_forward.2} parent=62 // pred_region
              loop: start=0, step=1, limit=1
              $region72: #{produce_head_forward.2} parent=70 // loop_pre_header
                _
              $region73: #{produce_head_forward.2} parent=70 // loop_header
                %s606 = sphi 0, %s610
                %p607 = scmp.ge.s32.totalorder %s606, 1
                %s611 = sphi %s591, %s591
                %s612 = sphi %s597, %s597
              $region74: #{produce_head_forward.2} parent=70 // loop_header_branch
                %609 = sbr.rel (%p607) target = $region78
              $region75: #{produce_head_forward.2} parent=70 // loop_body
                %v613 = vld [vmem:[%s611] sm:$0xff]
                %614 = vst [vmem:[%s612] sm:$0xff] %v613
                %v615 = vld [vmem:[%s611 + $0x8] sm:$0xff]
                %616 = vst [vmem:[%s612 + $0x10] sm:$0xff] %v615
                %v617 = vld [vmem:[%s611 + $0x10] sm:$0xff]
                %618 = vst [vmem:[%s612 + $0x20] sm:$0xff] %v617
                %v619 = vld [vmem:[%s611 + $0x18] sm:$0xff]
                %620 = vst [vmem:[%s612 + $0x30] sm:$0xff] %v619
                %v621 = vld [vmem:[%s611 + $0x20] sm:$0xff]
                %622 = vst [vmem:[%s612 + $0x40] sm:$0xff] %v621
                %v623 = vld [vmem:[%s611 + $0x28] sm:$0xff]
                %624 = vst [vmem:[%s612 + $0x50] sm:$0xff] %v623
                %v625 = vld [vmem:[%s611 + $0x30] sm:$0xff]
                %626 = vst [vmem:[%s612 + $0x60] sm:$0xff] %v625
                %v627 = vld [vmem:[%s611 + $0x38] sm:$0xff]
                %628 = vst [vmem:[%s612 + $0x70] sm:$0xff] %v627
                %v629 = vld [vmem:[%s611 + $0x40] sm:$0xff]
                %630 = vst [vmem:[%s612 + $0x80] sm:$0xff] %v629
                %v631 = vld [vmem:[%s611 + $0x48] sm:$0xff]
                %632 = vst [vmem:[%s612 + $0x90] sm:$0xff] %v631
                %v633 = vld [vmem:[%s611 + $0x50] sm:$0xff]
                %634 = vst [vmem:[%s612 + $0xa0] sm:$0xff] %v633
                %v635 = vld [vmem:[%s611 + $0x58] sm:$0xff]
                %636 = vst [vmem:[%s612 + $0xb0] sm:$0xff] %v635
              $region76: #{produce_head_forward.2} parent=70 // loop_footer
                %s610 = sadd.s32 1, %s606
              $region77: #{produce_head_forward.2} parent=70 // loop_footer_branch
                %605 = sbr.rel target = $region73
              $region78: #{produce_head_forward.2} parent=70 // loop_exit
                _
            $region71: #{produce_head_forward.2} parent=62 // pred_fallthru
              _
          $region63: #{produce_head_forward.2} parent=58 // pred_fallthru
            _
          %673 = vnop
        $region59: #{produce_head_forward.2} parent=50 // pred_fallthru
          _
      $region51: #{produce_head_forward.2} parent=5 // pred_fallthru
        _
      %p674 = scmp.le.s32.totalorder 2, %s9
      // Predicated region
      $region94: #{produce_head_forward.2} parent=5 // pred_check
        %p675 = pneg %p674
      $region95: #{produce_head_forward.2} parent=5 // pred_check_branch
        %677 = sbr.rel (%p675) target = $region97
      $region96: #{produce_head_forward.2} parent=5 // pred_region
        %s678 = ssub.s32 %s9, 2
        // Predicated region
        $region98: #{produce_head_forward.2} parent=96 // pred_check
          %p679 = pneg %p106
        $region99: #{produce_head_forward.2} parent=96 // pred_check_branch
          %681 = sbr.rel (%p679) target = $region101
        $region100: #{produce_head_forward.2} parent=96 // pred_region
          %s682 = sand.u32 %s91, 1
          %s683 = sand.u32 %s91, 1
          %s684 = smul.addr %s683, 96
          %s685 = scalar_lea.vmem [#allocation3], %s684
        $region101: #{produce_head_forward.2} parent=96 // pred_fallthru
          _
      $region97: #{produce_head_forward.2} parent=5 // pred_fallthru
        _
    $region6: #{produce_head_forward.2} parent=1 // loop_footer
      %s13 = sadd.s32 1, %s9
    $region7: #{produce_head_forward.2} parent=1 // loop_footer_branch
      %8 = sbr.rel target = $region3
    $region8: #{produce_head_forward.2} parent=1 // loop_exit
      _

// kernel: produce_head_forward.3
$region0: #{produce_head_forward.3}
  #allocation0 [shape = 'u32[]', space=smem, size = 0x4, offset = 0x4, fixed_abs, tag = 'smem constant byte address 0x4 - core index']
  #allocation1 [shape = 'u32[144,128]{1,0:T(1,128)}', space=vmem, size = 0x12000, scoped, tag = 'internal scratch']
  %s0 = inlined_call_operand.vmem [shape: bf16[3,288,512], index: 0, kind: input, shape index: {}]
  %s1 = inlined_call_operand.vmem [shape: bf16[3,64,288], index: 1, kind: input, shape index: {}]
  %s2 = inlined_call_operand.vmem [shape: f32[3,64,1], index: 2, kind: input, shape index: {}]
  %s3 = inlined_call_operand.vmem [shape: f32[3,16,64], index: 3, kind: input, shape index: {}]
  %s4 = inlined_call_operand.vmem [shape: f32[16,1], index: 4, kind: input, shape index: {}]
  %s5 = inlined_call_operand.vmem [shape: f32[16,512], index: 5, kind: output, shape index: {}]
  %s6 = sld [smem:[#allocation0]]
  $region110: #{produce_head_forward.3} parent=0
    _
  %s8 = ssub.s32 1, %s6
  %s9 = scalar_select 0, %s8, %s6
  $region1: #{produce_head_forward.3} parent=0
    #allocation2 [shape = 'u8[884736]{0}', space=vmem, size = 0xd8000, scoped, tag = 'input window, operand 0']
    #allocation3 [shape = 'u8[32768]{0}', space=vmem, size = 0x8000, scoped, tag = 'output window, operand 0']
    loop: start=0, step=1, limit=4
    $region2: #{produce_head_forward.3} parent=1 // loop_pre_header
      _
    $region3: #{produce_head_forward.3} parent=1 // loop_header
      %s11 = sphi 0, %s15
      %p12 = scmp.ge.s32.totalorder %s11, 4
      %s21 = sphi 0, %s23
      %s24 = sphi 0, %s21
      %s25 = sphi 0, %s24
      %s41 = sphi 0, %s25
      %s45 = sphi 0, %s45
      %s47 = sphi 0, %s45
      %s48 = sphi 0, %s47
      %s62 = sphi 0, %s48
      %s66 = sphi 0, %s66
      %s68 = sphi 0, %s66
      %s69 = sphi 0, %s68
      %s83 = sphi 0, %s69
      %s87 = sphi 0, %s87
      %s89 = sphi 0, %s87
      %s90 = sphi 0, %s89
      %s104 = sphi 0, %s90
      %s108 = sphi 0, %s108
      %s110 = sphi 0, %s108
      %s111 = sphi 0, %s110
      %s125 = sphi 0, %s111
      %s131 = sphi 0, %s133
      %s134 = sphi 0, %s131
      %s135 = sphi 0, %s134
      %s151 = sphi 0, %s135
    $region4: #{produce_head_forward.3} parent=1 // loop_header_branch
      %14 = sbr.rel (%p12) target = $region8
    $region5: #{produce_head_forward.3} parent=1 // loop_body
      %s16 = ssub.s32 %s11, 1
      %s17 = ssub.s32 %s11, 2
      %s18 = sadd.s32 %s11, 1
      %s19 = ssub.s32 %s11, %s18
      %p20 = scmp.eq.s32.totalorder %s19, 0
      %s22 = sadd.s32 %s21, 1
      %s23 = scalar_select %p20, %s21, %s22
      %p26 = pneg %p20
      %p27 = scmp.eq.s32.totalorder %s11, 1
      %p28 = por %p26, %p27
      %p29 = scmp.ne.s32.totalorder %s21, %s24
      %p30 = scmp.eq.s32.totalorder %s11, 0
      %p31 = por %p29, %p30
      %p32 = scmp.ne.s32.totalorder %s21, %s24
      %p33 = scmp.eq.s32.totalorder %s16, 1
      %p34 = por %p32, %p33
      %p35 = scmp.ne.s32.totalorder %s24, %s25
      %p36 = scmp.eq.s32.totalorder %s16, 0
      %p37 = por %p35, %p36
      %p38 = scmp.ne.s32.totalorder %s24, %s25
      %p39 = scmp.eq.s32.totalorder %s17, 1
      %p40 = por %p38, %p39
      %p42 = scmp.ne.s32.totalorder %s25, %s41
      %p43 = scmp.eq.s32.totalorder %s17, 0
      %p44 = por %p42, %p43
      %s46 = sadd.s32 %s45, 1
      %p49 = scmp.eq.s32.totalorder %s11, 1
      %p50 = scmp.ne.s32.totalorder %s45, %s47
      %p51 = scmp.eq.s32.totalorder %s11, 0
      %p52 = por %p50, %p51
      %p53 = scmp.ne.s32.totalorder %s45, %s47
      %p54 = scmp.eq.s32.totalorder %s16, 1
      %p55 = por %p53, %p54
      %p56 = scmp.ne.s32.totalorder %s47, %s48
      %p57 = scmp.eq.s32.totalorder %s16, 0
      %p58 = por %p56, %p57
      %p59 = scmp.ne.s32.totalorder %s47, %s48
      %p60 = scmp.eq.s32.totalorder %s17, 1
      %p61 = por %p59, %p60
      %p63 = scmp.ne.s32.totalorder %s48, %s62
      %p64 = scmp.eq.s32.totalorder %s17, 0
      %p65 = por %p63, %p64
      %s67 = sadd.s32 %s66, 1
      %p70 = scmp.eq.s32.totalorder %s11, 1
      %p71 = scmp.ne.s32.totalorder %s66, %s68
      %p72 = scmp.eq.s32.totalorder %s11, 0
      %p73 = por %p71, %p72
      %p74 = scmp.ne.s32.totalorder %s66, %s68
      %p75 = scmp.eq.s32.totalorder %s16, 1
      %p76 = por %p74, %p75
      %p77 = scmp.ne.s32.totalorder %s68, %s69
      %p78 = scmp.eq.s32.totalorder %s16, 0
      %p79 = por %p77, %p78
      %p80 = scmp.ne.s32.totalorder %s68, %s69
      %p81 = scmp.eq.s32.totalorder %s17, 1
      %p82 = por %p80, %p81
      %p84 = scmp.ne.s32.totalorder %s69, %s83
      %p85 = scmp.eq.s32.totalorder %s17, 0
      %p86 = por %p84, %p85
      %s88 = sadd.s32 %s87, 1
      %p91 = scmp.eq.s32.totalorder %s11, 1
      %p92 = scmp.ne.s32.totalorder %s87, %s89
      %p93 = scmp.eq.s32.totalorder %s11, 0
      %p94 = por %p92, %p93
      %p95 = scmp.ne.s32.totalorder %s87, %s89
      %p96 = scmp.eq.s32.totalorder %s16, 1
      %p97 = por %p95, %p96
      %p98 = scmp.ne.s32.totalorder %s89, %s90
      %p99 = scmp.eq.s32.totalorder %s16, 0
      %p100 = por %p98, %p99
      %p101 = scmp.ne.s32.totalorder %s89, %s90
      %p102 = scmp.eq.s32.totalorder %s17, 1
      %p103 = por %p101, %p102
      %p105 = scmp.ne.s32.totalorder %s90, %s104
      %p106 = scmp.eq.s32.totalorder %s17, 0
      %p107 = por %p105, %p106
      %s109 = sadd.s32 %s108, 1
      %p112 = scmp.eq.s32.totalorder %s11, 1
      %p113 = scmp.ne.s32.totalorder %s108, %s110
      %p114 = scmp.eq.s32.totalorder %s11, 0
      %p115 = por %p113, %p114
      %p116 = scmp.ne.s32.totalorder %s108, %s110
      %p117 = scmp.eq.s32.totalorder %s16, 1
      %p118 = por %p116, %p117
      %p119 = scmp.ne.s32.totalorder %s110, %s111
      %p120 = scmp.eq.s32.totalorder %s16, 0
      %p121 = por %p119, %p120
      %p122 = scmp.ne.s32.totalorder %s110, %s111
      %p123 = scmp.eq.s32.totalorder %s17, 1
      %p124 = por %p122, %p123
      %p126 = scmp.ne.s32.totalorder %s111, %s125
      %p127 = scmp.eq.s32.totalorder %s17, 0
      %p128 = por %p126, %p127
      %s129 = ssub.s32 %s11, %s18
      %p130 = scmp.eq.s32.totalorder %s129, 0
      %s132 = sadd.s32 %s131, 1
      %s133 = scalar_select %p130, %s131, %s132
      %p136 = pneg %p130
      %p137 = scmp.eq.s32.totalorder %s11, 1
      %p138 = por %p136, %p137
      %p139 = scmp.ne.s32.totalorder %s131, %s134
      %p140 = scmp.eq.s32.totalorder %s11, 0
      %p141 = por %p139, %p140
      %p142 = scmp.ne.s32.totalorder %s131, %s134
      %p143 = scmp.eq.s32.totalorder %s16, 1
      %p144 = por %p142, %p143
      %p145 = scmp.ne.s32.totalorder %s134, %s135
      %p146 = scmp.eq.s32.totalorder %s16, 0
      %p147 = por %p145, %p146
      %p148 = scmp.ne.s32.totalorder %s134, %s135
      %p149 = scmp.eq.s32.totalorder %s17, 1
      %p150 = por %p148, %p149
      %p152 = scmp.ne.s32.totalorder %s135, %s151
      %p153 = scmp.eq.s32.totalorder %s17, 0
      %p154 = por %p152, %p153
      %p155 = scmp.le.s32.totalorder 1, %s11
      %p156 = scmp.lt.s32.totalorder %s11, 3
      %p157 = pnand %p155, %p156
      %p158 = pneg %p157
      // Predicated region
      $region9: #{produce_head_forward.3} parent=5 // pred_check
        _
      $region10: #{produce_head_forward.3} parent=5 // pred_check_branch
        %160 = sbr.rel (%p157) target = $region12
      $region11: #{produce_head_forward.3} parent=5 // pred_region
        %s161 = ssub.s32 %s11, 1
        // Predicated region
        $region13: #{produce_head_forward.3} parent=11 // pred_check
          %p162 = pneg %p58
        $region14: #{produce_head_forward.3} parent=11 // pred_check_branch
          %164 = sbr.rel (%p162) target = $region16
        $region15: #{produce_head_forward.3} parent=11 // pred_region
          _
        $region16: #{produce_head_forward.3} parent=11 // pred_fallthru
          _
        // Predicated region
        $region17: #{produce_head_forward.3} parent=11 // pred_check
          %p165 = pneg %p79
        $region18: #{produce_head_forward.3} parent=11 // pred_check_branch
          %167 = sbr.rel (%p165) target = $region20
        $region19: #{produce_head_forward.3} parent=11 // pred_region
          _
        $region20: #{produce_head_forward.3} parent=11 // pred_fallthru
          _
        // Predicated region
        $region21: #{produce_head_forward.3} parent=11 // pred_check
          %p168 = pneg %p100
        $region22: #{produce_head_forward.3} parent=11 // pred_check_branch
          %170 = sbr.rel (%p168) target = $region24
        $region23: #{produce_head_forward.3} parent=11 // pred_region
          _
        $region24: #{produce_head_forward.3} parent=11 // pred_fallthru
          _
        // Predicated region
        $region25: #{produce_head_forward.3} parent=11 // pred_check
          %p171 = pneg %p121
        $region26: #{produce_head_forward.3} parent=11 // pred_check_branch
          %173 = sbr.rel (%p171) target = $region28
        $region27: #{produce_head_forward.3} parent=11 // pred_region
          _
        $region28: #{produce_head_forward.3} parent=11 // pred_fallthru
          _
      $region12: #{produce_head_forward.3} parent=5 // pred_fallthru
        _
      %p174 = scmp.lt.s32.totalorder %s11, 2
      // Predicated region
      $region29: #{produce_head_forward.3} parent=5 // pred_check
        %p175 = pneg %p174
      $region30: #{produce_head_forward.3} parent=5 // pred_check_branch
        %177 = sbr.rel (%p175) target = $region32
      $region31: #{produce_head_forward.3} parent=5 // pred_region
        // Predicated region
        $region33: #{produce_head_forward.3} parent=31 // pred_check
          %p178 = pneg %p31
        $region34: #{produce_head_forward.3} parent=31 // pred_check_branch
          %180 = sbr.rel (%p178) target = $region36
        $region35: #{produce_head_forward.3} parent=31 // pred_region
          %s181 = sand.u32 %s21, 1
          %s182 = sand.u32 %s21, 1
          %s183 = smul.addr %s182, 864
          %s184 = scalar_lea.vmem [#allocation2], %s183
          %s185 = smul.u32 2, %s11
          %s186 = smul.addr %s185, 4
          %s187 = scalar_lea.vmem %s0, %s186
          // Predicated region
          $region37: #{produce_head_forward.3} parent=35 // pred_check
            _
          $region38: #{produce_head_forward.3} parent=35 // pred_check_branch
            %189 = sbr.rel (0) target = $region40
          $region39: #{produce_head_forward.3} parent=35 // pred_region
            // Predicated region
            $region41: #{produce_head_forward.3} parent=39 // pred_check
              _
            $region42: #{produce_head_forward.3} parent=39 // pred_check_branch
              %191 = sbr.rel (0) target = $region44
            $region43: #{produce_head_forward.3} parent=39 // pred_region
              // Predicated region
              $region56: #{produce_head_forward.3} parent=43 // pred_check
                _
              $region57: #{produce_head_forward.3} parent=43 // pred_check_branch
                %420 = sbr.rel (0) target = $region59
              $region58: #{produce_head_forward.3} parent=43 // pred_region
                loop: start=0, step=1, limit=1
                $region60: #{produce_head_forward.3} parent=58 // loop_pre_header
                  _
                $region61: #{produce_head_forward.3} parent=58 // loop_header
                  %s422 = sphi 0, %s426
                  %p423 = scmp.ge.s32.totalorder %s422, 1
                  %s427 = sphi %s187, %s187
                  %s428 = sphi %s184, %s184
                $region62: #{produce_head_forward.3} parent=58 // loop_header_branch
                  %425 = sbr.rel (%p423) target = $region66
                $region63: #{produce_head_forward.3} parent=58 // loop_body
                  %v429 = vld [vmem:[%s427] sm:$0xff]
                  %430 = vst [vmem:[%s428] sm:$0xff] %v429
                  %v431 = vld [vmem:[%s427 + $0x10] sm:$0xff]
                  %432 = vst [vmem:[%s428 + $0x8] sm:$0xff] %v431
                  %v433 = vld [vmem:[%s427 + $0x20] sm:$0xff]
                  %434 = vst [vmem:[%s428 + $0x10] sm:$0xff] %v433
                  %v435 = vld [vmem:[%s427 + $0x30] sm:$0xff]
                  %436 = vst [vmem:[%s428 + $0x18] sm:$0xff] %v435
                  %v437 = vld [vmem:[%s427 + $0x40] sm:$0xff]
                  %438 = vst [vmem:[%s428 + $0x20] sm:$0xff] %v437
                  %v439 = vld [vmem:[%s427 + $0x50] sm:$0xff]
                  %440 = vst [vmem:[%s428 + $0x28] sm:$0xff] %v439
                  %v441 = vld [vmem:[%s427 + $0x60] sm:$0xff]
                  %442 = vst [vmem:[%s428 + $0x30] sm:$0xff] %v441
                  %v443 = vld [vmem:[%s427 + $0x70] sm:$0xff]
                  %444 = vst [vmem:[%s428 + $0x38] sm:$0xff] %v443
                  %v445 = vld [vmem:[%s427 + $0x80] sm:$0xff]
                  %446 = vst [vmem:[%s428 + $0x40] sm:$0xff] %v445
                  %v447 = vld [vmem:[%s427 + $0x90] sm:$0xff]
                  %448 = vst [vmem:[%s428 + $0x48] sm:$0xff] %v447
                  %v449 = vld [vmem:[%s427 + $0xa0] sm:$0xff]
                  %450 = vst [vmem:[%s428 + $0x50] sm:$0xff] %v449
                  %v451 = vld [vmem:[%s427 + $0xb0] sm:$0xff]
                  %452 = vst [vmem:[%s428 + $0x58] sm:$0xff] %v451
                  %v453 = vld [vmem:[%s427 + $0xc0] sm:$0xff]
                  %454 = vst [vmem:[%s428 + $0x60] sm:$0xff] %v453
                  %v455 = vld [vmem:[%s427 + $0xd0] sm:$0xff]
                  %456 = vst [vmem:[%s428 + $0x68] sm:$0xff] %v455
                  %v457 = vld [vmem:[%s427 + $0xe0] sm:$0xff]
                  %458 = vst [vmem:[%s428 + $0x70] sm:$0xff] %v457
                  %v459 = vld [vmem:[%s427 + $0xf0] sm:$0xff]
                  %460 = vst [vmem:[%s428 + $0x78] sm:$0xff] %v459
                  %v461 = vld [vmem:[%s427 + $0x100] sm:$0xff]
                  %462 = vst [vmem:[%s428 + $0x80] sm:$0xff] %v461
                  %v463 = vld [vmem:[%s427 + $0x110] sm:$0xff]
                  %464 = vst [vmem:[%s428 + $0x88] sm:$0xff] %v463
                  %v465 = vld [vmem:[%s427 + $0x120] sm:$0xff]
                  %466 = vst [vmem:[%s428 + $0x90] sm:$0xff] %v465
                  %v467 = vld [vmem:[%s427 + $0x130] sm:$0xff]
                  %468 = vst [vmem:[%s428 + $0x98] sm:$0xff] %v467
                  %v469 = vld [vmem:[%s427 + $0x140] sm:$0xff]
                  %470 = vst [vmem:[%s428 + $0xa0] sm:$0xff] %v469
                  %v471 = vld [vmem:[%s427 + $0x150] sm:$0xff]
                  %472 = vst [vmem:[%s428 + $0xa8] sm:$0xff] %v471
                  %v473 = vld [vmem:[%s427 + $0x160] sm:$0xff]
                  %474 = vst [vmem:[%s428 + $0xb0] sm:$0xff] %v473
                  %v475 = vld [vmem:[%s427 + $0x170] sm:$0xff]
                  %476 = vst [vmem:[%s428 + $0xb8] sm:$0xff] %v475
                  %v477 = vld [vmem:[%s427 + $0x180] sm:$0xff]
                  %478 = vst [vmem:[%s428 + $0xc0] sm:$0xff] %v477
                  %v479 = vld [vmem:[%s427 + $0x190] sm:$0xff]
                  %480 = vst [vmem:[%s428 + $0xc8] sm:$0xff] %v479
                  %v481 = vld [vmem:[%s427 + $0x1a0] sm:$0xff]
                  %482 = vst [vmem:[%s428 + $0xd0] sm:$0xff] %v481
                  %v483 = vld [vmem:[%s427 + $0x1b0] sm:$0xff]
                  %484 = vst [vmem:[%s428 + $0xd8] sm:$0xff] %v483
                  %v485 = vld [vmem:[%s427 + $0x1c0] sm:$0xff]
                  %486 = vst [vmem:[%s428 + $0xe0] sm:$0xff] %v485
                  %v487 = vld [vmem:[%s427 + $0x1d0] sm:$0xff]
                  %488 = vst [vmem:[%s428 + $0xe8] sm:$0xff] %v487
                  %v489 = vld [vmem:[%s427 + $0x1e0] sm:$0xff]
                  %490 = vst [vmem:[%s428 + $0xf0] sm:$0xff] %v489
                  %v491 = vld [vmem:[%s427 + $0x1f0] sm:$0xff]
                  %492 = vst [vmem:[%s428 + $0xf8] sm:$0xff] %v491
                  %v493 = vld [vmem:[%s427 + $0x200] sm:$0xff]
                  %494 = vst [vmem:[%s428 + $0x100] sm:$0xff] %v493
                  %v495 = vld [vmem:[%s427 + $0x210] sm:$0xff]
                  %496 = vst [vmem:[%s428 + $0x108] sm:$0xff] %v495
                  %v497 = vld [vmem:[%s427 + $0x220] sm:$0xff]
                  %498 = vst [vmem:[%s428 + $0x110] sm:$0xff] %v497
                  %v499 = vld [vmem:[%s427 + $0x230] sm:$0xff]
                  %500 = vst [vmem:[%s428 + $0x118] sm:$0xff] %v499
                  %v501 = vld [vmem:[%s427 + $0x240] sm:$0xff]
                  %502 = vst [vmem:[%s428 + $0x120] sm:$0xff] %v501
                  %v503 = vld [vmem:[%s427 + $0x250] sm:$0xff]
                  %504 = vst [vmem:[%s428 + $0x128] sm:$0xff] %v503
                  %v505 = vld [vmem:[%s427 + $0x260] sm:$0xff]
                  %506 = vst [vmem:[%s428 + $0x130] sm:$0xff] %v505
                  %v507 = vld [vmem:[%s427 + $0x270] sm:$0xff]
                  %508 = vst [vmem:[%s428 + $0x138] sm:$0xff] %v507
                  %v509 = vld [vmem:[%s427 + $0x280] sm:$0xff]
                  %510 = vst [vmem:[%s428 + $0x140] sm:$0xff] %v509
                  %v511 = vld [vmem:[%s427 + $0x290] sm:$0xff]
                  %512 = vst [vmem:[%s428 + $0x148] sm:$0xff] %v511
                  %v513 = vld [vmem:[%s427 + $0x2a0] sm:$0xff]
                  %514 = vst [vmem:[%s428 + $0x150] sm:$0xff] %v513
                  %v515 = vld [vmem:[%s427 + $0x2b0] sm:$0xff]
                  %516 = vst [vmem:[%s428 + $0x158] sm:$0xff] %v515
                  %v517 = vld [vmem:[%s427 + $0x2c0] sm:$0xff]
                  %518 = vst [vmem:[%s428 + $0x160] sm:$0xff] %v517
                  %v519 = vld [vmem:[%s427 + $0x2d0] sm:$0xff]
                  %520 = vst [vmem:[%s428 + $0x168] sm:$0xff] %v519
                  %v521 = vld [vmem:[%s427 + $0x2e0] sm:$0xff]
                  %522 = vst [vmem:[%s428 + $0x170] sm:$0xff] %v521
                  %v523 = vld [vmem:[%s427 + $0x2f0] sm:$0xff]
                  %524 = vst [vmem:[%s428 + $0x178] sm:$0xff] %v523
                  %v525 = vld [vmem:[%s427 + $0x300] sm:$0xff]
                  %526 = vst [vmem:[%s428 + $0x180] sm:$0xff] %v525
                  %v527 = vld [vmem:[%s427 + $0x310] sm:$0xff]
                  %528 = vst [vmem:[%s428 + $0x188] sm:$0xff] %v527
                  %v529 = vld [vmem:[%s427 + $0x320] sm:$0xff]
                  %530 = vst [vmem:[%s428 + $0x190] sm:$0xff] %v529
                  %v531 = vld [vmem:[%s427 + $0x330] sm:$0xff]
                  %532 = vst [vmem:[%s428 + $0x198] sm:$0xff] %v531
                  %v533 = vld [vmem:[%s427 + $0x340] sm:$0xff]
                  %534 = vst [vmem:[%s428 + $0x1a0] sm:$0xff] %v533
                  %v535 = vld [vmem:[%s427 + $0x350] sm:$0xff]
                  %536 = vst [vmem:[%s428 + $0x1a8] sm:$0xff] %v535
                  %v537 = vld [vmem:[%s427 + $0x360] sm:$0xff]
                  %538 = vst [vmem:[%s428 + $0x1b0] sm:$0xff] %v537
                  %v539 = vld [vmem:[%s427 + $0x370] sm:$0xff]
                  %540 = vst [vmem:[%s428 + $0x1b8] sm:$0xff] %v539
                  %v541 = vld [vmem:[%s427 + $0x380] sm:$0xff]
                  %542 = vst [vmem:[%s428 + $0x1c0] sm:$0xff] %v541
                  %v543 = vld [vmem:[%s427 + $0x390] sm:$0xff]
                  %544 = vst [vmem:[%s428 + $0x1c8] sm:$0xff] %v543
                  %v545 = vld [vmem:[%s427 + $0x3a0] sm:$0xff]
                  %546 = vst [vmem:[%s428 + $0x1d0] sm:$0xff] %v545
                  %v547 = vld [vmem:[%s427 + $0x3b0] sm:$0xff]
                  %548 = vst [vmem:[%s428 + $0x1d8] sm:$0xff] %v547
                  %v549 = vld [vmem:[%s427 + $0x3c0] sm:$0xff]
                  %550 = vst [vmem:[%s428 + $0x1e0] sm:$0xff] %v549
                  %v551 = vld [vmem:[%s427 + $0x3d0] sm:$0xff]
                  %552 = vst [vmem:[%s428 + $0x1e8] sm:$0xff] %v551
                  %v553 = vld [vmem:[%s427 + $0x3e0] sm:$0xff]
                  %554 = vst [vmem:[%s428 + $0x1f0] sm:$0xff] %v553
                  %v555 = vld [vmem:[%s427 + $0x3f0] sm:$0xff]
                  %556 = vst [vmem:[%s428 + $0x1f8] sm:$0xff] %v555
                  %v557 = vld [vmem:[%s427 + $0x400] sm:$0xff]
                  %558 = vst [vmem:[%s428 + $0x200] sm:$0xff] %v557
                  %v559 = vld [vmem:[%s427 + $0x410] sm:$0xff]
                  %560 = vst [vmem:[%s428 + $0x208] sm:$0xff] %v559
                  %v561 = vld [vmem:[%s427 + $0x420] sm:$0xff]
                  %562 = vst [vmem:[%s428 + $0x210] sm:$0xff] %v561
                  %v563 = vld [vmem:[%s427 + $0x430] sm:$0xff]
                  %564 = vst [vmem:[%s428 + $0x218] sm:$0xff] %v563
                  %v565 = vld [vmem:[%s427 + $0x440] sm:$0xff]
                  %566 = vst [vmem:[%s428 + $0x220] sm:$0xff] %v565
                  %v567 = vld [vmem:[%s427 + $0x450] sm:$0xff]
                  %568 = vst [vmem:[%s428 + $0x228] sm:$0xff] %v567
                  %v569 = vld [vmem:[%s427 + $0x460] sm:$0xff]
                  %570 = vst [vmem:[%s428 + $0x230] sm:$0xff] %v569
                  %v571 = vld [vmem:[%s427 + $0x470] sm:$0xff]
                  %572 = vst [vmem:[%s428 + $0x238] sm:$0xff] %v571
                  %v573 = vld [vmem:[%s427 + $0x480] sm:$0xff]
                  %574 = vst [vmem:[%s428 + $0x240] sm:$0xff] %v573
                  %v575 = vld [vmem:[%s427 + $0x490] sm:$0xff]
                  %576 = vst [vmem:[%s428 + $0x248] sm:$0xff] %v575
                  %v577 = vld [vmem:[%s427 + $0x4a0] sm:$0xff]
                  %578 = vst [vmem:[%s428 + $0x250] sm:$0xff] %v577
                  %v579 = vld [vmem:[%s427 + $0x4b0] sm:$0xff]
                  %580 = vst [vmem:[%s428 + $0x258] sm:$0xff] %v579
                  %v581 = vld [vmem:[%s427 + $0x4c0] sm:$0xff]
                  %582 = vst [vmem:[%s428 + $0x260] sm:$0xff] %v581
                  %v583 = vld [vmem:[%s427 + $0x4d0] sm:$0xff]
                  %584 = vst [vmem:[%s428 + $0x268] sm:$0xff] %v583
                  %v585 = vld [vmem:[%s427 + $0x4e0] sm:$0xff]
                  %586 = vst [vmem:[%s428 + $0x270] sm:$0xff] %v585
                  %v587 = vld [vmem:[%s427 + $0x4f0] sm:$0xff]
                  %588 = vst [vmem:[%s428 + $0x278] sm:$0xff] %v587
                  %v589 = vld [vmem:[%s427 + $0x500] sm:$0xff]
                  %590 = vst [vmem:[%s428 + $0x280] sm:$0xff] %v589
                  %v591 = vld [vmem:[%s427 + $0x510] sm:$0xff]
                  %592 = vst [vmem:[%s428 + $0x288] sm:$0xff] %v591
                  %v593 = vld [vmem:[%s427 + $0x520] sm:$0xff]
                  %594 = vst [vmem:[%s428 + $0x290] sm:$0xff] %v593
                  %v595 = vld [vmem:[%s427 + $0x530] sm:$0xff]
                  %596 = vst [vmem:[%s428 + $0x298] sm:$0xff] %v595
                  %v597 = vld [vmem:[%s427 + $0x540] sm:$0xff]
                  %598 = vst [vmem:[%s428 + $0x2a0] sm:$0xff] %v597
                  %v599 = vld [vmem:[%s427 + $0x550] sm:$0xff]
                  %600 = vst [vmem:[%s428 + $0x2a8] sm:$0xff] %v599
                  %v601 = vld [vmem:[%s427 + $0x560] sm:$0xff]
                  %602 = vst [vmem:[%s428 + $0x2b0] sm:$0xff] %v601
                  %v603 = vld [vmem:[%s427 + $0x570] sm:$0xff]
                  %604 = vst [vmem:[%s428 + $0x2b8] sm:$0xff] %v603
                  %v605 = vld [vmem:[%s427 + $0x580] sm:$0xff]
                  %606 = vst [vmem:[%s428 + $0x2c0] sm:$0xff] %v605
                  %v607 = vld [vmem:[%s427 + $0x590] sm:$0xff]
                  %608 = vst [vmem:[%s428 + $0x2c8] sm:$0xff] %v607
                  %v609 = vld [vmem:[%s427 + $0x5a0] sm:$0xff]
                  %610 = vst [vmem:[%s428 + $0x2d0] sm:$0xff] %v609
                  %v611 = vld [vmem:[%s427 + $0x5b0] sm:$0xff]
                  %612 = vst [vmem:[%s428 + $0x2d8] sm:$0xff] %v611
                  %v613 = vld [vmem:[%s427 + $0x5c0] sm:$0xff]
                  %614 = vst [vmem:[%s428 + $0x2e0] sm:$0xff] %v613
                  %v615 = vld [vmem:[%s427 + $0x5d0] sm:$0xff]
                  %616 = vst [vmem:[%s428 + $0x2e8] sm:$0xff] %v615
                  %v617 = vld [vmem:[%s427 + $0x5e0] sm:$0xff]
                  %618 = vst [vmem:[%s428 + $0x2f0] sm:$0xff] %v617
                  %v619 = vld [vmem:[%s427 + $0x5f0] sm:$0xff]
                  %620 = vst [vmem:[%s428 + $0x2f8] sm:$0xff] %v619
                  %v621 = vld [vmem:[%s427 + $0x600] sm:$0xff]
                  %622 = vst [vmem:[%s428 + $0x300] sm:$0xff] %v621
                  %v623 = vld [vmem:[%s427 + $0x610] sm:$0xff]
                  %624 = vst [vmem:[%s428 + $0x308] sm:$0xff] %v623
                  %v625 = vld [vmem:[%s427 + $0x620] sm:$0xff]
                  %626 = vst [vmem:[%s428 + $0x310] sm:$0xff] %v625
                  %v627 = vld [vmem:[%s427 + $0x630] sm:$0xff]
                  %628 = vst [vmem:[%s428 + $0x318] sm:$0xff] %v627
                  %v629 = vld [vmem:[%s427 + $0x640] sm:$0xff]
                  %630 = vst [vmem:[%s428 + $0x320] sm:$0xff] %v629
                  %v631 = vld [vmem:[%s427 + $0x650] sm:$0xff]
                  %632 = vst [vmem:[%s428 + $0x328] sm:$0xff] %v631
                  %v633 = vld [vmem:[%s427 + $0x660] sm:$0xff]
                  %634 = vst [vmem:[%s428 + $0x330] sm:$0xff] %v633
                  %v635 = vld [vmem:[%s427 + $0x670] sm:$0xff]
                  %636 = vst [vmem:[%s428 + $0x338] sm:$0xff] %v635
                  %v637 = vld [vmem:[%s427 + $0x680] sm:$0xff]
                  %638 = vst [vmem:[%s428 + $0x340] sm:$0xff] %v637
                  %v639 = vld [vmem:[%s427 + $0x690] sm:$0xff]
                  %640 = vst [vmem:[%s428 + $0x348] sm:$0xff] %v639
                  %v641 = vld [vmem:[%s427 + $0x6a0] sm:$0xff]
                  %642 = vst [vmem:[%s428 + $0x350] sm:$0xff] %v641
                  %v643 = vld [vmem:[%s427 + $0x6b0] sm:$0xff]
                  %644 = vst [vmem:[%s428 + $0x358] sm:$0xff] %v643
                $region64: #{produce_head_forward.3} parent=58 // loop_footer
                  %s426 = sadd.s32 1, %s422
                $region65: #{produce_head_forward.3} parent=58 // loop_footer_branch
                  %421 = sbr.rel target = $region61
                $region66: #{produce_head_forward.3} parent=58 // loop_exit
                  _
              $region59: #{produce_head_forward.3} parent=43 // pred_fallthru
                _
              // Predicated region
              $region67: #{produce_head_forward.3} parent=43 // pred_check
                _
              $region68: #{produce_head_forward.3} parent=43 // pred_check_branch
                %646 = sbr.rel target = $region70
              $region69: #{produce_head_forward.3} parent=43 // pred_region
                _
              $region70: #{produce_head_forward.3} parent=43 // pred_fallthru
                _
            $region44: #{produce_head_forward.3} parent=39 // pred_fallthru
              _
            // Predicated region
            $region45: #{produce_head_forward.3} parent=39 // pred_check
              _
            $region46: #{produce_head_forward.3} parent=39 // pred_check_branch
              %193 = sbr.rel target = $region48
            $region47: #{produce_head_forward.3} parent=39 // pred_region
              loop: start=0, step=1, limit=1
              $region49: #{produce_head_forward.3} parent=47 // loop_pre_header
                _
              $region50: #{produce_head_forward.3} parent=47 // loop_header
                %s196 = sphi 0, %s200
                %p197 = scmp.ge.s32.totalorder %s196, 1
                %s201 = sphi %s187, %s187
                %s202 = sphi %s184, %s184
              $region51: #{produce_head_forward.3} parent=47 // loop_header_branch
                %199 = sbr.rel (%p197) target = $region55
              $region52: #{produce_head_forward.3} parent=47 // loop_body
                %v203 = vld [vmem:[%s201] sm:$0xff]
                %204 = vst [vmem:[%s202] sm:$0xff] %v203
                %v205 = vld [vmem:[%s201 + $0x10] sm:$0xff]
                %206 = vst [vmem:[%s202 + $0x8] sm:$0xff] %v205
                %v207 = vld [vmem:[%s201 + $0x20] sm:$0xff]
                %208 = vst [vmem:[%s202 + $0x10] sm:$0xff] %v207
                %v209 = vld [vmem:[%s201 + $0x30] sm:$0xff]
                %210 = vst [vmem:[%s202 + $0x18] sm:$0xff] %v209
                %v211 = vld [vmem:[%s201 + $0x40] sm:$0xff]
                %212 = vst [vmem:[%s202 + $0x20] sm:$0xff] %v211
                %v213 = vld [vmem:[%s201 + $0x50] sm:$0xff]
                %214 = vst [vmem:[%s202 + $0x28] sm:$0xff] %v213
                %v215 = vld [vmem:[%s201 + $0x60] sm:$0xff]
                %216 = vst [vmem:[%s202 + $0x30] sm:$0xff] %v215
                %v217 = vld [vmem:[%s201 + $0x70] sm:$0xff]
                %218 = vst [vmem:[%s202 + $0x38] sm:$0xff] %v217
                %v219 = vld [vmem:[%s201 + $0x80] sm:$0xff]
                %220 = vst [vmem:[%s202 + $0x40] sm:$0xff] %v219
                %v221 = vld [vmem:[%s201 + $0x90] sm:$0xff]
                %222 = vst [vmem:[%s202 + $0x48] sm:$0xff] %v221
                %v223 = vld [vmem:[%s201 + $0xa0] sm:$0xff]
                %224 = vst [vmem:[%s202 + $0x50] sm:$0xff] %v223
                %v225 = vld [vmem:[%s201 + $0xb0] sm:$0xff]
                %226 = vst [vmem:[%s202 + $0x58] sm:$0xff] %v225
                %v227 = vld [vmem:[%s201 + $0xc0] sm:$0xff]
                %228 = vst [vmem:[%s202 + $0x60] sm:$0xff] %v227
                %v229 = vld [vmem:[%s201 + $0xd0] sm:$0xff]
                %230 = vst [vmem:[%s202 + $0x68] sm:$0xff] %v229
                %v231 = vld [vmem:[%s201 + $0xe0] sm:$0xff]
                %232 = vst [vmem:[%s202 + $0x70] sm:$0xff] %v231
                %v233 = vld [vmem:[%s201 + $0xf0] sm:$0xff]
                %234 = vst [vmem:[%s202 + $0x78] sm:$0xff] %v233
                %v235 = vld [vmem:[%s201 + $0x100] sm:$0xff]
                %236 = vst [vmem:[%s202 + $0x80] sm:$0xff] %v235
                %v237 = vld [vmem:[%s201 + $0x110] sm:$0xff]
                %238 = vst [vmem:[%s202 + $0x88] sm:$0xff] %v237
                %v239 = vld [vmem:[%s201 + $0x120] sm:$0xff]
                %240 = vst [vmem:[%s202 + $0x90] sm:$0xff] %v239
                %v241 = vld [vmem:[%s201 + $0x130] sm:$0xff]
                %242 = vst [vmem:[%s202 + $0x98] sm:$0xff] %v241
                %v243 = vld [vmem:[%s201 + $0x140] sm:$0xff]
                %244 = vst [vmem:[%s202 + $0xa0] sm:$0xff] %v243
                %v245 = vld [vmem:[%s201 + $0x150] sm:$0xff]
                %246 = vst [vmem:[%s202 + $0xa8] sm:$0xff] %v245
                %v247 = vld [vmem:[%s201 + $0x160] sm:$0xff]
                %248 = vst [vmem:[%s202 + $0xb0] sm:$0xff] %v247
                %v249 = vld [vmem:[%s201 + $0x170] sm:$0xff]
                %250 = vst [vmem:[%s202 + $0xb8] sm:$0xff] %v249
                %v251 = vld [vmem:[%s201 + $0x180] sm:$0xff]
                %252 = vst [vmem:[%s202 + $0xc0] sm:$0xff] %v251
                %v253 = vld [vmem:[%s201 + $0x190] sm:$0xff]
                %254 = vst [vmem:[%s202 + $0xc8] sm:$0xff] %v253
                %v255 = vld [vmem:[%s201 + $0x1a0] sm:$0xff]
                %256 = vst [vmem:[%s202 + $0xd0] sm:$0xff] %v255
                %v257 = vld [vmem:[%s201 + $0x1b0] sm:$0xff]
                %258 = vst [vmem:[%s202 + $0xd8] sm:$0xff] %v257
                %v259 = vld [vmem:[%s201 + $0x1c0] sm:$0xff]
                %260 = vst [vmem:[%s202 + $0xe0] sm:$0xff] %v259
                %v261 = vld [vmem:[%s201 + $0x1d0] sm:$0xff]
                %262 = vst [vmem:[%s202 + $0xe8] sm:$0xff] %v261
                %v263 = vld [vmem:[%s201 + $0x1e0] sm:$0xff]
                %264 = vst [vmem:[%s202 + $0xf0] sm:$0xff] %v263
                %v265 = vld [vmem:[%s201 + $0x1f0] sm:$0xff]
                %266 = vst [vmem:[%s202 + $0xf8] sm:$0xff] %v265
                %v267 = vld [vmem:[%s201 + $0x200] sm:$0xff]
                %268 = vst [vmem:[%s202 + $0x100] sm:$0xff] %v267
                %v269 = vld [vmem:[%s201 + $0x210] sm:$0xff]
                %270 = vst [vmem:[%s202 + $0x108] sm:$0xff] %v269
                %v271 = vld [vmem:[%s201 + $0x220] sm:$0xff]
                %272 = vst [vmem:[%s202 + $0x110] sm:$0xff] %v271
                %v273 = vld [vmem:[%s201 + $0x230] sm:$0xff]
                %274 = vst [vmem:[%s202 + $0x118] sm:$0xff] %v273
                %v275 = vld [vmem:[%s201 + $0x240] sm:$0xff]
                %276 = vst [vmem:[%s202 + $0x120] sm:$0xff] %v275
                %v277 = vld [vmem:[%s201 + $0x250] sm:$0xff]
                %278 = vst [vmem:[%s202 + $0x128] sm:$0xff] %v277
                %v279 = vld [vmem:[%s201 + $0x260] sm:$0xff]
                %280 = vst [vmem:[%s202 + $0x130] sm:$0xff] %v279
                %v281 = vld [vmem:[%s201 + $0x270] sm:$0xff]
                %282 = vst [vmem:[%s202 + $0x138] sm:$0xff] %v281
                %v283 = vld [vmem:[%s201 + $0x280] sm:$0xff]
                %284 = vst [vmem:[%s202 + $0x140] sm:$0xff] %v283
                %v285 = vld [vmem:[%s201 + $0x290] sm:$0xff]
                %286 = vst [vmem:[%s202 + $0x148] sm:$0xff] %v285
                %v287 = vld [vmem:[%s201 + $0x2a0] sm:$0xff]
                %288 = vst [vmem:[%s202 + $0x150] sm:$0xff] %v287
                %v289 = vld [vmem:[%s201 + $0x2b0] sm:$0xff]
                %290 = vst [vmem:[%s202 + $0x158] sm:$0xff] %v289
                %v291 = vld [vmem:[%s201 + $0x2c0] sm:$0xff]
                %292 = vst [vmem:[%s202 + $0x160] sm:$0xff] %v291
                %v293 = vld [vmem:[%s201 + $0x2d0] sm:$0xff]
                %294 = vst [vmem:[%s202 + $0x168] sm:$0xff] %v293
                %v295 = vld [vmem:[%s201 + $0x2e0] sm:$0xff]
                %296 = vst [vmem:[%s202 + $0x170] sm:$0xff] %v295
                %v297 = vld [vmem:[%s201 + $0x2f0] sm:$0xff]
                %298 = vst [vmem:[%s202 + $0x178] sm:$0xff] %v297
                %v299 = vld [vmem:[%s201 + $0x300] sm:$0xff]
                %300 = vst [vmem:[%s202 + $0x180] sm:$0xff] %v299
                %v301 = vld [vmem:[%s201 + $0x310] sm:$0xff]
                %302 = vst [vmem:[%s202 + $0x188] sm:$0xff] %v301
                %v303 = vld [vmem:[%s201 + $0x320] sm:$0xff]
                %304 = vst [vmem:[%s202 + $0x190] sm:$0xff] %v303
                %v305 = vld [vmem:[%s201 + $0x330] sm:$0xff]
                %306 = vst [vmem:[%s202 + $0x198] sm:$0xff] %v305
                %v307 = vld [vmem:[%s201 + $0x340] sm:$0xff]
                %308 = vst [vmem:[%s202 + $0x1a0] sm:$0xff] %v307
                %v309 = vld [vmem:[%s201 + $0x350] sm:$0xff]
                %310 = vst [vmem:[%s202 + $0x1a8] sm:$0xff] %v309
                %v311 = vld [vmem:[%s201 + $0x360] sm:$0xff]
                %312 = vst [vmem:[%s202 + $0x1b0] sm:$0xff] %v311
                %v313 = vld [vmem:[%s201 + $0x370] sm:$0xff]
                %314 = vst [vmem:[%s202 + $0x1b8] sm:$0xff] %v313
                %v315 = vld [vmem:[%s201 + $0x380] sm:$0xff]
                %316 = vst [vmem:[%s202 + $0x1c0] sm:$0xff] %v315
                %v317 = vld [vmem:[%s201 + $0x390] sm:$0xff]
                %318 = vst [vmem:[%s202 + $0x1c8] sm:$0xff] %v317
                %v319 = vld [vmem:[%s201 + $0x3a0] sm:$0xff]
                %320 = vst [vmem:[%s202 + $0x1d0] sm:$0xff] %v319
                %v321 = vld [vmem:[%s201 + $0x3b0] sm:$0xff]
                %322 = vst [vmem:[%s202 + $0x1d8] sm:$0xff] %v321
                %v323 = vld [vmem:[%s201 + $0x3c0] sm:$0xff]
                %324 = vst [vmem:[%s202 + $0x1e0] sm:$0xff] %v323
                %v325 = vld [vmem:[%s201 + $0x3d0] sm:$0xff]
                %326 = vst [vmem:[%s202 + $0x1e8] sm:$0xff] %v325
                %v327 = vld [vmem:[%s201 + $0x3e0] sm:$0xff]
                %328 = vst [vmem:[%s202 + $0x1f0] sm:$0xff] %v327
                %v329 = vld [vmem:[%s201 + $0x3f0] sm:$0xff]
                %330 = vst [vmem:[%s202 + $0x1f8] sm:$0xff] %v329
                %v331 = vld [vmem:[%s201 + $0x400] sm:$0xff]
                %332 = vst [vmem:[%s202 + $0x200] sm:$0xff] %v331
                %v333 = vld [vmem:[%s201 + $0x410] sm:$0xff]
                %334 = vst [vmem:[%s202 + $0x208] sm:$0xff] %v333
                %v335 = vld [vmem:[%s201 + $0x420] sm:$0xff]
                %336 = vst [vmem:[%s202 + $0x210] sm:$0xff] %v335
                %v337 = vld [vmem:[%s201 + $0x430] sm:$0xff]
                %338 = vst [vmem:[%s202 + $0x218] sm:$0xff] %v337
                %v339 = vld [vmem:[%s201 + $0x440] sm:$0xff]
                %340 = vst [vmem:[%s202 + $0x220] sm:$0xff] %v339
                %v341 = vld [vmem:[%s201 + $0x450] sm:$0xff]
                %342 = vst [vmem:[%s202 + $0x228] sm:$0xff] %v341
                %v343 = vld [vmem:[%s201 + $0x460] sm:$0xff]
                %344 = vst [vmem:[%s202 + $0x230] sm:$0xff] %v343
                %v345 = vld [vmem:[%s201 + $0x470] sm:$0xff]
                %346 = vst [vmem:[%s202 + $0x238] sm:$0xff] %v345
                %v347 = vld [vmem:[%s201 + $0x480] sm:$0xff]
                %348 = vst [vmem:[%s202 + $0x240] sm:$0xff] %v347
                %v349 = vld [vmem:[%s201 + $0x490] sm:$0xff]
                %350 = vst [vmem:[%s202 + $0x248] sm:$0xff] %v349
                %v351 = vld [vmem:[%s201 + $0x4a0] sm:$0xff]
                %352 = vst [vmem:[%s202 + $0x250] sm:$0xff] %v351
                %v353 = vld [vmem:[%s201 + $0x4b0] sm:$0xff]
                %354 = vst [vmem:[%s202 + $0x258] sm:$0xff] %v353
                %v355 = vld [vmem:[%s201 + $0x4c0] sm:$0xff]
                %356 = vst [vmem:[%s202 + $0x260] sm:$0xff] %v355
                %v357 = vld [vmem:[%s201 + $0x4d0] sm:$0xff]
                %358 = vst [vmem:[%s202 + $0x268] sm:$0xff] %v357
                %v359 = vld [vmem:[%s201 + $0x4e0] sm:$0xff]
                %360 = vst [vmem:[%s202 + $0x270] sm:$0xff] %v359
                %v361 = vld [vmem:[%s201 + $0x4f0] sm:$0xff]
                %362 = vst [vmem:[%s202 + $0x278] sm:$0xff] %v361
                %v363 = vld [vmem:[%s201 + $0x500] sm:$0xff]
                %364 = vst [vmem:[%s202 + $0x280] sm:$0xff] %v363
                %v365 = vld [vmem:[%s201 + $0x510] sm:$0xff]
                %366 = vst [vmem:[%s202 + $0x288] sm:$0xff] %v365
                %v367 = vld [vmem:[%s201 + $0x520] sm:$0xff]
                %368 = vst [vmem:[%s202 + $0x290] sm:$0xff] %v367
                %v369 = vld [vmem:[%s201 + $0x530] sm:$0xff]
                %370 = vst [vmem:[%s202 + $0x298] sm:$0xff] %v369
                %v371 = vld [vmem:[%s201 + $0x540] sm:$0xff]
                %372 = vst [vmem:[%s202 + $0x2a0] sm:$0xff] %v371
                %v373 = vld [vmem:[%s201 + $0x550] sm:$0xff]
                %374 = vst [vmem:[%s202 + $0x2a8] sm:$0xff] %v373
                %v375 = vld [vmem:[%s201 + $0x560] sm:$0xff]
                %376 = vst [vmem:[%s202 + $0x2b0] sm:$0xff] %v375
                %v377 = vld [vmem:[%s201 + $0x570] sm:$0xff]
                %378 = vst [vmem:[%s202 + $0x2b8] sm:$0xff] %v377
                %v379 = vld [vmem:[%s201 + $0x580] sm:$0xff]
                %380 = vst [vmem:[%s202 + $0x2c0] sm:$0xff] %v379
                %v381 = vld [vmem:[%s201 + $0x590] sm:$0xff]
                %382 = vst [vmem:[%s202 + $0x2c8] sm:$0xff] %v381
                %v383 = vld [vmem:[%s201 + $0x5a0] sm:$0xff]
                %384 = vst [vmem:[%s202 + $0x2d0] sm:$0xff] %v383
                %v385 = vld [vmem:[%s201 + $0x5b0] sm:$0xff]
                %386 = vst [vmem:[%s202 + $0x2d8] sm:$0xff] %v385
                %v387 = vld [vmem:[%s201 + $0x5c0] sm:$0xff]
                %388 = vst [vmem:[%s202 + $0x2e0] sm:$0xff] %v387
                %v389 = vld [vmem:[%s201 + $0x5d0] sm:$0xff]
                %390 = vst [vmem:[%s202 + $0x2e8] sm:$0xff] %v389
                %v391 = vld [vmem:[%s201 + $0x5e0] sm:$0xff]
                %392 = vst [vmem:[%s202 + $0x2f0] sm:$0xff] %v391
                %v393 = vld [vmem:[%s201 + $0x5f0] sm:$0xff]
                %394 = vst [vmem:[%s202 + $0x2f8] sm:$0xff] %v393
                %v395 = vld [vmem:[%s201 + $0x600] sm:$0xff]
                %396 = vst [vmem:[%s202 + $0x300] sm:$0xff] %v395
                %v397 = vld [vmem:[%s201 + $0x610] sm:$0xff]
                %398 = vst [vmem:[%s202 + $0x308] sm:$0xff] %v397
                %v399 = vld [vmem:[%s201 + $0x620] sm:$0xff]
                %400 = vst [vmem:[%s202 + $0x310] sm:$0xff] %v399
                %v401 = vld [vmem:[%s201 + $0x630] sm:$0xff]
                %402 = vst [vmem:[%s202 + $0x318] sm:$0xff] %v401
                %v403 = vld [vmem:[%s201 + $0x640] sm:$0xff]
                %404 = vst [vmem:[%s202 + $0x320] sm:$0xff] %v403
                %v405 = vld [vmem:[%s201 + $0x650] sm:$0xff]
                %406 = vst [vmem:[%s202 + $0x328] sm:$0xff] %v405
                %v407 = vld [vmem:[%s201 + $0x660] sm:$0xff]
                %408 = vst [vmem:[%s202 + $0x330] sm:$0xff] %v407
                %v409 = vld [vmem:[%s201 + $0x670] sm:$0xff]
                %410 = vst [vmem:[%s202 + $0x338] sm:$0xff] %v409
                %v411 = vld [vmem:[%s201 + $0x680] sm:$0xff]
                %412 = vst [vmem:[%s202 + $0x340] sm:$0xff] %v411
                %v413 = vld [vmem:[%s201 + $0x690] sm:$0xff]
                %414 = vst [vmem:[%s202 + $0x348] sm:$0xff] %v413
                %v415 = vld [vmem:[%s201 + $0x6a0] sm:$0xff]
                %416 = vst [vmem:[%s202 + $0x350] sm:$0xff] %v415
                %v417 = vld [vmem:[%s201 + $0x6b0] sm:$0xff]
                %418 = vst [vmem:[%s202 + $0x358] sm:$0xff] %v417
              $region53: #{produce_head_forward.3} parent=47 // loop_footer
                %s200 = sadd.s32 1, %s196
              $region54: #{produce_head_forward.3} parent=47 // loop_footer_branch
                %195 = sbr.rel target = $region50
              $region55: #{produce_head_forward.3} parent=47 // loop_exit
                _
            $region48: #{produce_head_forward.3} parent=39 // pred_fallthru
              _
          $region40: #{produce_head_forward.3} parent=35 // pred_fallthru
            _
          %647 = vnop
        $region36: #{produce_head_forward.3} parent=31 // pred_fallthru
          _
      $region32: #{produce_head_forward.3} parent=5 // pred_fallthru
        _
      %p648 = scmp.le.s32.totalorder 1, %s11
      %p649 = scmp.lt.s32.totalorder %s11, 3
      %p650 = pnand %p648, %p649
      %p651 = pneg %p650
      // Predicated region
      $region71: #{produce_head_forward.3} parent=5 // pred_check
        _
      $region72: #{produce_head_forward.3} parent=5 // pred_check_branch
        %653 = sbr.rel (%p650) target = $region74
      $region73: #{produce_head_forward.3} parent=5 // pred_region
        %s654 = ssub.s32 %s11, 1
        %s655 = sand.u32 %s24, 1
        %s656 = sand.u32 %s24, 1
        %s657 = smul.addr %s656, 864
        %s658 = scalar_lea.vmem [#allocation2], %s657
        // Predicated region
        $region75: #{produce_head_forward.3} parent=73 // pred_check
          %p659 = pneg %p37
        $region76: #{produce_head_forward.3} parent=73 // pred_check_branch
          %661 = sbr.rel (%p659) target = $region78
        $region77: #{produce_head_forward.3} parent=73 // pred_region
          _
        $region78: #{produce_head_forward.3} parent=73 // pred_fallthru
          _
        %s662 = sand.u32 %s24, 1
        %s663 = sand.u32 %s24, 1
        %s664 = smul.addr %s663, 864
        %s665 = scalar_lea.vmem [#allocation2], %s664
        %p666 = pneg %p37
        %p667 = pneg %p34
        %p668 = pneg %p58
        %p669 = pneg %p55
        %p670 = pneg %p79
        %p671 = pneg %p76
        %p672 = pneg %p100
        %p673 = pneg %p97
        %p674 = pneg %p121
        %p675 = pneg %p118
        %p676 = pneg %p147
        %p677 = pneg %p144
        %s678 = sand.u32 %s134, 1
        %s679 = sand.u32 %s134, 1
        %s680 = smul.addr %s679, 32
        %s681 = scalar_lea.vmem [#allocation3], %s680
        %s682 = smul.u32 2, %s16
        %s683 = smul.u32 2, %s16
        %v684 = vld [vmem:[%s4] sm:$0xff]
        %v685 = vld [vmem:[%s4 + $0x8] sm:$0xff]
        %687 = vset.pattern.permute.xlu0 0
        %688 = vperm.xlu0 %687, %v684
        %v689 = vpop.permute.xlu0 %688
        %692 = vset.pattern.permute.xlu0 0
        %693 = vperm.xlu0 %692, %v685
        %v694 = vpop.permute.xlu0 %693
        %v696 = vld [vmem:[%s1] sm:$0xff]
        %v697 = vld [vmem:[%s1 + $0x8] sm:$0xf]
        %v698 = vld [vmem:[%s1 + $0xc] sm:$0xff]
        %v699 = vld [vmem:[%s1 + $0x14] sm:$0xf]
        %v700 = vld [vmem:[%s1 + $0x18] sm:$0xff]
        %v701 = vld [vmem:[%s1 + $0x20] sm:$0xf]
        %v702 = vld [vmem:[%s1 + $0x24] sm:$0xff]
        %v703 = vld [vmem:[%s1 + $0x2c] sm:$0xf]
        %v704 = vld [vmem:[%s1 + $0x30] sm:$0xff]
        %v705 = vld [vmem:[%s1 + $0x38] sm:$0xf]
        %v706 = vld [vmem:[%s1 + $0x3c] sm:$0xff]
        %v707 = vld [vmem:[%s1 + $0x44] sm:$0xf]
        %v708 = vld [vmem:[%s1 + $0x48] sm:$0xff]
        %v709 = vld [vmem:[%s1 + $0x50] sm:$0xf]
        %v710 = vld [vmem:[%s1 + $0x54] sm:$0xff]
        %v711 = vld [vmem:[%s1 + $0x5c] sm:$0xf]
        %v712 = vunpack.c.l.bf16 %v696
        %v713 = vunpack.c.h.bf16 %v696
        %v714 = vunpack.c.l.bf16 %v697
        %v715 = vunpack.c.l.bf16 %v698
        %v716 = vunpack.c.h.bf16 %v698
        %v717 = vunpack.c.l.bf16 %v699
        %v718 = vunpack.c.l.bf16 %v700
        %v719 = vunpack.c.h.bf16 %v700
        %v720 = vunpack.c.l.bf16 %v701
        %v721 = vunpack.c.l.bf16 %v702
        %v722 = vunpack.c.h.bf16 %v702
        %v723 = vunpack.c.l.bf16 %v703
        %v724 = vunpack.c.l.bf16 %v704
        %v725 = vunpack.c.h.bf16 %v704
        %v726 = vunpack.c.l.bf16 %v705
        %v727 = vunpack.c.l.bf16 %v706
        %v728 = vunpack.c.h.bf16 %v706
        %v729 = vunpack.c.l.bf16 %v707
        %v730 = vunpack.c.l.bf16 %v708
        %v731 = vunpack.c.h.bf16 %v708
        %v732 = vunpack.c.l.bf16 %v709
        %v733 = vunpack.c.l.bf16 %v710
        %v734 = vunpack.c.h.bf16 %v710
        %v735 = vunpack.c.l.bf16 %v711
        %v736 = vld [vmem:[%s658] sm:$0xff]
        %v737 = vld [vmem:[%s658 + $0x8] sm:$0xff]
        %v738 = vld [vmem:[%s658 + $0x10] sm:$0xff]
        %v739 = vld [vmem:[%s658 + $0x18] sm:$0xff]
        %v740 = vld [vmem:[%s658 + $0x20] sm:$0xff]
        %v741 = vld [vmem:[%s658 + $0x28] sm:$0xff]
        %v742 = vld [vmem:[%s658 + $0x30] sm:$0xff]
        %v743 = vld [vmem:[%s658 + $0x38] sm:$0xff]
        %v744 = vld [vmem:[%s658 + $0x40] sm:$0xff]
        %v745 = vld [vmem:[%s658 + $0x48] sm:$0xff]
        %v746 = vld [vmem:[%s658 + $0x50] sm:$0xff]
        %v747 = vld [vmem:[%s658 + $0x58] sm:$0xff]
        %v748 = vld [vmem:[%s658 + $0x60] sm:$0xff]
        %v749 = vld [vmem:[%s658 + $0x68] sm:$0xff]
        %v750 = vld [vmem:[%s658 + $0x70] sm:$0xff]
        %v751 = vld [vmem:[%s658 + $0x78] sm:$0xff]
        %v752 = vld [vmem:[%s658 + $0x80] sm:$0xff]
        %v753 = vld [vmem:[%s658 + $0x88] sm:$0xff]
        %v754 = vld [vmem:[%s658 + $0x90] sm:$0xff]
        %v755 = vld [vmem:[%s658 + $0x98] sm:$0xff]
        %v756 = vld [vmem:[%s658 + $0xa0] sm:$0xff]
        %v757 = vld [vmem:[%s658 + $0xa8] sm:$0xff]
        %v758 = vld [vmem:[%s658 + $0xb0] sm:$0xff]
        %v759 = vld [vmem:[%s658 + $0xb8] sm:$0xff]
        %v760 = vld [vmem:[%s658 + $0xc0] sm:$0xff]
        %v761 = vld [vmem:[%s658 + $0xc8] sm:$0xff]
        %v762 = vld [vmem:[%s658 + $0xd0] sm:$0xff]
        %v763 = vld [vmem:[%s658 + $0xd8] sm:$0xff]
        %v764 = vld [vmem:[%s658 + $0xe0] sm:$0xff]
        %v765 = vld [vmem:[%s658 + $0xe8] sm:$0xff]
        %v766 = vld [vmem:[%s658 + $0xf0] sm:$0xff]
        %v767 = vld [vmem:[%s658 + $0xf8] sm:$0xff]
        %v768 = vld [vmem:[%s658 + $0x100] sm:$0xff]
        %v769 = vld [vmem:[%s658 + $0x108] sm:$0xff]
        %v770 = vld [vmem:[%s658 + $0x110] sm:$0xff]
        %v771 = vld [vmem:[%s658 + $0x118] sm:$0xff]
        %v772 = vunpack.c.l.bf16 %v736
        %v773 = vunpack.c.h.bf16 %v736
        %v774 = vunpack.c.l.bf16 %v737
        %v775 = vunpack.c.h.bf16 %v737
        %v776 = vunpack.c.l.bf16 %v738
        %v777 = vunpack.c.h.bf16 %v738
        %v778 = vunpack.c.l.bf16 %v739
        %v779 = vunpack.c.h.bf16 %v739
        %v780 = vunpack.c.l.bf16 %v740
        %v781 = vunpack.c.h.bf16 %v740
        %v782 = vunpack.c.l.bf16 %v741
        %v783 = vunpack.c.h.bf16 %v741
        %v784 = vunpack.c.l.bf16 %v742
        %v785 = vunpack.c.h.bf16 %v742
        %v786 = vunpack.c.l.bf16 %v743
        %v787 = vunpack.c.h.bf16 %v743
        %v788 = vunpack.c.l.bf16 %v744
        %v789 = vunpack.c.h.bf16 %v744
        %v790 = vunpack.c.l.bf16 %v745
        %v791 = vunpack.c.h.bf16 %v745
        %v792 = vunpack.c.l.bf16 %v746
        %v793 = vunpack.c.h.bf16 %v746
        %v794 = vunpack.c.l.bf16 %v747
        %v795 = vunpack.c.h.bf16 %v747
        %v796 = vunpack.c.l.bf16 %v748
        %v797 = vunpack.c.h.bf16 %v748
        %v798 = vunpack.c.l.bf16 %v749
        %v799 = vunpack.c.h.bf16 %v749
        %v800 = vunpack.c.l.bf16 %v750
        %v801 = vunpack.c.h.bf16 %v750
        %v802 = vunpack.c.l.bf16 %v751
        %v803 = vunpack.c.h.bf16 %v751
        %v804 = vunpack.c.l.bf16 %v752
        %v805 = vunpack.c.h.bf16 %v752
        %v806 = vunpack.c.l.bf16 %v753
        %v807 = vunpack.c.h.bf16 %v753
        %v808 = vunpack.c.l.bf16 %v754
        %v809 = vunpack.c.h.bf16 %v754
        %v810 = vunpack.c.l.bf16 %v755
        %v811 = vunpack.c.h.bf16 %v755
        %v812 = vunpack.c.l.bf16 %v756
        %v813 = vunpack.c.h.bf16 %v756
        %v814 = vunpack.c.l.bf16 %v757
        %v815 = vunpack.c.h.bf16 %v757
        %v816 = vunpack.c.l.bf16 %v758
        %v817 = vunpack.c.h.bf16 %v758
        %v818 = vunpack.c.l.bf16 %v759
        %v819 = vunpack.c.h.bf16 %v759
        %v820 = vunpack.c.l.bf16 %v760
        %v821 = vunpack.c.h.bf16 %v760
        %v822 = vunpack.c.l.bf16 %v761
        %v823 = vunpack.c.h.bf16 %v761
        %v824 = vunpack.c.l.bf16 %v762
        %v825 = vunpack.c.h.bf16 %v762
        %v826 = vunpack.c.l.bf16 %v763
        %v827 = vunpack.c.h.bf16 %v763
        %v828 = vunpack.c.l.bf16 %v764
        %v829 = vunpack.c.h.bf16 %v764
        %v830 = vunpack.c.l.bf16 %v765
        %v831 = vunpack.c.h.bf16 %v765
        %v832 = vunpack.c.l.bf16 %v766
        %v833 = vunpack.c.h.bf16 %v766
        %v834 = vunpack.c.l.bf16 %v767
        %v835 = vunpack.c.h.bf16 %v767
        %v836 = vunpack.c.l.bf16 %v768
        %v837 = vunpack.c.h.bf16 %v768
        %v838 = vunpack.c.l.bf16 %v769
        %v839 = vunpack.c.h.bf16 %v769
        %v840 = vunpack.c.l.bf16 %v770
        %v841 = vunpack.c.h.bf16 %v770
        %v842 = vunpack.c.l.bf16 %v771
        %v843 = vunpack.c.h.bf16 %v771
        %v844 = vld [vmem:[%s2] sm:$0xff]
        %v845 = vld [vmem:[%s2 + $0x8] sm:$0xff]
        %v846 = vld [vmem:[%s2 + $0x10] sm:$0xff]
        %v847 = vld [vmem:[%s2 + $0x18] sm:$0xff]
        %v848 = vld [vmem:[%s2 + $0x20] sm:$0xff]
        %v849 = vld [vmem:[%s2 + $0x28] sm:$0xff]
        %v850 = vld [vmem:[%s2 + $0x30] sm:$0xff]
        %v851 = vld [vmem:[%s2 + $0x38] sm:$0xff]
        %853 = vset.pattern.permute.xlu0 0
        %854 = vperm.xlu0 %853, %v844
        %v855 = vpop.permute.xlu0 %854
        %858 = vset.pattern.permute.xlu0 0
        %859 = vperm.xlu0 %858, %v845
        %v860 = vpop.permute.xlu0 %859
        %863 = vset.pattern.permute.xlu0 0
        %864 = vperm.xlu0 %863, %v846
        %v865 = vpop.permute.xlu0 %864
        %868 = vset.pattern.permute.xlu0 0
        %869 = vperm.xlu0 %868, %v847
        %v870 = vpop.permute.xlu0 %869
        %873 = vset.pattern.permute.xlu0 0
        %874 = vperm.xlu0 %873, %v848
        %v875 = vpop.permute.xlu0 %874
        %878 = vset.pattern.permute.xlu0 0
        %879 = vperm.xlu0 %878, %v849
        %v880 = vpop.permute.xlu0 %879
        %883 = vset.pattern.permute.xlu0 0
        %884 = vperm.xlu0 %883, %v850
        %v885 = vpop.permute.xlu0 %884
        %888 = vset.pattern.permute.xlu0 0
        %889 = vperm.xlu0 %888, %v851
        %v890 = vpop.permute.xlu0 %889
        %vm892 = vcmask 261120
        %v894 = vsel %vm892, %v714, 0
        %v897 = vsel %vm892, %v717, 0
        %v900 = vsel %vm892, %v720, 0
        %v903 = vsel %vm892, %v723, 0
        %v906 = vsel %vm892, %v726, 0
        %v909 = vsel %vm892, %v729, 0
        %v912 = vsel %vm892, %v732, 0
        %v915 = vsel %vm892, %v735, 0
        %917 = vmatprep.subr.mxu0 %v773
        %918 = vmatpush1.msra.mxu0 %v772
        %919 = vmatprep.subr.mxu0 %v775
        %920 = vmatpush1.msra.mxu0 %v774
        %921 = vmatprep.subr.mxu0 %v777
        %922 = vmatpush1.msra.mxu0 %v776
        %923 = vmatprep.subr.mxu0 %v779
        %924 = vmatpush1.msra.mxu0 %v778
        %925 = vmatprep.subr.mxu0 %v781
        %926 = vmatpush1.msra.mxu0 %v780
        %927 = vmatprep.subr.mxu0 %v783
        %928 = vmatpush1.msra.mxu0 %v782
        %929 = vmatprep.subr.mxu0 %v785
        %930 = vmatpush1.msra.mxu0 %v784
        %931 = vmatprep.subr.mxu0 %v787
        %932 = vmatpush1.msra.mxu0 %v786
        %933 = vmatprep.subr.mxu0 %v789
        %934 = vmatpush1.msra.mxu0 %v788
        %935 = vmatprep.subr.mxu0 %v791
        %936 = vmatpush1.msra.mxu0 %v790
        %937 = vmatprep.subr.mxu0 %v793
        %938 = vmatpush1.msra.mxu0 %v792
        %939 = vmatprep.subr.mxu0 %v795
        %940 = vmatpush1.msra.mxu0 %v794
        %941 = vmatprep.subr.mxu0 %v797
        %942 = vmatpush1.msra.mxu0 %v796
        %943 = vmatprep.subr.mxu0 %v799
        %944 = vmatpush1.msra.mxu0 %v798
        %945 = vmatprep.subr.mxu0 %v801
        %946 = vmatpush1.msra.mxu0 %v800
        %947 = vmatprep.subr.mxu0 %v803
        %948 = vmatpush1.msra.mxu0 %v802
        %949 = vmatprep.subr.mxu0 %v805
        %950 = vmatpush1.msra.mxu0 %v804
        %951 = vmatprep.subr.mxu0 %v807
        %952 = vmatpush1.msra.mxu0 %v806
        %953 = vmatprep.subr.mxu0 %v809
        %954 = vmatpush1.msra.mxu0 %v808
        %955 = vmatprep.subr.mxu0 %v811
        %956 = vmatpush1.msra.mxu0 %v810
        %957 = vmatprep.subr.mxu0 %v813
        %958 = vmatpush1.msra.mxu0 %v812
        %959 = vmatprep.subr.mxu0 %v815
        %960 = vmatpush1.msra.mxu0 %v814
        %961 = vmatprep.subr.mxu0 %v817
        %962 = vmatpush1.msra.mxu0 %v816
        %963 = vmatprep.subr.mxu0 %v819
        %964 = vmatpush1.msra.mxu0 %v818
        %965 = vmatprep.subr.mxu0 %v821
        %966 = vmatpush1.msra.mxu0 %v820
        %967 = vmatprep.subr.mxu0 %v823
        %968 = vmatpush1.msra.mxu0 %v822
        %969 = vmatprep.subr.mxu0 %v825
        %970 = vmatpush1.msra.mxu0 %v824
        %971 = vmatprep.subr.mxu0 %v827
        %972 = vmatpush1.msra.mxu0 %v826
        %973 = vmatprep.subr.mxu0 %v829
        %974 = vmatpush1.msra.mxu0 %v828
        %975 = vmatprep.subr.mxu0 %v831
        %976 = vmatpush1.msra.mxu0 %v830
        %977 = vmatprep.subr.mxu0 %v833
        %978 = vmatpush1.msra.mxu0 %v832
        %979 = vmatprep.subr.mxu0 %v835
        %980 = vmatpush1.msra.mxu0 %v834
        %981 = vmatprep.mubr.f32.mxu0 %v713
        %982 = vmatmul.mubr.f32.gmra.mrb[0].mxu0 %v712
        %v983 = vpop.f32.mrb[0].mxu0
        %v984 = vadd.f32 %v855, %v983
        %v985 = vpop.f32.mrb[0].mxu0
        %v986 = vadd.f32 %v855, %v985
        %987 = vmatprep.mubr.f32.mxu0 %v716
        %988 = vmatmul.mubr.f32.gmra.mrb[0].mxu0 %v715
        %v989 = vpop.f32.mrb[0].mxu0
        %v990 = vadd.f32 %v860, %v989
        %v991 = vpop.f32.mrb[0].mxu0
        %v992 = vadd.f32 %v860, %v991
        %993 = vmatprep.mubr.f32.mxu0 %v719
        %994 = vmatmul.mubr.f32.gmra.mrb[0].mxu0 %v718
        %v995 = vpop.f32.mrb[0].mxu0
        %v996 = vadd.f32 %v865, %v995
        %v997 = vpop.f32.mrb[0].mxu0
        %v998 = vadd.f32 %v865, %v997
        %999 = vmatprep.mubr.f32.mxu0 %v722
        %1000 = vmatmul.mubr.f32.gmra.mrb[0].mxu0 %v721
        %v1001 = vpop.f32.mrb[0].mxu0
        %v1002 = vadd.f32 %v870, %v1001
        %v1003 = vpop.f32.mrb[0].mxu0
        %v1004 = vadd.f32 %v870, %v1003
        %1005 = vmatprep.mubr.f32.mxu0 %v725
        %1006 = vmatmul.mubr.f32.gmra.mrb[0].mxu0 %v724
        %v1007 = vpop.f32.mrb[0].mxu0
        %v1008 = vadd.f32 %v875, %v1007
        %v1009 = vpop.f32.mrb[0].mxu0
        %v1010 = vadd.f32 %v875, %v1009
        %1011 = vmatprep.mubr.f32.mxu0 %v728
        %1012 = vmatmul.mubr.f32.gmra.mrb[0].mxu0 %v727
        %v1013 = vpop.f32.mrb[0].mxu0
        %v1014 = vadd.f32 %v880, %v1013
        %v1015 = vpop.f32.mrb[0].mxu0
        %v1016 = vadd.f32 %v880, %v1015
        %1017 = vmatprep.mubr.f32.mxu0 %v731
        %1018 = vmatmul.mubr.f32.gmra.mrb[0].mxu0 %v730
        %v1019 = vpop.f32.mrb[0].mxu0
        %v1020 = vadd.f32 %v885, %v1019
        %v1021 = vpop.f32.mrb[0].mxu0
        %v1022 = vadd.f32 %v885, %v1021
        %1023 = vmatprep.mubr.f32.mxu0 %v734
        %1024 = vmatmul.mubr.f32.gmra.mrb[0].mxu0 %v733
        %v1025 = vpop.f32.mrb[0].mxu0
        %v1026 = vadd.f32 %v890, %v1025
        %v1027 = vpop.f32.mrb[0].mxu0
        %v1028 = vadd.f32 %v890, %v1027
        %1029 = vdwg.mxu0
        %1030 = vmatprep.subr.mxu0 %v837
        %1031 = vmatpush1.msra.mxu0 %v836
        %1032 = vmatprep.subr.mxu0 %v839
        %1033 = vmatpush1.msra.mxu0 %v838
        %1034 = vmatprep.subr.mxu0 %v841
        %1035 = vmatpush1.msra.mxu0 %v840
        %1036 = vmatprep.subr.mxu0 %v843
        %1037 = vmatpush1.msra.mxu0 %v842
        %1038 = vmatprep.subr.mxu0 0.0
        %1039 = vmatpush1.msra.mxu0 0.0
        %1040 = vmatprep.subr.mxu0 0.0
        %1041 = vmatpush1.msra.mxu0 0.0
        %1042 = vmatprep.subr.mxu0 0.0
        %1043 = vmatpush1.msra.mxu0 0.0
        %1044 = vmatprep.subr.mxu0 0.0
        %1045 = vmatpush1.msra.mxu0 0.0
        %1046 = vmatprep.subr.mxu0 0.0
        %1047 = vmatpush1.msra.mxu0 0.0
        %1048 = vmatprep.subr.mxu0 0.0
        %1049 = vmatpush1.msra.mxu0 0.0
        %1050 = vmatprep.subr.mxu0 0.0
        %1051 = vmatpush1.msra.mxu0 0.0
        %1052 = vmatprep.subr.mxu0 0.0
        %1053 = vmatpush1.msra.mxu0 0.0
        %1054 = vmatprep.subr.mxu0 0.0
        %1055 = vmatpush1.msra.mxu0 0.0
        %1056 = vmatprep.subr.mxu0 0.0
        %1057 = vmatpush1.msra.mxu0 0.0
        %1058 = vmatprep.subr.mxu0 0.0
        %1059 = vmatpush1.msra.mxu0 0.0
        %1060 = vmatprep.subr.mxu0 0.0
        %1061 = vmatpush1.msra.mxu0 0.0
        %1062 = vmatprep.subr.mxu0 0.0
        %1063 = vmatpush1.msra.mxu0 0.0
        %1064 = vmatprep.subr.mxu0 0.0
        %1065 = vmatpush1.msra.mxu0 0.0
        %1066 = vmatprep.subr.mxu0 0.0
        %1067 = vmatpush1.msra.mxu0 0.0
        %1068 = vmatprep.subr.mxu0 0.0
        %1069 = vmatpush1.msra.mxu0 0.0
        %1070 = vmatprep.subr.mxu0 0.0
        %1071 = vmatpush1.msra.mxu0 0.0
        %1072 = vmatprep.subr.mxu0 0.0
        %1073 = vmatpush1.msra.mxu0 0.0
        %1074 = vmatprep.subr.mxu0 0.0
        %1075 = vmatpush1.msra.mxu0 0.0
        %1076 = vmatprep.subr.mxu0 0.0
        %1077 = vmatpush1.msra.mxu0 0.0
        %1078 = vmatprep.subr.mxu0 0.0
        %1079 = vmatpush1.msra.mxu0 0.0
        %1080 = vmatprep.subr.mxu0 0.0
        %1081 = vmatpush1.msra.mxu0 0.0
        %1082 = vmatprep.subr.mxu0 0.0
        %1083 = vmatpush1.msra.mxu0 0.0
        %1084 = vmatprep.subr.mxu0 0.0
        %1085 = vmatpush1.msra.mxu0 0.0
        %1086 = vmatprep.subr.mxu0 0.0
        %1087 = vmatpush1.msra.mxu0 0.0
        %1088 = vmatprep.subr.mxu0 0.0
        %1089 = vmatpush1.msra.mxu0 0.0
        %1090 = vmatprep.subr.mxu0 0.0
        %1091 = vmatpush1.msra.mxu0 0.0
        %1092 = vmatprep.subr.mxu0 0.0
        %1093 = vmatpush1.msra.mxu0 0.0
        %1094 = vmatprep.mubr.f32.mxu0 0.0
        %1095 = vmatmul.mubr.f32.gmra.mrb[0].mxu0 %v894
        %v1096 = vpop.f32.mrb[0].mxu0
        %v1097 = vadd.f32 %v984, %v1096
        %v1098 = vpop.f32.mrb[0].mxu0
        %v1099 = vadd.f32 %v986, %v1098
        %1100 = vmatprep.mubr.f32.mxu0 0.0
        %1101 = vmatmul.mubr.f32.gmra.mrb[0].mxu0 %v897
        %v1102 = vpop.f32.mrb[0].mxu0
        %v1103 = vadd.f32 %v990, %v1102
        %v1104 = vpop.f32.mrb[0].mxu0
        %v1105 = vadd.f32 %v992, %v1104
        %1106 = vmatprep.mubr.f32.mxu0 0.0
        %1107 = vmatmul.mubr.f32.gmra.mrb[0].mxu0 %v900
        %v1108 = vpop.f32.mrb[0].mxu0
        %v1109 = vadd.f32 %v996, %v1108
        %v1110 = vpop.f32.mrb[0].mxu0
        %v1111 = vadd.f32 %v998, %v1110
        %1112 = vmatprep.mubr.f32.mxu0 0.0
        %1113 = vmatmul.mubr.f32.gmra.mrb[0].mxu0 %v903
        %v1114 = vpop.f32.mrb[0].mxu0
        %v1115 = vadd.f32 %v1002, %v1114
        %v1116 = vpop.f32.mrb[0].mxu0
        %v1117 = vadd.f32 %v1004, %v1116
        %1118 = vmatprep.mubr.f32.mxu0 0.0
        %1119 = vmatmul.mubr.f32.gmra.mrb[0].mxu0 %v906
        %v1120 = vpop.f32.mrb[0].mxu0
        %v1121 = vadd.f32 %v1008, %v1120
        %v1122 = vpop.f32.mrb[0].mxu0
        %v1123 = vadd.f32 %v1010, %v1122
        %1124 = vmatprep.mubr.f32.mxu0 0.0
        %1125 = vmatmul.mubr.f32.gmra.mrb[0].mxu0 %v909
        %v1126 = vpop.f32.mrb[0].mxu0
        %v1127 = vadd.f32 %v1014, %v1126
        %v1128 = vpop.f32.mrb[0].mxu0
        %v1129 = vadd.f32 %v1016, %v1128
        %1130 = vmatprep.mubr.f32.mxu0 0.0
        %1131 = vmatmul.mubr.f32.gmra.mrb[0].mxu0 %v912
        %v1132 = vpop.f32.mrb[0].mxu0
        %v1133 = vadd.f32 %v1020, %v1132
        %v1134 = vpop.f32.mrb[0].mxu0
        %v1135 = vadd.f32 %v1022, %v1134
        %1136 = vmatprep.mubr.f32.mxu0 0.0
        %1137 = vmatmul.mubr.f32.gmra.mrb[0].mxu0 %v915
        %v1138 = vpop.f32.mrb[0].mxu0
        %v1139 = vadd.f32 %v1026, %v1138
        %v1140 = vpop.f32.mrb[0].mxu0
        %v1141 = vadd.f32 %v1028, %v1140
        %1142 = vdwg.mxu0
        %v1143 = vmax.f32 %v1097, 0.0
        %v1144 = vmax.f32 %v1099, 0.0
        %v1145 = vmax.f32 %v1103, 0.0
        %v1146 = vmax.f32 %v1105, 0.0
        %v1147 = vmax.f32 %v1109, 0.0
        %v1148 = vmax.f32 %v1111, 0.0
        %v1149 = vmax.f32 %v1115, 0.0
        %v1150 = vmax.f32 %v1117, 0.0
        %v1151 = vmax.f32 %v1121, 0.0
        %v1152 = vmax.f32 %v1123, 0.0
        %v1153 = vmax.f32 %v1127, 0.0
        %v1154 = vmax.f32 %v1129, 0.0
        %v1155 = vmax.f32 %v1133, 0.0
        %v1156 = vmax.f32 %v1135, 0.0
        %v1157 = vmax.f32 %v1139, 0.0
        %v1158 = vmax.f32 %v1141, 0.0
        %v1159 = vld [vmem:[%s3] sm:$0xff]
        %v1160 = vld [vmem:[%s3 + $0x8] sm:$0xff]
        %vm1161 = vcmask 523264
        %v1163 = vsel %vm1161, %v1159, 0
        %v1166 = vsel %vm1161, %v1160, 0
        %1168 = vmatprep.subr.mxu0 %v1144
        %1169 = vmatpush1.msra.mxu0 %v1143
        %1170 = vmatprep.subr.mxu0 %v1146
        %1171 = vmatpush1.msra.mxu0 %v1145
        %1172 = vmatprep.subr.mxu0 %v1148
        %1173 = vmatpush1.msra.mxu0 %v1147
        %1174 = vmatprep.subr.mxu0 %v1150
        %1175 = vmatpush1.msra.mxu0 %v1149
        %1176 = vmatprep.subr.mxu0 %v1152
        %1177 = vmatpush1.msra.mxu0 %v1151
        %1178 = vmatprep.subr.mxu0 %v1154
        %1179 = vmatpush1.msra.mxu0 %v1153
        %1180 = vmatprep.subr.mxu0 %v1156
        %1181 = vmatpush1.msra.mxu0 %v1155
        %1182 = vmatprep.subr.mxu0 %v1158
        %1183 = vmatpush1.msra.mxu0 %v1157
        %1184 = vmatprep.subr.mxu0 0.0
        %1185 = vmatpush1.msra.mxu0 0.0
        %1186 = vmatprep.subr.mxu0 0.0
        %1187 = vmatpush1.msra.mxu0 0.0
        %1188 = vmatprep.subr.mxu0 0.0
        %1189 = vmatpush1.msra.mxu0 0.0
        %1190 = vmatprep.subr.mxu0 0.0
        %1191 = vmatpush1.msra.mxu0 0.0
        %1192 = vmatprep.subr.mxu0 0.0
        %1193 = vmatpush1.msra.mxu0 0.0
        %1194 = vmatprep.subr.mxu0 0.0
        %1195 = vmatpush1.msra.mxu0 0.0
        %1196 = vmatprep.subr.mxu0 0.0
        %1197 = vmatpush1.msra.mxu0 0.0
        %1198 = vmatprep.subr.mxu0 0.0
        %1199 = vmatpush1.msra.mxu0 0.0
        %1200 = vmatprep.subr.mxu0 0.0
        %1201 = vmatpush1.msra.mxu0 0.0
        %1202 = vmatprep.subr.mxu0 0.0
        %1203 = vmatpush1.msra.mxu0 0.0
        %1204 = vmatprep.subr.mxu0 0.0
        %1205 = vmatpush1.msra.mxu0 0.0
        %1206 = vmatprep.subr.mxu0 0.0
        %1207 = vmatpush1.msra.mxu0 0.0
        %1208 = vmatprep.subr.mxu0 0.0
        %1209 = vmatpush1.msra.mxu0 0.0
        %1210 = vmatprep.subr.mxu0 0.0
        %1211 = vmatpush1.msra.mxu0 0.0
        %1212 = vmatprep.subr.mxu0 0.0
        %1213 = vmatpush1.msra.mxu0 0.0
        %1214 = vmatprep.subr.mxu0 0.0
        %1215 = vmatpush1.msra.mxu0 0.0
        %1216 = vmatprep.subr.mxu0 0.0
        %1217 = vmatpush1.msra.mxu0 0.0
        %1218 = vmatprep.subr.mxu0 0.0
        %1219 = vmatpush1.msra.mxu0 0.0
        %1220 = vmatprep.subr.mxu0 0.0
        %1221 = vmatpush1.msra.mxu0 0.0
        %1222 = vmatprep.subr.mxu0 0.0
        %1223 = vmatpush1.msra.mxu0 0.0
        %1224 = vmatprep.subr.mxu0 0.0
        %1225 = vmatpush1.msra.mxu0 0.0
        %1226 = vmatprep.subr.mxu0 0.0
        %1227 = vmatpush1.msra.mxu0 0.0
        %1228 = vmatprep.subr.mxu0 0.0
        %1229 = vmatpush1.msra.mxu0 0.0
        %1230 = vmatprep.subr.mxu0 0.0
        %1231 = vmatpush1.msra.mxu0 0.0
        %1232 = vmatprep.mubr.f32.mxu0 0.0
        %1233 = vmatmul.mubr.f32.gmra.mrb[0].mxu0 %v1163
        %v1234 = vpop.f32.mrb[0].mxu0
        %v1235 = vadd.f32 0.0, %v1234
        %v1236 = vpop.f32.mrb[0].mxu0
        %v1237 = vadd.f32 0.0, %v1236
        %1238 = vmatprep.mubr.f32.mxu0 0.0
        %1239 = vmatmul.mubr.f32.gmra.mrb[0].mxu0 %v1166
        %v1240 = vpop.f32.mrb[0].mxu0
        %v1241 = vadd.f32 0.0, %v1240
        %v1242 = vpop.f32.mrb[0].mxu0
        %v1243 = vadd.f32 0.0, %v1242
        %1244 = vdwg.mxu0
        %v1245 = vadd.f32 %v689, %v1235
        %v1246 = vadd.f32 %v689, %v1237
        %v1247 = vadd.f32 %v694, %v1241
        %v1248 = vadd.f32 %v694, %v1243
        %s1249 = scalar_lea.vmem %s1, 96
        %v1250 = vld [vmem:[%s1249] sm:$0xff]
        %v1251 = vld [vmem:[%s1249 + $0x8] sm:$0xf]
        %v1252 = vld [vmem:[%s1249 + $0xc] sm:$0xff]
        %v1253 = vld [vmem:[%s1249 + $0x14] sm:$0xf]
        %v1254 = vld [vmem:[%s1249 + $0x18] sm:$0xff]
        %v1255 = vld [vmem:[%s1249 + $0x20] sm:$0xf]
        %v1256 = vld [vmem:[%s1249 + $0x24] sm:$0xff]
        %v1257 = vld [vmem:[%s1249 + $0x2c] sm:$0xf]
        %v1258 = vld [vmem:[%s1249 + $0x30] sm:$0xff]
        %v1259 = vld [vmem:[%s1249 + $0x38] sm:$0xf]
        %v1260 = vld [vmem:[%s1249 + $0x3c] sm:$0xff]
        %v1261 = vld [vmem:[%s1249 + $0x44] sm:$0xf]
        %v1262 = vld [vmem:[%s1249 + $0x48] sm:$0xff]
        %v1263 = vld [vmem:[%s1249 + $0x50] sm:$0xf]
        %v1264 = vld [vmem:[%s1249 + $0x54] sm:$0xff]
        %v1265 = vld [vmem:[%s1249 + $0x5c] sm:$0xf]
        %v1266 = vunpack.c.l.bf16 %v1250
        %v1267 = vunpack.c.h.bf16 %v1250
        %v1268 = vunpack.c.l.bf16 %v1251
        %v1269 = vunpack.c.l.bf16 %v1252
        %v1270 = vunpack.c.h.bf16 %v1252
        %v1271 = vunpack.c.l.bf16 %v1253
        %v1272 = vunpack.c.l.bf16 %v1254
        %v1273 = vunpack.c.h.bf16 %v1254
        %v1274 = vunpack.c.l.bf16 %v1255
        %v1275 = vunpack.c.l.bf16 %v1256
        %v1276 = vunpack.c.h.bf16 %v1256
        %v1277 = vunpack.c.l.bf16 %v1257
        %v1278 = vunpack.c.l.bf16 %v1258
        %v1279 = vunpack.c.h.bf16 %v1258
        %v1280 = vunpack.c.l.bf16 %v1259
        %v1281 = vunpack.c.l.bf16 %v1260
        %v1282 = vunpack.c.h.bf16 %v1260
        %v1283 = vunpack.c.l.bf16 %v1261
        %v1284 = vunpack.c.l.bf16 %v1262
        %v1285 = vunpack.c.h.bf16 %v1262
        %v1286 = vunpack.c.l.bf16 %v1263
        %v1287 = vunpack.c.l.bf16 %v1264
        %v1288 = vunpack.c.h.bf16 %v1264
        %v1289 = vunpack.c.l.bf16 %v1265
        %s1290 = scalar_lea.vmem %s658, 288 [#allocation2]
        %v1291 = vld [vmem:[%s1290] sm:$0xff]
        %v1292 = vld [vmem:[%s1290 + $0x8] sm:$0xff]
        %v1293 = vld [vmem:[%s1290 + $0x10] sm:$0xff]
        %v1294 = vld [vmem:[%s1290 + $0x18] sm:$0xff]
        %v1295 = vld [vmem:[%s1290 + $0x20] sm:$0xff]
        %v1296 = vld [vmem:[%s1290 + $0x28] sm:$0xff]
        %v1297 = vld [vmem:[%s1290 + $0x30] sm:$0xff]
        %v1298 = vld [vmem:[%s1290 + $0x38] sm:$0xff]
        %v1299 = vld [vmem:[%s1290 + $0x40] sm:$0xff]
        %v1300 = vld [vmem:[%s1290 + $0x48] sm:$0xff]
        %v1301 = vld [vmem:[%s1290 + $0x50] sm:$0xff]
        %v1302 = vld [vmem:[%s1290 + $0x58] sm:$0xff]
        %v1303 = vld [vmem:[%s1290 + $0x60] sm:$0xff]
        %v1304 = vld [vmem:[%s1290 + $0x68] sm:$0xff]
        %v1305 = vld [vmem:[%s1290 + $0x70] sm:$0xff]
        %v1306 = vld [vmem:[%s1290 + $0x78] sm:$0xff]
        %v1307 = vld [vmem:[%s1290 + $0x80] sm:$0xff]
        %v1308 = vld [vmem:[%s1290 + $0x88] sm:$0xff]
        %v1309 = vld [vmem:[%s1290 + $0x90] sm:$0xff]
        %v1310 = vld [vmem:[%s1290 + $0x98] sm:$0xff]
        %v1311 = vld [vmem:[%s1290 + $0xa0] sm:$0xff]
        %v1312 = vld [vmem:[%s1290 + $0xa8] sm:$0xff]
        %v1313 = vld [vmem:[%s1290 + $0xb0] sm:$0xff]
        %v1314 = vld [vmem:[%s1290 + $0xb8] sm:$0xff]
        %v1315 = vld [vmem:[%s1290 + $0xc0] sm:$0xff]
        %v1316 = vld [vmem:[%s1290 + $0xc8] sm:$0xff]
        %v1317 = vld [vmem:[%s1290 + $0xd0] sm:$0xff]
        %v1318 = vld [vmem:[%s1290 + $0xd8] sm:$0xff]
        %v1319 = vld [vmem:[%s1290 + $0xe0] sm:$0xff]
        %v1320 = vld [vmem:[%s1290 + $0xe8] sm:$0xff]
        %v1321 = vld [vmem:[%s1290 + $0xf0] sm:$0xff]
        %v1322 = vld [vmem:[%s1290 + $0xf8] sm:$0xff]
        %v1323 = vld [vmem:[%s1290 + $0x100] sm:$0xff]
        %v1324 = vld [vmem:[%s1290 + $0x108] sm:$0xff]
        %v1325 = vld [vmem:[%s1290 + $0x110] sm:$0xff]
        %v1326 = vld [vmem:[%s1290 + $0x118] sm:$0xff]
        %v1327 = vunpack.c.l.bf16 %v1291
        %v1328 = vunpack.c.h.bf16 %v1291
        %v1329 = vunpack.c.l.bf16 %v1292
        %v1330 = vunpack.c.h.bf16 %v1292
        %v1331 = vunpack.c.l.bf16 %v1293
        %v1332 = vunpack.c.h.bf16 %v1293
        %v1333 = vunpack.c.l.bf16 %v1294
        %v1334 = vunpack.c.h.bf16 %v1294
        %v1335 = vunpack.c.l.bf16 %v1295
        %v1336 = vunpack.c.h.bf16 %v1295
        %v1337 = vunpack.c.l.bf16 %v1296
        %v1338 = vunpack.c.h.bf16 %v1296
        %v1339 = vunpack.c.l.bf16 %v1297
        %v1340 = vunpack.c.h.bf16 %v1297
        %v1341 = vunpack.c.l.bf16 %v1298
        %v1342 = vunpack.c.h.bf16 %v1298
        %v1343 = vunpack.c.l.bf16 %v1299
        %v1344 = vunpack.c.h.bf16 %v1299
        %v1345 = vunpack.c.l.bf16 %v1300
        %v1346 = vunpack.c.h.bf16 %v1300
        %v1347 = vunpack.c.l.bf16 %v1301
        %v1348 = vunpack.c.h.bf16 %v1301
        %v1349 = vunpack.c.l.bf16 %v1302
        %v1350 = vunpack.c.h.bf16 %v1302
        %v1351 = vunpack.c.l.bf16 %v1303
        %v1352 = vunpack.c.h.bf16 %v1303
        %v1353 = vunpack.c.l.bf16 %v1304
        %v1354 = vunpack.c.h.bf16 %v1304
        %v1355 = vunpack.c.l.bf16 %v1305
        %v1356 = vunpack.c.h.bf16 %v1305
        %v1357 = vunpack.c.l.bf16 %v1306
        %v1358 = vunpack.c.h.bf16 %v1306
        %v1359 = vunpack.c.l.bf16 %v1307
        %v1360 = vunpack.c.h.bf16 %v1307
        %v1361 = vunpack.c.l.bf16 %v1308
        %v1362 = vunpack.c.h.bf16 %v1308
        %v1363 = vunpack.c.l.bf16 %v1309
        %v1364 = vunpack.c.h.bf16 %v1309
        %v1365 = vunpack.c.l.bf16 %v1310
        %v1366 = vunpack.c.h.bf16 %v1310
        %v1367 = vunpack.c.l.bf16 %v1311
        %v1368 = vunpack.c.h.bf16 %v1311
        %v1369 = vunpack.c.l.bf16 %v1312
        %v1370 = vunpack.c.h.bf16 %v1312
        %v1371 = vunpack.c.l.bf16 %v1313
        %v1372 = vunpack.c.h.bf16 %v1313
        %v1373 = vunpack.c.l.bf16 %v1314
        %v1374 = vunpack.c.h.bf16 %v1314
        %v1375 = vunpack.c.l.bf16 %v1315
        %v1376 = vunpack.c.h.bf16 %v1315
        %v1377 = vunpack.c.l.bf16 %v1316
        %v1378 = vunpack.c.h.bf16 %v1316
        %v1379 = vunpack.c.l.bf16 %v1317
        %v1380 = vunpack.c.h.bf16 %v1317
        %v1381 = vunpack.c.l.bf16 %v1318
        %v1382 = vunpack.c.h.bf16 %v1318
        %v1383 = vunpack.c.l.bf16 %v1319
        %v1384 = vunpack.c.h.bf16 %v1319
        %v1385 = vunpack.c.l.bf16 %v1320
        %v1386 = vunpack.c.h.bf16 %v1320
        %v1387 = vunpack.c.l.bf16 %v1321
        %v1388 = vunpack.c.h.bf16 %v1321
        %v1389 = vunpack.c.l.bf16 %v1322
        %v1390 = vunpack.c.h.bf16 %v1322
        %v1391 = vunpack.c.l.bf16 %v1323
        %v1392 = vunpack.c.h.bf16 %v1323
        %v1393 = vunpack.c.l.bf16 %v1324
        %v1394 = vunpack.c.h.bf16 %v1324
        %v1395 = vunpack.c.l.bf16 %v1325
        %v1396 = vunpack.c.h.bf16 %v1325
        %v1397 = vunpack.c.l.bf16 %v1326
        %v1398 = vunpack.c.h.bf16 %v1326
        %s1399 = scalar_lea.vmem %s2, 64
        %v1400 = vld [vmem:[%s1399] sm:$0xff]
        %v1401 = vld [vmem:[%s1399 + $0x8] sm:$0xff]
        %v1402 = vld [vmem:[%s1399 + $0x10] sm:$0xff]
        %v1403 = vld [vmem:[%s1399 + $0x18] sm:$0xff]
        %v1404 = vld [vmem:[%s1399 + $0x20] sm:$0xff]
        %v1405 = vld [vmem:[%s1399 + $0x28] sm:$0xff]
        %v1406 = vld [vmem:[%s1399 + $0x30] sm:$0xff]
        %v1407 = vld [vmem:[%s1399 + $0x38] sm:$0xff]
        %1409 = vset.pattern.permute.xlu0 0
        %1410 = vperm.xlu0 %1409, %v1400
        %v1411 = vpop.permute.xlu0 %1410
        %1414 = vset.pattern.permute.xlu0 0
        %1415 = vperm.xlu0 %1414, %v1401
        %v1416 = vpop.permute.xlu0 %1415
        %1419 = vset.pattern.permute.xlu0 0
        %1420 = vperm.xlu0 %1419, %v1402
        %v1421 = vpop.permute.xlu0 %1420
        %1424 = vset.pattern.permute.xlu0 0
        %1425 = vperm.xlu0 %1424, %v1403
        %v1426 = vpop.permute.xlu0 %1425
        %1429 = vset.pattern.permute.xlu0 0
        %1430 = vperm.xlu0 %1429, %v1404
        %v1431 = vpop.permute.xlu0 %1430
        %1434 = vset.pattern.permute.xlu0 0
        %1435 = vperm.xlu0 %1434, %v1405
        %v1436 = vpop.permute.xlu0 %1435
        %1439 = vset.pattern.permute.xlu0 0
        %1440 = vperm.xlu0 %1439, %v1406
        %v1441 = vpop.permute.xlu0 %1440
        %1444 = vset.pattern.permute.xlu0 0
        %1445 = vperm.xlu0 %1444, %v1407
        %v1446 = vpop.permute.xlu0 %1445
        %v1449 = vsel %vm892, %v1268, 0
        %v1452 = vsel %vm892, %v1271, 0
        %v1455 = vsel %vm892, %v1274, 0
        %v1458 = vsel %vm892, %v1277, 0
        %v1461 = vsel %vm892, %v1280, 0
        %v1464 = vsel %vm892, %v1283, 0
        %v1467 = vsel %vm892, %v1286, 0
        %v1470 = vsel %vm892, %v1289, 0
        %1472 = vmatprep.subr.mxu0 %v1328
        %1473 = vmatpush1.msra.mxu0 %v1327
        %1474 = vmatprep.subr.mxu0 %v1330
        %1475 = vmatpush1.msra.mxu0 %v1329
        %1476 = vmatprep.subr.mxu0 %v1332
        %1477 = vmatpush1.msra.mxu0 %v1331
        %1478 = vmatprep.subr.mxu0 %v1334
        %1479 = vmatpush1.msra.mxu0 %v1333
        %1480 = vmatprep.subr.mxu0 %v1336
        %1481 = vmatpush1.msra.mxu0 %v1335
        %1482 = vmatprep.subr.mxu0 %v1338
        %1483 = vmatpush1.msra.mxu0 %v1337
        %1484 = vmatprep.subr.mxu0 %v1340
        %1485 = vmatpush1.msra.mxu0 %v1339
        %1486 = vmatprep.subr.mxu0 %v1342
        %1487 = vmatpush1.msra.mxu0 %v1341
        %1488 = vmatprep.subr.mxu0 %v1344
        %1489 = vmatpush1.msra.mxu0 %v1343
        %1490 = vmatprep.subr.mxu0 %v1346
        %1491 = vmatpush1.msra.mxu0 %v1345
        %1492 = vmatprep.subr.mxu0 %v1348
        %1493 = vmatpush1.msra.mxu0 %v1347
        %1494 = vmatprep.subr.mxu0 %v1350
        %1495 = vmatpush1.msra.mxu0 %v1349
        %1496 = vmatprep.subr.mxu0 %v1352
        %1497 = vmatpush1.msra.mxu0 %v1351
        %1498 = vmatprep.subr.mxu0 %v1354
        %1499 = vmatpush1.msra.mxu0 %v1353
        %1500 = vmatprep.subr.mxu0 %v1356
        %1501 = vmatpush1.msra.mxu0 %v1355
        %1502 = vmatprep.subr.mxu0 %v1358
        %1503 = vmatpush1.msra.mxu0 %v1357
        %1504 = vmatprep.subr.mxu0 %v1360
        %1505 = vmatpush1.msra.mxu0 %v1359
        %1506 = vmatprep.subr.mxu0 %v1362
        %1507 = vmatpush1.msra.mxu0 %v1361
        %1508 = vmatprep.subr.mxu0 %v1364
        %1509 = vmatpush1.msra.mxu0 %v1363
        %1510 = vmatprep.subr.mxu0 %v1366
        %1511 = vmatpush1.msra.mxu0 %v1365
        %1512 = vmatprep.subr.mxu0 %v1368
        %1513 = vmatpush1.msra.mxu0 %v1367
        %1514 = vmatprep.subr.mxu0 %v1370
        %1515 = vmatpush1.msra.mxu0 %v1369
        %1516 = vmatprep.subr.mxu0 %v1372
        %1517 = vmatpush1.msra.mxu0 %v1371
        %1518 = vmatprep.subr.mxu0 %v1374
        %1519 = vmatpush1.msra.mxu0 %v1373
        %1520 = vmatprep.subr.mxu0 %v1376
        %1521 = vmatpush1.msra.mxu0 %v1375
        %1522 = vmatprep.subr.mxu0 %v1378
        %1523 = vmatpush1.msra.mxu0 %v1377
        %1524 = vmatprep.subr.mxu0 %v1380
        %1525 = vmatpush1.msra.mxu0 %v1379
        %1526 = vmatprep.subr.mxu0 %v1382
        %1527 = vmatpush1.msra.mxu0 %v1381
        %1528 = vmatprep.subr.mxu0 %v1384
        %1529 = vmatpush1.msra.mxu0 %v1383
        %1530 = vmatprep.subr.mxu0 %v1386
        %1531 = vmatpush1.msra.mxu0 %v1385
        %1532 = vmatprep.subr.mxu0 %v1388
        %1533 = vmatpush1.msra.mxu0 %v1387
        %1534 = vmatprep.subr.mxu0 %v1390
        %1535 = vmatpush1.msra.mxu0 %v1389
        %1536 = vmatprep.mubr.f32.mxu0 %v1267
        %1537 = vmatmul.mubr.f32.gmra.mrb[0].mxu0 %v1266
        %v1538 = vpop.f32.mrb[0].mxu0
        %v1539 = vadd.f32 %v1411, %v1538
        %v1540 = vpop.f32.mrb[0].mxu0
        %v1541 = vadd.f32 %v1411, %v1540
        %1542 = vmatprep.mubr.f32.mxu0 %v1270
        %1543 = vmatmul.mubr.f32.gmra.mrb[0].mxu0 %v1269
        %v1544 = vpop.f32.mrb[0].mxu0
        %v1545 = vadd.f32 %v1416, %v1544
        %v1546 = vpop.f32.mrb[0].mxu0
        %v1547 = vadd.f32 %v1416, %v1546
        %1548 = vmatprep.mubr.f32.mxu0 %v1273
        %1549 = vmatmul.mubr.f32.gmra.mrb[0].mxu0 %v1272
        %v1550 = vpop.f32.mrb[0].mxu0
        %v1551 = vadd.f32 %v1421, %v1550
        %v1552 = vpop.f32.mrb[0].mxu0
        %v1553 = vadd.f32 %v1421, %v1552
        %1554 = vmatprep.mubr.f32.mxu0 %v1276
        %1555 = vmatmul.mubr.f32.gmra.mrb[0].mxu0 %v1275
        %v1556 = vpop.f32.mrb[0].mxu0
        %v1557 = vadd.f32 %v1426, %v1556
        %v1558 = vpop.f32.mrb[0].mxu0
        %v1559 = vadd.f32 %v1426, %v1558
        %1560 = vmatprep.mubr.f32.mxu0 %v1279
        %1561 = vmatmul.mubr.f32.gmra.mrb[0].mxu0 %v1278
        %v1562 = vpop.f32.mrb[0].mxu0
        %v1563 = vadd.f32 %v1431, %v1562
        %v1564 = vpop.f32.mrb[0].mxu0
        %v1565 = vadd.f32 %v1431, %v1564
        %1566 = vmatprep.mubr.f32.mxu0 %v1282
        %1567 = vmatmul.mubr.f32.gmra.mrb[0].mxu0 %v1281
        %v1568 = vpop.f32.mrb[0].mxu0
        %v1569 = vadd.f32 %v1436, %v1568
        %v1570 = vpop.f32.mrb[0].mxu0
        %v1571 = vadd.f32 %v1436, %v1570
        %1572 = vmatprep.mubr.f32.mxu0 %v1285
        %1573 = vmatmul.mubr.f32.gmra.mrb[0].mxu0 %v1284
        %v1574 = vpop.f32.mrb[0].mxu0
        %v1575 = vadd.f32 %v1441, %v1574
        %v1576 = vpop.f32.mrb[0].mxu0
        %v1577 = vadd.f32 %v1441, %v1576
        %1578 = vmatprep.mubr.f32.mxu0 %v1288
        %1579 = vmatmul.mubr.f32.gmra.mrb[0].mxu0 %v1287
        %v1580 = vpop.f32.mrb[0].mxu0
        %v1581 = vadd.f32 %v1446, %v1580
        %v1582 = vpop.f32.mrb[0].mxu0
        %v1583 = vadd.f32 %v1446, %v1582
        %1584 = vdwg.mxu0
        %1585 = vmatprep.subr.mxu0 %v1392
        %1586 = vmatpush1.msra.mxu0 %v1391
        %1587 = vmatprep.subr.mxu0 %v1394
        %1588 = vmatpush1.msra.mxu0 %v1393
        %1589 = vmatprep.subr.mxu0 %v1396
        %1590 = vmatpush1.msra.mxu0 %v1395
        %1591 = vmatprep.subr.mxu0 %v1398
        %1592 = vmatpush1.msra.mxu0 %v1397
        %1593 = vmatprep.subr.mxu0 0.0
        %1594 = vmatpush1.msra.mxu0 0.0
        %1595 = vmatprep.subr.mxu0 0.0
        %1596 = vmatpush1.msra.mxu0 0.0
        %1597 = vmatprep.subr.mxu0 0.0
        %1598 = vmatpush1.msra.mxu0 0.0
        %1599 = vmatprep.subr.mxu0 0.0
        %1600 = vmatpush1.msra.mxu0 0.0
        %1601 = vmatprep.subr.mxu0 0.0
        %1602 = vmatpush1.msra.mxu0 0.0
        %1603 = vmatprep.subr.mxu0 0.0
        %1604 = vmatpush1.msra.mxu0 0.0
        %1605 = vmatprep.subr.mxu0 0.0
        %1606 = vmatpush1.msra.mxu0 0.0
        %1607 = vmatprep.subr.mxu0 0.0
        %1608 = vmatpush1.msra.mxu0 0.0
        %1609 = vmatprep.subr.mxu0 0.0
        %1610 = vmatpush1.msra.mxu0 0.0
        %1611 = vmatprep.subr.mxu0 0.0
        %1612 = vmatpush1.msra.mxu0 0.0
        %1613 = vmatprep.subr.mxu0 0.0
        %1614 = vmatpush1.msra.mxu0 0.0
        %1615 = vmatprep.subr.mxu0 0.0
        %1616 = vmatpush1.msra.mxu0 0.0
        %1617 = vmatprep.subr.mxu0 0.0
        %1618 = vmatpush1.msra.mxu0 0.0
        %1619 = vmatprep.subr.mxu0 0.0
        %1620 = vmatpush1.msra.mxu0 0.0
        %1621 = vmatprep.subr.mxu0 0.0
        %1622 = vmatpush1.msra.mxu0 0.0
        %1623 = vmatprep.subr.mxu0 0.0
        %1624 = vmatpush1.msra.mxu0 0.0
        %1625 = vmatprep.subr.mxu0 0.0
        %1626 = vmatpush1.msra.mxu0 0.0
        %1627 = vmatprep.subr.mxu0 0.0
        %1628 = vmatpush1.msra.mxu0 0.0
        %1629 = vmatprep.subr.mxu0 0.0
        %1630 = vmatpush1.msra.mxu0 0.0
        %1631 = vmatprep.subr.mxu0 0.0
        %1632 = vmatpush1.msra.mxu0 0.0
        %1633 = vmatprep.subr.mxu0 0.0
        %1634 = vmatpush1.msra.mxu0 0.0
        %1635 = vmatprep.subr.mxu0 0.0
        %1636 = vmatpush1.msra.mxu0 0.0
        %1637 = vmatprep.subr.mxu0 0.0
        %1638 = vmatpush1.msra.mxu0 0.0
        %1639 = vmatprep.subr.mxu0 0.0
        %1640 = vmatpush1.msra.mxu0 0.0
        %1641 = vmatprep.subr.mxu0 0.0
        %1642 = vmatpush1.msra.mxu0 0.0
        %1643 = vmatprep.subr.mxu0 0.0
        %1644 = vmatpush1.msra.mxu0 0.0
        %1645 = vmatprep.subr.mxu0 0.0
        %1646 = vmatpush1.msra.mxu0 0.0
        %1647 = vmatprep.subr.mxu0 0.0
        %1648 = vmatpush1.msra.mxu0 0.0
        %1649 = vmatprep.mubr.f32.mxu0 0.0
        %1650 = vmatmul.mubr.f32.gmra.mrb[0].mxu0 %v1449
        %v1651 = vpop.f32.mrb[0].mxu0
        %v1652 = vadd.f32 %v1539, %v1651
        %v1653 = vpop.f32.mrb[0].mxu0
        %v1654 = vadd.f32 %v1541, %v1653
        %1655 = vmatprep.mubr.f32.mxu0 0.0
        %1656 = vmatmul.mubr.f32.gmra.mrb[0].mxu0 %v1452
        %v1657 = vpop.f32.mrb[0].mxu0
        %v1658 = vadd.f32 %v1545, %v1657
        %v1659 = vpop.f32.mrb[0].mxu0
        %v1660 = vadd.f32 %v1547, %v1659
        %1661 = vmatprep.mubr.f32.mxu0 0.0
        %1662 = vmatmul.mubr.f32.gmra.mrb[0].mxu0 %v1455
        %v1663 = vpop.f32.mrb[0].mxu0
        %v1664 = vadd.f32 %v1551, %v1663
        %v1665 = vpop.f32.mrb[0].mxu0
        %v1666 = vadd.f32 %v1553, %v1665
        %1667 = vmatprep.mubr.f32.mxu0 0.0
        %1668 = vmatmul.mubr.f32.gmra.mrb[0].mxu0 %v1458
        %v1669 = vpop.f32.mrb[0].mxu0
        %v1670 = vadd.f32 %v1557, %v1669
        %v1671 = vpop.f32.mrb[0].mxu0
        %v1672 = vadd.f32 %v1559, %v1671
        %1673 = vmatprep.mubr.f32.mxu0 0.0
        %1674 = vmatmul.mubr.f32.gmra.mrb[0].mxu0 %v1461
        %v1675 = vpop.f32.mrb[0].mxu0
        %v1676 = vadd.f32 %v1563, %v1675
        %v1677 = vpop.f32.mrb[0].mxu0
        %v1678 = vadd.f32 %v1565, %v1677
        %1679 = vmatprep.mubr.f32.mxu0 0.0
        %1680 = vmatmul.mubr.f32.gmra.mrb[0].mxu0 %v1464
        %v1681 = vpop.f32.mrb[0].mxu0
        %v1682 = vadd.f32 %v1569, %v1681
        %v1683 = vpop.f32.mrb[0].mxu0
        %v1684 = vadd.f32 %v1571, %v1683
        %1685 = vmatprep.mubr.f32.mxu0 0.0
        %1686 = vmatmul.mubr.f32.gmra.mrb[0].mxu0 %v1467
        %v1687 = vpop.f32.mrb[0].mxu0
        %v1688 = vadd.f32 %v1575, %v1687
        %v1689 = vpop.f32.mrb[0].mxu0
        %v1690 = vadd.f32 %v1577, %v1689
        %1691 = vmatprep.mubr.f32.mxu0 0.0
        %1692 = vmatmul.mubr.f32.gmra.mrb[0].mxu0 %v1470
        %v1693 = vpop.f32.mrb[0].mxu0
        %v1694 = vadd.f32 %v1581, %v1693
        %v1695 = vpop.f32.mrb[0].mxu0
        %v1696 = vadd.f32 %v1583, %v1695
        %1697 = vdwg.mxu0
        %v1698 = vmax.f32 %v1652, 0.0
        %v1699 = vmax.f32 %v1654, 0.0
        %v1700 = vmax.f32 %v1658, 0.0
        %v1701 = vmax.f32 %v1660, 0.0
        %v1702 = vmax.f32 %v1664, 0.0
        %v1703 = vmax.f32 %v1666, 0.0
        %v1704 = vmax.f32 %v1670, 0.0
        %v1705 = vmax.f32 %v1672, 0.0
        %v1706 = vmax.f32 %v1676, 0.0
        %v1707 = vmax.f32 %v1678, 0.0
        %v1708 = vmax.f32 %v1682, 0.0
        %v1709 = vmax.f32 %v1684, 0.0
        %v1710 = vmax.f32 %v1688, 0.0
        %v1711 = vmax.f32 %v1690, 0.0
        %v1712 = vmax.f32 %v1694, 0.0
        %v1713 = vmax.f32 %v1696, 0.0
        %s1714 = scalar_lea.vmem %s3, 16
        %v1715 = vld [vmem:[%s1714] sm:$0xff]
        %v1716 = vld [vmem:[%s1714 + $0x8] sm:$0xff]
        %v1718 = vsel %vm1161, %v1715, 0
        %v1721 = vsel %vm1161, %v1716, 0
        %1723 = vmatprep.subr.mxu0 %v1699
        %1724 = vmatpush1.msra.mxu0 %v1698
        %1725 = vmatprep.subr.mxu0 %v1701
        %1726 = vmatpush1.msra.mxu0 %v1700
        %1727 = vmatprep.subr.mxu0 %v1703
        %1728 = vmatpush1.msra.mxu0 %v1702
        %1729 = vmatprep.subr.mxu0 %v1705
        %1730 = vmatpush1.msra.mxu0 %v1704
        %1731 = vmatprep.subr.mxu0 %v1707
        %1732 = vmatpush1.msra.mxu0 %v1706
        %1733 = vmatprep.subr.mxu0 %v1709
        %1734 = vmatpush1.msra.mxu0 %v1708
        %1735 = vmatprep.subr.mxu0 %v1711
        %1736 = vmatpush1.msra.mxu0 %v1710
        %1737 = vmatprep.subr.mxu0 %v1713
        %1738 = vmatpush1.msra.mxu0 %v1712
        %1739 = vmatprep.subr.mxu0 0.0
        %1740 = vmatpush1.msra.mxu0 0.0
        %1741 = vmatprep.subr.mxu0 0.0
        %1742 = vmatpush1.msra.mxu0 0.0
        %1743 = vmatprep.subr.mxu0 0.0
        %1744 = vmatpush1.msra.mxu0 0.0
        %1745 = vmatprep.subr.mxu0 0.0
        %1746 = vmatpush1.msra.mxu0 0.0
        %1747 = vmatprep.subr.mxu0 0.0
        %1748 = vmatpush1.msra.mxu0 0.0
        %1749 = vmatprep.subr.mxu0 0.0
        %1750 = vmatpush1.msra.mxu0 0.0
        %1751 = vmatprep.subr.mxu0 0.0
        %1752 = vmatpush1.msra.mxu0 0.0
        %1753 = vmatprep.subr.mxu0 0.0
        %1754 = vmatpush1.msra.mxu0 0.0
        %1755 = vmatprep.subr.mxu0 0.0
        %1756 = vmatpush1.msra.mxu0 0.0
        %1757 = vmatprep.subr.mxu0 0.0
        %1758 = vmatpush1.msra.mxu0 0.0
        %1759 = vmatprep.subr.mxu0 0.0
        %1760 = vmatpush1.msra.mxu0 0.0
        %1761 = vmatprep.subr.mxu0 0.0
        %1762 = vmatpush1.msra.mxu0 0.0
        %1763 = vmatprep.subr.mxu0 0.0
        %1764 = vmatpush1.msra.mxu0 0.0
        %1765 = vmatprep.subr.mxu0 0.0
        %1766 = vmatpush1.msra.mxu0 0.0
        %1767 = vmatprep.subr.mxu0 0.0
        %1768 = vmatpush1.msra.mxu0 0.0
        %1769 = vmatprep.subr.mxu0 0.0
        %1770 = vmatpush1.msra.mxu0 0.0
        %1771 = vmatprep.subr.mxu0 0.0
        %1772 = vmatpush1.msra.mxu0 0.0
        %1773 = vmatprep.subr.mxu0 0.0
        %1774 = vmatpush1.msra.mxu0 0.0
        %1775 = vmatprep.subr.mxu0 0.0
        %1776 = vmatpush1.msra.mxu0 0.0
        %1777 = vmatprep.subr.mxu0 0.0
        %1778 = vmatpush1.msra.mxu0 0.0
        %1779 = vmatprep.subr.mxu0 0.0
        %1780 = vmatpush1.msra.mxu0 0.0
        %1781 = vmatprep.subr.mxu0 0.0
        %1782 = vmatpush1.msra.mxu0 0.0
        %1783 = vmatprep.subr.mxu0 0.0
        %1784 = vmatpush1.msra.mxu0 0.0
        %1785 = vmatprep.subr.mxu0 0.0
        %1786 = vmatpush1.msra.mxu0 0.0
        %1787 = vmatprep.mubr.f32.mxu0 0.0
        %1788 = vmatmul.mubr.f32.gmra.mrb[0].mxu0 %v1718
        %v1789 = vpop.f32.mrb[0].mxu0
        %v1790 = vadd.f32 0.0, %v1789
        %v1791 = vpop.f32.mrb[0].mxu0
        %v1792 = vadd.f32 0.0, %v1791
        %1793 = vmatprep.mubr.f32.mxu0 0.0
        %1794 = vmatmul.mubr.f32.gmra.mrb[0].mxu0 %v1721
        %v1795 = vpop.f32.mrb[0].mxu0
        %v1796 = vadd.f32 0.0, %v1795
        %v1797 = vpop.f32.mrb[0].mxu0
        %v1798 = vadd.f32 0.0, %v1797
        %1799 = vdwg.mxu0
        %v1800 = vadd.f32 %v1245, %v1790
        %v1801 = vadd.f32 %v1246, %v1792
        %v1802 = vadd.f32 %v1247, %v1796
        %v1803 = vadd.f32 %v1248, %v1798
        %s1804 = scalar_lea.vmem %s1, 192
        %v1805 = vld [vmem:[%s1804] sm:$0xff]
        %v1806 = vld [vmem:[%s1804 + $0x8] sm:$0xf]
        %v1807 = vld [vmem:[%s1804 + $0xc] sm:$0xff]
        %v1808 = vld [vmem:[%s1804 + $0x14] sm:$0xf]
        %v1809 = vld [vmem:[%s1804 + $0x18] sm:$0xff]
        %v1810 = vld [vmem:[%s1804 + $0x20] sm:$0xf]
        %v1811 = vld [vmem:[%s1804 + $0x24] sm:$0xff]
        %v1812 = vld [vmem:[%s1804 + $0x2c] sm:$0xf]
        %v1813 = vld [vmem:[%s1804 + $0x30] sm:$0xff]
        %v1814 = vld [vmem:[%s1804 + $0x38] sm:$0xf]
        %v1815 = vld [vmem:[%s1804 + $0x3c] sm:$0xff]
        %v1816 = vld [vmem:[%s1804 + $0x44] sm:$0xf]
        %v1817 = vld [vmem:[%s1804 + $0x48] sm:$0xff]
        %v1818 = vld [vmem:[%s1804 + $0x50] sm:$0xf]
        %v1819 = vld [vmem:[%s1804 + $0x54] sm:$0xff]
        %v1820 = vld [vmem:[%s1804 + $0x5c] sm:$0xf]
        %v1821 = vunpack.c.l.bf16 %v1805
        %v1822 = vunpack.c.h.bf16 %v1805
        %v1823 = vunpack.c.l.bf16 %v1806
        %v1824 = vunpack.c.l.bf16 %v1807
        %v1825 = vunpack.c.h.bf16 %v1807
        %v1826 = vunpack.c.l.bf16 %v1808
        %v1827 = vunpack.c.l.bf16 %v1809
        %v1828 = vunpack.c.h.bf16 %v1809
        %v1829 = vunpack.c.l.bf16 %v1810
        %v1830 = vunpack.c.l.bf16 %v1811
        %v1831 = vunpack.c.h.bf16 %v1811
        %v1832 = vunpack.c.l.bf16 %v1812
        %v1833 = vunpack.c.l.bf16 %v1813
        %v1834 = vunpack.c.h.bf16 %v1813
        %v1835 = vunpack.c.l.bf16 %v1814
        %v1836 = vunpack.c.l.bf16 %v1815
        %v1837 = vunpack.c.h.bf16 %v1815
        %v1838 = vunpack.c.l.bf16 %v1816
        %v1839 = vunpack.c.l.bf16 %v1817
        %v1840 = vunpack.c.h.bf16 %v1817
        %v1841 = vunpack.c.l.bf16 %v1818
        %v1842 = vunpack.c.l.bf16 %v1819
        %v1843 = vunpack.c.h.bf16 %v1819
        %v1844 = vunpack.c.l.bf16 %v1820
        %s1845 = scalar_lea.vmem %s658, 576 [#allocation2]
        %v1846 = vld [vmem:[%s1845] sm:$0xff]
        %v1847 = vld [vmem:[%s1845 + $0x8] sm:$0xff]
        %v1848 = vld [vmem:[%s1845 + $0x10] sm:$0xff]
        %v1849 = vld [vmem:[%s1845 + $0x18] sm:$0xff]
        %v1850 = vld [vmem:[%s1845 + $0x20] sm:$0xff]
        %v1851 = vld [vmem:[%s1845 + $0x28] sm:$0xff]
        %v1852 = vld [vmem:[%s1845 + $0x30] sm:$0xff]
        %v1853 = vld [vmem:[%s1845 + $0x38] sm:$0xff]
        %v1854 = vld [vmem:[%s1845 + $0x40] sm:$0xff]
        %v1855 = vld [vmem:[%s1845 + $0x48] sm:$0xff]
        %v1856 = vld [vmem:[%s1845 + $0x50] sm:$0xff]
        %v1857 = vld [vmem:[%s1845 + $0x58] sm:$0xff]
        %v1858 = vld [vmem:[%s1845 + $0x60] sm:$0xff]
        %v1859 = vld [vmem:[%s1845 + $0x68] sm:$0xff]
        %v1860 = vld [vmem:[%s1845 + $0x70] sm:$0xff]
        %v1861 = vld [vmem:[%s1845 + $0x78] sm:$0xff]
        %v1862 = vld [vmem:[%s1845 + $0x80] sm:$0xff]
        %v1863 = vld [vmem:[%s1845 + $0x88] sm:$0xff]
        %v1864 = vld [vmem:[%s1845 + $0x90] sm:$0xff]
        %v1865 = vld [vmem:[%s1845 + $0x98] sm:$0xff]
        %v1866 = vld [vmem:[%s1845 + $0xa0] sm:$0xff]
        %v1867 = vld [vmem:[%s1845 + $0xa8] sm:$0xff]
        %v1868 = vld [vmem:[%s1845 + $0xb0] sm:$0xff]
        %v1869 = vld [vmem:[%s1845 + $0xb8] sm:$0xff]
        %v1870 = vld [vmem:[%s1845 + $0xc0] sm:$0xff]
        %v1871 = vld [vmem:[%s1845 + $0xc8] sm:$0xff]
        %v1872 = vld [vmem:[%s1845 + $0xd0] sm:$0xff]
        %v1873 = vld [vmem:[%s1845 + $0xd8] sm:$0xff]
        %v1874 = vld [vmem:[%s1845 + $0xe0] sm:$0xff]
        %v1875 = vld [vmem:[%s1845 + $0xe8] sm:$0xff]
        %v1876 = vld [vmem:[%s1845 + $0xf0] sm:$0xff]
        %v1877 = vld [vmem:[%s1845 + $0xf8] sm:$0xff]
        %v1878 = vld [vmem:[%s1845 + $0x100] sm:$0xff]
        %v1879 = vld [vmem:[%s1845 + $0x108] sm:$0xff]
        %v1880 = vld [vmem:[%s1845 + $0x110] sm:$0xff]
        %v1881 = vld [vmem:[%s1845 + $0x118] sm:$0xff]
        %v1882 = vunpack.c.l.bf16 %v1846
        %v1883 = vunpack.c.h.bf16 %v1846
        %v1884 = vunpack.c.l.bf16 %v1847
        %v1885 = vunpack.c.h.bf16 %v1847
        %v1886 = vunpack.c.l.bf16 %v1848
        %v1887 = vunpack.c.h.bf16 %v1848
        %v1888 = vunpack.c.l.bf16 %v1849
        %v1889 = vunpack.c.h.bf16 %v1849
        %v1890 = vunpack.c.l.bf16 %v1850
        %v1891 = vunpack.c.h.bf16 %v1850
        %v1892 = vunpack.c.l.bf16 %v1851
        %v1893 = vunpack.c.h.bf16 %v1851
        %v1894 = vunpack.c.l.bf16 %v1852
        %v1895 = vunpack.c.h.bf16 %v1852
        %v1896 = vunpack.c.l.bf16 %v1853
        %v1897 = vunpack.c.h.bf16 %v1853
        %v1898 = vunpack.c.l.bf16 %v1854
        %v1899 = vunpack.c.h.bf16 %v1854
        %v1900 = vunpack.c.l.bf16 %v1855
        %v1901 = vunpack.c.h.bf16 %v1855
        %v1902 = vunpack.c.l.bf16 %v1856
        %v1903 = vunpack.c.h.bf16 %v1856
        %v1904 = vunpack.c.l.bf16 %v1857
        %v1905 = vunpack.c.h.bf16 %v1857
        %v1906 = vunpack.c.l.bf16 %v1858
        %v1907 = vunpack.c.h.bf16 %v1858
        %v1908 = vunpack.c.l.bf16 %v1859
        %v1909 = vunpack.c.h.bf16 %v1859
        %v1910 = vunpack.c.l.bf16 %v1860
        %v1911 = vunpack.c.h.bf16 %v1860
        %v1912 = vunpack.c.l.bf16 %v1861
        %v1913 = vunpack.c.h.bf16 %v1861
        %v1914 = vunpack.c.l.bf16 %v1862
        %v1915 = vunpack.c.h.bf16 %v1862
        %v1916 = vunpack.c.l.bf16 %v1863
        %v1917 = vunpack.c.h.bf16 %v1863
        %v1918 = vunpack.c.l.bf16 %v1864
        %v1919 = vunpack.c.h.bf16 %v1864
        %v1920 = vunpack.c.l.bf16 %v1865
        %v1921 = vunpack.c.h.bf16 %v1865
        %v1922 = vunpack.c.l.bf16 %v1866
        %v1923 = vunpack.c.h.bf16 %v1866
        %v1924 = vunpack.c.l.bf16 %v1867
        %v1925 = vunpack.c.h.bf16 %v1867
        %v1926 = vunpack.c.l.bf16 %v1868
        %v1927 = vunpack.c.h.bf16 %v1868
        %v1928 = vunpack.c.l.bf16 %v1869
        %v1929 = vunpack.c.h.bf16 %v1869
        %v1930 = vunpack.c.l.bf16 %v1870
        %v1931 = vunpack.c.h.bf16 %v1870
        %v1932 = vunpack.c.l.bf16 %v1871
        %v1933 = vunpack.c.h.bf16 %v1871
        %v1934 = vunpack.c.l.bf16 %v1872
        %v1935 = vunpack.c.h.bf16 %v1872
        %v1936 = vunpack.c.l.bf16 %v1873
        %v1937 = vunpack.c.h.bf16 %v1873
        %v1938 = vunpack.c.l.bf16 %v1874
        %v1939 = vunpack.c.h.bf16 %v1874
        %v1940 = vunpack.c.l.bf16 %v1875
        %v1941 = vunpack.c.h.bf16 %v1875
        %v1942 = vunpack.c.l.bf16 %v1876
        %v1943 = vunpack.c.h.bf16 %v1876
        %v1944 = vunpack.c.l.bf16 %v1877
        %v1945 = vunpack.c.h.bf16 %v1877
        %v1946 = vunpack.c.l.bf16 %v1878
        %v1947 = vunpack.c.h.bf16 %v1878
        %v1948 = vunpack.c.l.bf16 %v1879
        %v1949 = vunpack.c.h.bf16 %v1879
        %v1950 = vunpack.c.l.bf16 %v1880
        %v1951 = vunpack.c.h.bf16 %v1880
        %v1952 = vunpack.c.l.bf16 %v1881
        %v1953 = vunpack.c.h.bf16 %v1881
        %s1954 = scalar_lea.vmem %s2, 128
        %v1955 = vld [vmem:[%s1954] sm:$0xff]
        %v1956 = vld [vmem:[%s1954 + $0x8] sm:$0xff]
        %v1957 = vld [vmem:[%s1954 + $0x10] sm:$0xff]
        %v1958 = vld [vmem:[%s1954 + $0x18] sm:$0xff]
        %v1959 = vld [vmem:[%s1954 + $0x20] sm:$0xff]
        %v1960 = vld [vmem:[%s1954 + $0x28] sm:$0xff]
        %v1961 = vld [vmem:[%s1954 + $0x30] sm:$0xff]
        %v1962 = vld [vmem:[%s1954 + $0x38] sm:$0xff]
        %1964 = vset.pattern.permute.xlu0 0
        %1965 = vperm.xlu0 %1964, %v1955
        %v1966 = vpop.permute.xlu0 %1965
        %1969 = vset.pattern.permute.xlu0 0
        %1970 = vperm.xlu0 %1969, %v1956
        %v1971 = vpop.permute.xlu0 %1970
        %1974 = vset.pattern.permute.xlu0 0
        %1975 = vperm.xlu0 %1974, %v1957
        %v1976 = vpop.permute.xlu0 %1975
        %1979 = vset.pattern.permute.xlu0 0
        %1980 = vperm.xlu0 %1979, %v1958
        %v1981 = vpop.permute.xlu0 %1980
        %1984 = vset.pattern.permute.xlu0 0
        %1985 = vperm.xlu0 %1984, %v1959
        %v1986 = vpop.permute.xlu0 %1985
        %1989 = vset.pattern.permute.xlu0 0
        %1990 = vperm.xlu0 %1989, %v1960
        %v1991 = vpop.permute.xlu0 %1990
        %1994 = vset.pattern.permute.xlu0 0
        %1995 = vperm.xlu0 %1994, %v1961
        %v1996 = vpop.permute.xlu0 %1995
        %1999 = vset.pattern.permute.xlu0 0
        %2000 = vperm.xlu0 %1999, %v1962
        %v2001 = vpop.permute.xlu0 %2000
        %v2004 = vsel %vm892, %v1823, 0
        %v2007 = vsel %vm892, %v1826, 0
        %v2010 = vsel %vm892, %v1829, 0
        %v2013 = vsel %vm892, %v1832, 0
        %v2016 = vsel %vm892, %v1835, 0
        %v2019 = vsel %vm892, %v1838, 0
        %v2022 = vsel %vm892, %v1841, 0
        %v2025 = vsel %vm892, %v1844, 0
        %2027 = vmatprep.subr.mxu0 %v1883
        %2028 = vmatpush1.msra.mxu0 %v1882
        %2029 = vmatprep.subr.mxu0 %v1885
        %2030 = vmatpush1.msra.mxu0 %v1884
        %2031 = vmatprep.subr.mxu0 %v1887
        %2032 = vmatpush1.msra.mxu0 %v1886
        %2033 = vmatprep.subr.mxu0 %v1889
        %2034 = vmatpush1.msra.mxu0 %v1888
        %2035 = vmatprep.subr.mxu0 %v1891
        %2036 = vmatpush1.msra.mxu0 %v1890
        %2037 = vmatprep.subr.mxu0 %v1893
        %2038 = vmatpush1.msra.mxu0 %v1892
        %2039 = vmatprep.subr.mxu0 %v1895
        %2040 = vmatpush1.msra.mxu0 %v1894
        %2041 = vmatprep.subr.mxu0 %v1897
        %2042 = vmatpush1.msra.mxu0 %v1896
        %2043 = vmatprep.subr.mxu0 %v1899
        %2044 = vmatpush1.msra.mxu0 %v1898
        %2045 = vmatprep.subr.mxu0 %v1901
        %2046 = vmatpush1.msra.mxu0 %v1900
        %2047 = vmatprep.subr.mxu0 %v1903
        %2048 = vmatpush1.msra.mxu0 %v1902
        %2049 = vmatprep.subr.mxu0 %v1905
        %2050 = vmatpush1.msra.mxu0 %v1904
        %2051 = vmatprep.subr.mxu0 %v1907
        %2052 = vmatpush1.msra.mxu0 %v1906
        %2053 = vmatprep.subr.mxu0 %v1909
        %2054 = vmatpush1.msra.mxu0 %v1908
        %2055 = vmatprep.subr.mxu0 %v1911
        %2056 = vmatpush1.msra.mxu0 %v1910
        %2057 = vmatprep.subr.mxu0 %v1913
        %2058 = vmatpush1.msra.mxu0 %v1912
        %2059 = vmatprep.subr.mxu0 %v1915
        %2060 = vmatpush1.msra.mxu0 %v1914
        %2061 = vmatprep.subr.mxu0 %v1917
        %2062 = vmatpush1.msra.mxu0 %v1916
        %2063 = vmatprep.subr.mxu0 %v1919
        %2064 = vmatpush1.msra.mxu0 %v1918
        %2065 = vmatprep.subr.mxu0 %v1921
        %2066 = vmatpush1.msra.mxu0 %v1920
        %2067 = vmatprep.subr.mxu0 %v1923
        %2068 = vmatpush1.msra.mxu0 %v1922
        %2069 = vmatprep.subr.mxu0 %v1925
        %2070 = vmatpush1.msra.mxu0 %v1924
        %2071 = vmatprep.subr.mxu0 %v1927
        %2072 = vmatpush1.msra.mxu0 %v1926
        %2073 = vmatprep.subr.mxu0 %v1929
        %2074 = vmatpush1.msra.mxu0 %v1928
        %2075 = vmatprep.subr.mxu0 %v1931
        %2076 = vmatpush1.msra.mxu0 %v1930
        %2077 = vmatprep.subr.mxu0 %v1933
        %2078 = vmatpush1.msra.mxu0 %v1932
        %2079 = vmatprep.subr.mxu0 %v1935
        %2080 = vmatpush1.msra.mxu0 %v1934
        %2081 = vmatprep.subr.mxu0 %v1937
        %2082 = vmatpush1.msra.mxu0 %v1936
        %2083 = vmatprep.subr.mxu0 %v1939
        %2084 = vmatpush1.msra.mxu0 %v1938
        %2085 = vmatprep.subr.mxu0 %v1941
        %2086 = vmatpush1.msra.mxu0 %v1940
        %2087 = vmatprep.subr.mxu0 %v1943
        %2088 = vmatpush1.msra.mxu0 %v1942
        %2089 = vmatprep.subr.mxu0 %v1945
        %2090 = vmatpush1.msra.mxu0 %v1944
        %2091 = vmatprep.mubr.f32.mxu0 %v1822
        %2092 = vmatmul.mubr.f32.gmra.mrb[0].mxu0 %v1821
        %v2093 = vpop.f32.mrb[0].mxu0
        %v2094 = vadd.f32 %v1966, %v2093
        %v2095 = vpop.f32.mrb[0].mxu0
        %v2096 = vadd.f32 %v1966, %v2095
        %2097 = vmatprep.mubr.f32.mxu0 %v1825
        %2098 = vmatmul.mubr.f32.gmra.mrb[0].mxu0 %v1824
        %v2099 = vpop.f32.mrb[0].mxu0
        %v2100 = vadd.f32 %v1971, %v2099
        %v2101 = vpop.f32.mrb[0].mxu0
        %v2102 = vadd.f32 %v1971, %v2101
        %2103 = vmatprep.mubr.f32.mxu0 %v1828
        %2104 = vmatmul.mubr.f32.gmra.mrb[0].mxu0 %v1827
        %v2105 = vpop.f32.mrb[0].mxu0
        %v2106 = vadd.f32 %v1976, %v2105
        %v2107 = vpop.f32.mrb[0].mxu0
        %v2108 = vadd.f32 %v1976, %v2107
        %2109 = vmatprep.mubr.f32.mxu0 %v1831
        %2110 = vmatmul.mubr.f32.gmra.mrb[0].mxu0 %v1830
        %v2111 = vpop.f32.mrb[0].mxu0
        %v2112 = vadd.f32 %v1981, %v2111
        %v2113 = vpop.f32.mrb[0].mxu0
        %v2114 = vadd.f32 %v1981, %v2113
        %2115 = vmatprep.mubr.f32.mxu0 %v1834
        %2116 = vmatmul.mubr.f32.gmra.mrb[0].mxu0 %v1833
        %v2117 = vpop.f32.mrb[0].mxu0
        %v2118 = vadd.f32 %v1986, %v2117
        %v2119 = vpop.f32.mrb[0].mxu0
        %v2120 = vadd.f32 %v1986, %v2119
        %2121 = vmatprep.mubr.f32.mxu0 %v1837
        %2122 = vmatmul.mubr.f32.gmra.mrb[0].mxu0 %v1836
        %v2123 = vpop.f32.mrb[0].mxu0
        %v2124 = vadd.f32 %v1991, %v2123
        %v2125 = vpop.f32.mrb[0].mxu0
        %v2126 = vadd.f32 %v1991, %v2125
        %2127 = vmatprep.mubr.f32.mxu0 %v1840
        %2128 = vmatmul.mubr.f32.gmra.mrb[0].mxu0 %v1839
        %v2129 = vpop.f32.mrb[0].mxu0
        %v2130 = vadd.f32 %v1996, %v2129
        %v2131 = vpop.f32.mrb[0].mxu0
        %v2132 = vadd.f32 %v1996, %v2131
        %2133 = vmatprep.mubr.f32.mxu0 %v1843
        %2134 = vmatmul.mubr.f32.gmra.mrb[0].mxu0 %v1842
        %v2135 = vpop.f32.mrb[0].mxu0
        %v2136 = vadd.f32 %v2001, %v2135
        %v2137 = vpop.f32.mrb[0].mxu0
        %v2138 = vadd.f32 %v2001, %v2137
        %2139 = vdwg.mxu0
        %2140 = vmatprep.subr.mxu0 %v1947
        %2141 = vmatpush1.msra.mxu0 %v1946
        %2142 = vmatprep.subr.mxu0 %v1949
        %2143 = vmatpush1.msra.mxu0 %v1948
        %2144 = vmatprep.subr.mxu0 %v1951
        %2145 = vmatpush1.msra.mxu0 %v1950
        %2146 = vmatprep.subr.mxu0 %v1953
        %2147 = vmatpush1.msra.mxu0 %v1952
        %2148 = vmatprep.subr.mxu0 0.0
        %2149 = vmatpush1.msra.mxu0 0.0
        %2150 = vmatprep.subr.mxu0 0.0
        %2151 = vmatpush1.msra.mxu0 0.0
        %2152 = vmatprep.subr.mxu0 0.0
        %2153 = vmatpush1.msra.mxu0 0.0
        %2154 = vmatprep.subr.mxu0 0.0
        %2155 = vmatpush1.msra.mxu0 0.0
        %2156 = vmatprep.subr.mxu0 0.0
        %2157 = vmatpush1.msra.mxu0 0.0
        %2158 = vmatprep.subr.mxu0 0.0
        %2159 = vmatpush1.msra.mxu0 0.0
        %2160 = vmatprep.subr.mxu0 0.0
        %2161 = vmatpush1.msra.mxu0 0.0
        %2162 = vmatprep.subr.mxu0 0.0
        %2163 = vmatpush1.msra.mxu0 0.0
        %2164 = vmatprep.subr.mxu0 0.0
        %2165 = vmatpush1.msra.mxu0 0.0
        %2166 = vmatprep.subr.mxu0 0.0
        %2167 = vmatpush1.msra.mxu0 0.0
        %2168 = vmatprep.subr.mxu0 0.0
        %2169 = vmatpush1.msra.mxu0 0.0
        %2170 = vmatprep.subr.mxu0 0.0
        %2171 = vmatpush1.msra.mxu0 0.0
        %2172 = vmatprep.subr.mxu0 0.0
        %2173 = vmatpush1.msra.mxu0 0.0
        %2174 = vmatprep.subr.mxu0 0.0
        %2175 = vmatpush1.msra.mxu0 0.0
        %2176 = vmatprep.subr.mxu0 0.0
        %2177 = vmatpush1.msra.mxu0 0.0
        %2178 = vmatprep.subr.mxu0 0.0
        %2179 = vmatpush1.msra.mxu0 0.0
        %2180 = vmatprep.subr.mxu0 0.0
        %2181 = vmatpush1.msra.mxu0 0.0
        %2182 = vmatprep.subr.mxu0 0.0
        %2183 = vmatpush1.msra.mxu0 0.0
        %2184 = vmatprep.subr.mxu0 0.0
        %2185 = vmatpush1.msra.mxu0 0.0
        %2186 = vmatprep.subr.mxu0 0.0
        %2187 = vmatpush1.msra.mxu0 0.0
        %2188 = vmatprep.subr.mxu0 0.0
        %2189 = vmatpush1.msra.mxu0 0.0
        %2190 = vmatprep.subr.mxu0 0.0
        %2191 = vmatpush1.msra.mxu0 0.0
        %2192 = vmatprep.subr.mxu0 0.0
        %2193 = vmatpush1.msra.mxu0 0.0
        %2194 = vmatprep.subr.mxu0 0.0
        %2195 = vmatpush1.msra.mxu0 0.0
        %2196 = vmatprep.subr.mxu0 0.0
        %2197 = vmatpush1.msra.mxu0 0.0
        %2198 = vmatprep.subr.mxu0 0.0
        %2199 = vmatpush1.msra.mxu0 0.0
        %2200 = vmatprep.subr.mxu0 0.0
        %2201 = vmatpush1.msra.mxu0 0.0
        %2202 = vmatprep.subr.mxu0 0.0
        %2203 = vmatpush1.msra.mxu0 0.0
        %2204 = vmatprep.mubr.f32.mxu0 0.0
        %2205 = vmatmul.mubr.f32.gmra.mrb[0].mxu0 %v2004
        %v2206 = vpop.f32.mrb[0].mxu0
        %v2207 = vadd.f32 %v2094, %v2206
        %v2208 = vpop.f32.mrb[0].mxu0
        %v2209 = vadd.f32 %v2096, %v2208
        %2210 = vmatprep.mubr.f32.mxu0 0.0
        %2211 = vmatmul.mubr.f32.gmra.mrb[0].mxu0 %v2007
        %v2212 = vpop.f32.mrb[0].mxu0
        %v2213 = vadd.f32 %v2100, %v2212
        %v2214 = vpop.f32.mrb[0].mxu0
        %v2215 = vadd.f32 %v2102, %v2214
        %2216 = vmatprep.mubr.f32.mxu0 0.0
        %2217 = vmatmul.mubr.f32.gmra.mrb[0].mxu0 %v2010
        %v2218 = vpop.f32.mrb[0].mxu0
        %v2219 = vadd.f32 %v2106, %v2218
        %v2220 = vpop.f32.mrb[0].mxu0
        %v2221 = vadd.f32 %v2108, %v2220
        %2222 = vmatprep.mubr.f32.mxu0 0.0
        %2223 = vmatmul.mubr.f32.gmra.mrb[0].mxu0 %v2013
        %v2224 = vpop.f32.mrb[0].mxu0
        %v2225 = vadd.f32 %v2112, %v2224
        %v2226 = vpop.f32.mrb[0].mxu0
        %v2227 = vadd.f32 %v2114, %v2226
        %2228 = vmatprep.mubr.f32.mxu0 0.0
        %2229 = vmatmul.mubr.f32.gmra.mrb[0].mxu0 %v2016
        %v2230 = vpop.f32.mrb[0].mxu0
        %v2231 = vadd.f32 %v2118, %v2230
        %v2232 = vpop.f32.mrb[0].mxu0
        %v2233 = vadd.f32 %v2120, %v2232
        %2234 = vmatprep.mubr.f32.mxu0 0.0
        %2235 = vmatmul.mubr.f32.gmra.mrb[0].mxu0 %v2019
        %v2236 = vpop.f32.mrb[0].mxu0
        %v2237 = vadd.f32 %v2124, %v2236
        %v2238 = vpop.f32.mrb[0].mxu0
        %v2239 = vadd.f32 %v2126, %v2238
        %2240 = vmatprep.mubr.f32.mxu0 0.0
        %2241 = vmatmul.mubr.f32.gmra.mrb[0].mxu0 %v2022
        %v2242 = vpop.f32.mrb[0].mxu0
        %v2243 = vadd.f32 %v2130, %v2242
        %v2244 = vpop.f32.mrb[0].mxu0
        %v2245 = vadd.f32 %v2132, %v2244
        %2246 = vmatprep.mubr.f32.mxu0 0.0
        %2247 = vmatmul.mubr.f32.gmra.mrb[0].mxu0 %v2025
        %v2248 = vpop.f32.mrb[0].mxu0
        %v2249 = vadd.f32 %v2136, %v2248
        %v2250 = vpop.f32.mrb[0].mxu0
        %v2251 = vadd.f32 %v2138, %v2250
        %2252 = vdwg.mxu0
        %v2253 = vmax.f32 %v2207, 0.0
        %v2254 = vmax.f32 %v2209, 0.0
        %v2255 = vmax.f32 %v2213, 0.0
        %v2256 = vmax.f32 %v2215, 0.0
        %v2257 = vmax.f32 %v2219, 0.0
        %v2258 = vmax.f32 %v2221, 0.0
        %v2259 = vmax.f32 %v2225, 0.0
        %v2260 = vmax.f32 %v2227, 0.0
        %v2261 = vmax.f32 %v2231, 0.0
        %v2262 = vmax.f32 %v2233, 0.0
        %v2263 = vmax.f32 %v2237, 0.0
        %v2264 = vmax.f32 %v2239, 0.0
        %v2265 = vmax.f32 %v2243, 0.0
        %v2266 = vmax.f32 %v2245, 0.0
        %v2267 = vmax.f32 %v2249, 0.0
        %v2268 = vmax.f32 %v2251, 0.0
        %s2269 = scalar_lea.vmem %s3, 32
        %v2270 = vld [vmem:[%s2269] sm:$0xff]
        %v2271 = vld [vmem:[%s2269 + $0x8] sm:$0xff]
        %v2273 = vsel %vm1161, %v2270, 0
        %v2276 = vsel %vm1161, %v2271, 0
        %2278 = vmatprep.subr.mxu0 %v2254
        %2279 = vmatpush1.msra.mxu0 %v2253
        %2280 = vmatprep.subr.mxu0 %v2256
        %2281 = vmatpush1.msra.mxu0 %v2255
        %2282 = vmatprep.subr.mxu0 %v2258
        %2283 = vmatpush1.msra.mxu0 %v2257
        %2284 = vmatprep.subr.mxu0 %v2260
        %2285 = vmatpush1.msra.mxu0 %v2259
        %2286 = vmatprep.subr.mxu0 %v2262
        %2287 = vmatpush1.msra.mxu0 %v2261
        %2288 = vmatprep.subr.mxu0 %v2264
        %2289 = vmatpush1.msra.mxu0 %v2263
        %2290 = vmatprep.subr.mxu0 %v2266
        %2291 = vmatpush1.msra.mxu0 %v2265
        %2292 = vmatprep.subr.mxu0 %v2268
        %2293 = vmatpush1.msra.mxu0 %v2267
        %2294 = vmatprep.subr.mxu0 0.0
        %2295 = vmatpush1.msra.mxu0 0.0
        %2296 = vmatprep.subr.mxu0 0.0
        %2297 = vmatpush1.msra.mxu0 0.0
        %2298 = vmatprep.subr.mxu0 0.0
        %2299 = vmatpush1.msra.mxu0 0.0
        %2300 = vmatprep.subr.mxu0 0.0
        %2301 = vmatpush1.msra.mxu0 0.0
        %2302 = vmatprep.subr.mxu0 0.0
        %2303 = vmatpush1.msra.mxu0 0.0
        %2304 = vmatprep.subr.mxu0 0.0
        %2305 = vmatpush1.msra.mxu0 0.0
        %2306 = vmatprep.subr.mxu0 0.0
        %2307 = vmatpush1.msra.mxu0 0.0
        %2308 = vmatprep.subr.mxu0 0.0
        %2309 = vmatpush1.msra.mxu0 0.0
        %2310 = vmatprep.subr.mxu0 0.0
        %2311 = vmatpush1.msra.mxu0 0.0
        %2312 = vmatprep.subr.mxu0 0.0
        %2313 = vmatpush1.msra.mxu0 0.0
        %2314 = vmatprep.subr.mxu0 0.0
        %2315 = vmatpush1.msra.mxu0 0.0
        %2316 = vmatprep.subr.mxu0 0.0
        %2317 = vmatpush1.msra.mxu0 0.0
        %2318 = vmatprep.subr.mxu0 0.0
        %2319 = vmatpush1.msra.mxu0 0.0
        %2320 = vmatprep.subr.mxu0 0.0
        %2321 = vmatpush1.msra.mxu0 0.0
        %2322 = vmatprep.subr.mxu0 0.0
        %2323 = vmatpush1.msra.mxu0 0.0
        %2324 = vmatprep.subr.mxu0 0.0
        %2325 = vmatpush1.msra.mxu0 0.0
        %2326 = vmatprep.subr.mxu0 0.0
        %2327 = vmatpush1.msra.mxu0 0.0
        %2328 = vmatprep.subr.mxu0 0.0
        %2329 = vmatpush1.msra.mxu0 0.0
        %2330 = vmatprep.subr.mxu0 0.0
        %2331 = vmatpush1.msra.mxu0 0.0
        %2332 = vmatprep.subr.mxu0 0.0
        %2333 = vmatpush1.msra.mxu0 0.0
        %2334 = vmatprep.subr.mxu0 0.0
        %2335 = vmatpush1.msra.mxu0 0.0
        %2336 = vmatprep.subr.mxu0 0.0
        %2337 = vmatpush1.msra.mxu0 0.0
        %2338 = vmatprep.subr.mxu0 0.0
        %2339 = vmatpush1.msra.mxu0 0.0
        %2340 = vmatprep.subr.mxu0 0.0
        %2341 = vmatpush1.msra.mxu0 0.0
        %2342 = vmatprep.mubr.f32.mxu0 0.0
        %2343 = vmatmul.mubr.f32.gmra.mrb[0].mxu0 %v2273
        %v2344 = vpop.f32.mrb[0].mxu0
        %v2345 = vadd.f32 0.0, %v2344
        %v2346 = vpop.f32.mrb[0].mxu0
        %v2347 = vadd.f32 0.0, %v2346
        %2348 = vmatprep.mubr.f32.mxu0 0.0
        %2349 = vmatmul.mubr.f32.gmra.mrb[0].mxu0 %v2276
        %v2350 = vpop.f32.mrb[0].mxu0
        %v2351 = vadd.f32 0.0, %v2350
        %v2352 = vpop.f32.mrb[0].mxu0
        %v2353 = vadd.f32 0.0, %v2352
        %2354 = vdwg.mxu0
        %v2355 = vadd.f32 %v1800, %v2345
        %v2356 = vadd.f32 %v1801, %v2347
        %v2357 = vadd.f32 %v1802, %v2351
        %v2358 = vadd.f32 %v1803, %v2353
        %2359 = vst [vmem:[%s681] sm:$0xff] %v2355
        %2360 = vst [vmem:[%s681 + $0x8] sm:$0xff] %v2356
        %2361 = vst [vmem:[%s681 + $0x10] sm:$0xff] %v2357
        %2362 = vst [vmem:[%s681 + $0x18] sm:$0xff] %v2358
        %s2363 = sand.u32 %s134, 1
        %s2364 = sand.u32 %s134, 1
        %s2365 = smul.addr %s2364, 32
        %s2366 = scalar_lea.vmem [#allocation3], %s2365
        // Predicated region
        $region79: #{produce_head_forward.3} parent=73 // pred_check
          %p2367 = pneg %p144
        $region80: #{produce_head_forward.3} parent=73 // pred_check_branch
          %2369 = sbr.rel (%p2367) target = $region82
        $region81: #{produce_head_forward.3} parent=73 // pred_region
          %s2370 = smul.u32 2, %s16
          %s2371 = smul.addr %s2370, 8
          %s2372 = scalar_lea.vmem %s5, %s2371
          // Predicated region
          $region83: #{produce_head_forward.3} parent=81 // pred_check
            _
          $region84: #{produce_head_forward.3} parent=81 // pred_check_branch
            %2374 = sbr.rel (0) target = $region86
          $region85: #{produce_head_forward.3} parent=81 // pred_region
            // Predicated region
            $region87: #{produce_head_forward.3} parent=85 // pred_check
              _
            $region88: #{produce_head_forward.3} parent=85 // pred_check_branch
              %2376 = sbr.rel (0) target = $region90
            $region89: #{produce_head_forward.3} parent=85 // pred_region
              loop: start=0, step=1, limit=1
              $region91: #{produce_head_forward.3} parent=89 // loop_pre_header
                _
              $region92: #{produce_head_forward.3} parent=89 // loop_header
                %s2378 = sphi 0, %s2382
                %p2379 = scmp.ge.s32.totalorder %s2378, 1
                %s2383 = sphi %s2366, %s2366
                %s2384 = sphi %s2372, %s2372
              $region93: #{produce_head_forward.3} parent=89 // loop_header_branch
                %2381 = sbr.rel (%p2379) target = $region97
              $region94: #{produce_head_forward.3} parent=89 // loop_body
                %v2385 = vld [vmem:[%s2383] sm:$0xff]
                %2386 = vst [vmem:[%s2384] sm:$0xff] %v2385
                %v2387 = vld [vmem:[%s2383 + $0x8] sm:$0xff]
                %2388 = vst [vmem:[%s2384 + $0x8] sm:$0xff] %v2387
                %v2389 = vld [vmem:[%s2383 + $0x10] sm:$0xff]
                %2390 = vst [vmem:[%s2384 + $0x20] sm:$0xff] %v2389
                %v2391 = vld [vmem:[%s2383 + $0x18] sm:$0xff]
                %2392 = vst [vmem:[%s2384 + $0x28] sm:$0xff] %v2391
              $region95: #{produce_head_forward.3} parent=89 // loop_footer
                %s2382 = sadd.s32 1, %s2378
              $region96: #{produce_head_forward.3} parent=89 // loop_footer_branch
                %2377 = sbr.rel target = $region92
              $region97: #{produce_head_forward.3} parent=89 // loop_exit
                _
            $region90: #{produce_head_forward.3} parent=85 // pred_fallthru
              _
            // Predicated region
            $region98: #{produce_head_forward.3} parent=85 // pred_check
              _
            $region99: #{produce_head_forward.3} parent=85 // pred_check_branch
              %2394 = sbr.rel target = $region101
            $region100: #{produce_head_forward.3} parent=85 // pred_region
              _
            $region101: #{produce_head_forward.3} parent=85 // pred_fallthru
              _
          $region86: #{produce_head_forward.3} parent=81 // pred_fallthru
            _
          %2395 = vnop
        $region82: #{produce_head_forward.3} parent=73 // pred_fallthru
          _
      $region74: #{produce_head_forward.3} parent=5 // pred_fallthru
        _
      %p2396 = scmp.le.s32.totalorder 2, %s11
      // Predicated region
      $region102: #{produce_head_forward.3} parent=5 // pred_check
        %p2397 = pneg %p2396
      $region103: #{produce_head_forward.3} parent=5 // pred_check_branch
        %2399 = sbr.rel (%p2397) target = $region105
      $region104: #{produce_head_forward.3} parent=5 // pred_region
        %s2400 = ssub.s32 %s11, 2
        // Predicated region
        $region106: #{produce_head_forward.3} parent=104 // pred_check
          %p2401 = pneg %p150
        $region107: #{produce_head_forward.3} parent=104 // pred_check_branch
          %2403 = sbr.rel (%p2401) target = $region109
        $region108: #{produce_head_forward.3} parent=104 // pred_region
          %s2404 = sand.u32 %s135, 1
          %s2405 = sand.u32 %s135, 1
          %s2406 = smul.addr %s2405, 32
          %s2407 = scalar_lea.vmem [#allocation3], %s2406
        $region109: #{produce_head_forward.3} parent=104 // pred_fallthru
          _
      $region105: #{produce_head_forward.3} parent=5 // pred_fallthru
        _
    $region6: #{produce_head_forward.3} parent=1 // loop_footer
      %s15 = sadd.s32 1, %s11
    $region7: #{produce_head_forward.3} parent=1 // loop_footer_branch
      %10 = sbr.rel target = $region3
    $region8: #{produce_head_forward.3} parent=1 // loop_exit
      _

</llo_original>
